<compile_context>
chip_gen: v7x
topology: tpu7x:2x2x1
jax: 0.10.0
libtpu: 0.0.40
codegen_flags: <defaults>
</compile_context>

<pallas_src>
import jax
import jax.numpy as jnp
from jax.experimental import pallas as pl
from jax.experimental.pallas import tpu as pltpu


# ----------------------------------------------------------------------------
# Fused Pallas kernel: conv1 -> ReLU -> deconv(4-phase) -> ReLU, one image.
# ----------------------------------------------------------------------------
def _fused_kernel(xph_ref, w1_ref, w2_ref, out_ref, hp_ref):
    """Both layers for one batch image.

    xph_ref: (4, Hq+1, Wq+1, 64)  bf16  stride-phase planes of padded input
    w1_ref : (9, 64, 128)         bf16  conv1 taps   [ky*3+kx, Cin, Cout]
    w2_ref : (9, 128, 256)        bf16  deconv taps  [dy*3+dx, Cin, 4*Cout]
    out_ref: (1, Hq*Wq, 256)      f32   phase-packed deconv output
    hp_ref : (Hq+2, Wq+2, 128)    bf16  scratch: ReLU(conv1), 1-pixel zero pad
    """
    Hq = hp_ref.shape[0] - 2
    Wq = hp_ref.shape[1] - 2
    M = Hq * Wq

    # ---- Layer 1: Conv2d(64->128, k=3, s=2, p=1) + ReLU  (9 MXU taps) -----
    # h[qy,qx] = sum_{ky,kx} xpad[2qy+ky, 2qx+kx] @ W1[ky,kx]
    # with xpad pre-split on the host into 2x2 stride phases:
    #   xph[py*2+px][m, l] = xpad[2m+py, 2l+px]
    acc1 = jnp.zeros((M, 128), jnp.float32)
    for ky in range(3):
        dy, py = ky // 2, ky % 2
        for kx in range(3):
            dx, px = kx // 2, kx % 2
            patch = xph_ref[py * 2 + px, dy:dy + Hq, dx:dx + Wq, :]
            acc1 += jnp.dot(patch.reshape(M, 64), w1_ref[ky * 3 + kx],
                            preferred_element_type=jnp.float32)
    h = jnp.maximum(acc1, 0.0).astype(jnp.bfloat16)

    # Stash ReLU(h) into the zero-padded VMEM scratch (pad = 1 pixel).
    hp_ref[...] = jnp.zeros_like(hp_ref)
    hp_ref[1:Hq + 1, 1:Wq + 1, :] = h.reshape(Hq, Wq, 128)

    # ---- Layer 2: ConvTranspose2d(128->64, k=4, s=2, p=1) + ReLU ----------
    # 4-phase (sub-pixel) decomposition: output pixel (2qy+ry, 2qx+rx) comes
    # from a 2x2 window of hp; all four phases packed on the lane axis (256).
    acc2 = jnp.zeros((M, 256), jnp.float32)
    for dy in range(3):
        for dx in range(3):
            a = hp_ref[dy:dy + Hq, dx:dx + Wq, :].reshape(M, 128)
            acc2 += jnp.dot(a, w2_ref[dy * 3 + dx],
                            preferred_element_type=jnp.float32)
    out_ref[0] = jnp.maximum(acc2, 0.0)


# ----------------------------------------------------------------------------
# Host-side weight packing (tiny, traced once inside jit)
# ----------------------------------------------------------------------------
def _pack_conv1_weights(enc_w):
    """enc_w: (128, 64, 3, 3) OIHW -> (9, Cin=64, Cout=128) bf16."""
    return enc_w.transpose(2, 3, 1, 0).reshape(9, 64, 128).astype(jnp.bfloat16)


def _pack_deconv_weights(dec_w):
    """dec_w: (Cin=128, Cout=64, 4, 4) (ConvTranspose2d layout)
    -> (9, 128, 4*64) bf16, 4-phase sub-pixel packing.

    Output column (ry*2+rx)*64+co of tap (dy,dx) holds dec_w[:, co, ky, kx]
    with ky = 3+ry-2*dy, kx = 3+rx-2*dx when dy-ry, dx-rx are in {0,1},
    else zero.  This reproduces  y[2qy+ry, 2qx+rx] = sum h[iy,ix] w[ky,kx]
    over the valid (iy, ky) pairs of ConvTranspose2d(k=4, s=2, p=1).
    """
    Cin, Cout, K, _ = dec_w.shape
    w2 = jnp.zeros((3, 3, Cin, 4, Cout), dec_w.dtype)
    for ry in range(2):
        for rx in range(2):
            for dy in range(3):
                for dx in range(3):
                    if not (0 <= dy - ry <= 1 and 0 <= dx - rx <= 1):
                        continue
                    ky = 3 + ry - 2 * dy
                    kx = 3 + rx - 2 * dx
                    w2 = w2.at[dy, dx, :, ry * 2 + rx, :].set(dec_w[:, :, ky, kx])
    return w2.reshape(9, Cin, 4 * Cout).astype(jnp.bfloat16)


# ----------------------------------------------------------------------------
# Forward pass (NCHW in / NCHW out, matching the PyTorch module)
# ----------------------------------------------------------------------------
def tiny_client_model_forward(x, enc_w, dec_w):
    """x: (N, 64, H, W) f32.  enc_w: (128, 64, 3, 3).  dec_w: (128, 64, 4, 4)."""
    N, C, H, W = x.shape
    assert C == 64 and H % 2 == 0 and W % 2 == 0
    Hq, Wq = H // 2, W // 2
    M = Hq * Wq

    # NCHW -> NHWC, pad 1, split stride-2 phases (no data duplication), bf16.
    x_nhwc = jnp.transpose(x, (0, 2, 3, 1))
    xp = jnp.pad(x_nhwc, ((0, 0), (1, 1), (1, 1), (0, 0)))          # (N,H+2,W+2,C)
    xph = (xp.reshape(N, Hq + 1, 2, Wq + 1, 2, C)
             .transpose(0, 2, 4, 1, 3, 5)
             .reshape(N * 4, Hq + 1, Wq + 1, C)
             .astype(jnp.bfloat16))

    w1 = _pack_conv1_weights(enc_w)            # (9, 64, 128)  bf16
    w2 = _pack_deconv_weights(dec_w)           # (9, 128, 256) bf16

    out = pl.pallas_call(
        _fused_kernel,
        out_shape=jax.ShapeDtypeStruct((N, M, 256), jnp.float32),
        grid=(N,),
        in_specs=[
            pl.BlockSpec((4, Hq + 1, Wq + 1, C), lambda n: (n, 0, 0, 0)),
            pl.BlockSpec((9, C, 128), lambda n: (0, 0, 0)),
            pl.BlockSpec((9, 128, 256), lambda n: (0, 0, 0)),
        ],
        out_specs=pl.BlockSpec((1, M, 256), lambda n: (n, 0, 0)),
        scratch_shapes=[pltpu.VMEM((Hq + 2, Wq + 2, 128), jnp.bfloat16)],
        compiler_params=pltpu.CompilerParams(
            dimension_semantics=("parallel",)),
    )(xph, w1, w2)

    # Depth-to-space (pixel shuffle) + NHWC->NCHW in one small transpose:
    # out[n, qy*Wq+qx, (ry*2+rx)*64+co] -> y[n, co, 2qy+ry, 2qx+rx]
    y = (out.reshape(N, Hq, Wq, 2, 2, 64)
            .transpose(0, 5, 1, 3, 2, 4)
            .reshape(N, 64, H, W))
    return y


# ----------------------------------------------------------------------------
# Plain-JAX f32 reference (for correctness check)
# ----------------------------------------------------------------------------
def _reference_forward(x, enc_w, dec_w):
    h = jax.lax.conv_general_dilated(
        x, enc_w, window_strides=(2, 2), padding=((1, 1), (1, 1)),
        dimension_numbers=("NCHW", "OIHW", "NCHW"))
    h = jnp.maximum(h, 0.0)
    w_eq = jnp.flip(dec_w, axis=(2, 3)).transpose(1, 0, 2, 3)   # (64, 128, 4, 4)
    y = jax.lax.conv_general_dilated(
        h, w_eq, window_strides=(1, 1), padding=((2, 2), (2, 2)),
        lhs_dilation=(2, 2),
        dimension_numbers=("NCHW", "OIHW", "NCHW"))
    return jnp.maximum(y, 0.0)


# ----------------------------------------------------------------------------
# main
# ----------------------------------------------------------------------------
if __name__ == "__main__":
    key = jax.random.PRNGKey(0)
    k_x, k_enc, k_dec = jax.random.split(key, 3)

    N, C, H, W = 2, 64, 16, 16
    x = jax.random.normal(k_x, (N, C, H, W), dtype=jnp.float32)

    # Deterministic parameter init (kaiming-ish scaling).
    enc_w = jax.random.normal(k_enc, (128, 64, 3, 3), dtype=jnp.float32) * (
        1.0 / jnp.sqrt(64 * 3 * 3))
    dec_w = jax.random.normal(k_dec, (128, 64, 4, 4), dtype=jnp.float32) * (
        1.0 / jnp.sqrt(128 * 4 * 4))

    fwd = jax.jit(tiny_client_model_forward)
    out = fwd(x, enc_w, dec_w)
    jax.block_until_ready(out)

    assert out.shape == (N, 64, H, W), out.shape
    assert bool(jnp.all(out >= 0.0))  # ReLU output is non-negative

    # Numerical check vs. f32 XLA reference (bf16 operands -> loose tolerance).
    ref = jax.jit(_reference_forward)(x, enc_w, dec_w)
    max_err = float(jnp.max(jnp.abs(out - ref)))
    assert max_err < 7.5e-2, f"max |err| = {max_err}"

    print("KERNEL_OK")
</pallas_src>

<mosaic_0001>
module attributes {stable_mosaic.version = 11 : i64} {
  func.func @_fused_kernel(%arg0: i32, %arg1: memref<4x9x9x64xbf16, #tpu.memory_space<vmem>>, %arg2: memref<9x64x128xbf16, #tpu.memory_space<vmem>>, %arg3: memref<9x128x256xbf16, #tpu.memory_space<vmem>>, %arg4: memref<1x64x256xf32, #tpu.memory_space<vmem>>, %arg5: memref<10x10x128xbf16, #tpu.memory_space<vmem>>) attributes {dimension_semantics = [#tpu.dimension_semantics<parallel>], iteration_bounds = array<i64: 2>, scalar_prefetch = 0 : i64, scratch_operands = 1 : i64, tpu.core_type = #tpu.core_type<tc>, window_params = [{transform_indices = @transform_0, window_bounds = array<i64: 4, 9, 9, 64>}, {pipeline_mode = #tpu.pipeline_mode<synchronous>, transform_indices = @transform_1, window_bounds = array<i64: 9, 64, 128>}, {pipeline_mode = #tpu.pipeline_mode<synchronous>, transform_indices = @transform_2, window_bounds = array<i64: 9, 128, 256>}, {transform_indices = @transform_3, window_bounds = array<i64: 1, 64, 256>}]} {
    %cst = arith.constant 0.000000e+00 : f32
    %0 = vector.broadcast %cst : f32 to vector<64x128xf32>
    %c0 = arith.constant 0 : index
    %c0_0 = arith.constant 0 : index
    %c0_1 = arith.constant 0 : index
    %c0_2 = arith.constant 0 : index
    %1 = vector.load %arg1[%c0, %c0_0, %c0_1, %c0_2] : memref<4x9x9x64xbf16, #tpu.memory_space<vmem>>, vector<1x8x8x64xbf16>
    %2 = vector.shape_cast %1 : vector<1x8x8x64xbf16> to vector<8x8x64xbf16>
    %3 = vector.shape_cast %2 : vector<8x8x64xbf16> to vector<64x64xbf16>
    %c0_3 = arith.constant 0 : index
    %c0_4 = arith.constant 0 : index
    %c0_5 = arith.constant 0 : index
    %4 = vector.load %arg2[%c0_3, %c0_4, %c0_5] : memref<9x64x128xbf16, #tpu.memory_space<vmem>>, vector<1x64x128xbf16>
    %5 = vector.shape_cast %4 : vector<1x64x128xbf16> to vector<64x128xbf16>
    %cst_6 = arith.constant dense<0.000000e+00> : vector<64x128xf32>
    %6 = tpu.matmul %3, %5, %cst_6 {dimension_numbers = #tpu.dot_dimension_numbers<[1], [0], [0], [1], [0, 0, 1, 1], [], []>} : vector<64x64xbf16>, vector<64x128xbf16>, vector<64x128xf32> -> vector<64x128xf32>
    %7 = arith.addf %0, %6 : vector<64x128xf32>
    %c1 = arith.constant 1 : index
    %c0_7 = arith.constant 0 : index
    %c0_8 = arith.constant 0 : index
    %c0_9 = arith.constant 0 : index
    %8 = vector.load %arg1[%c1, %c0_7, %c0_8, %c0_9] : memref<4x9x9x64xbf16, #tpu.memory_space<vmem>>, vector<1x8x8x64xbf16>
    %9 = vector.shape_cast %8 : vector<1x8x8x64xbf16> to vector<8x8x64xbf16>
    %10 = vector.shape_cast %9 : vector<8x8x64xbf16> to vector<64x64xbf16>
    %c1_10 = arith.constant 1 : index
    %c0_11 = arith.constant 0 : index
    %c0_12 = arith.constant 0 : index
    %11 = vector.load %arg2[%c1_10, %c0_11, %c0_12] : memref<9x64x128xbf16, #tpu.memory_space<vmem>>, vector<1x64x128xbf16>
    %12 = vector.shape_cast %11 : vector<1x64x128xbf16> to vector<64x128xbf16>
    %cst_13 = arith.constant dense<0.000000e+00> : vector<64x128xf32>
    %13 = tpu.matmul %10, %12, %cst_13 {dimension_numbers = #tpu.dot_dimension_numbers<[1], [0], [0], [1], [0, 0, 1, 1], [], []>} : vector<64x64xbf16>, vector<64x128xbf16>, vector<64x128xf32> -> vector<64x128xf32>
    %14 = arith.addf %7, %13 : vector<64x128xf32>
    %c0_14 = arith.constant 0 : index
    %c0_15 = arith.constant 0 : index
    %c1_16 = arith.constant 1 : index
    %c0_17 = arith.constant 0 : index
    %15 = vector.load %arg1[%c0_14, %c0_15, %c1_16, %c0_17] : memref<4x9x9x64xbf16, #tpu.memory_space<vmem>>, vector<1x8x8x64xbf16>
    %16 = vector.shape_cast %15 : vector<1x8x8x64xbf16> to vector<8x8x64xbf16>
    %17 = vector.shape_cast %16 : vector<8x8x64xbf16> to vector<64x64xbf16>
    %c2 = arith.constant 2 : index
    %c0_18 = arith.constant 0 : index
    %c0_19 = arith.constant 0 : index
    %18 = vector.load %arg2[%c2, %c0_18, %c0_19] : memref<9x64x128xbf16, #tpu.memory_space<vmem>>, vector<1x64x128xbf16>
    %19 = vector.shape_cast %18 : vector<1x64x128xbf16> to vector<64x128xbf16>
    %cst_20 = arith.constant dense<0.000000e+00> : vector<64x128xf32>
    %20 = tpu.matmul %17, %19, %cst_20 {dimension_numbers = #tpu.dot_dimension_numbers<[1], [0], [0], [1], [0, 0, 1, 1], [], []>} : vector<64x64xbf16>, vector<64x128xbf16>, vector<64x128xf32> -> vector<64x128xf32>
    %21 = arith.addf %14, %20 : vector<64x128xf32>
    %c2_21 = arith.constant 2 : index
    %c0_22 = arith.constant 0 : index
    %c0_23 = arith.constant 0 : index
    %c0_24 = arith.constant 0 : index
    %22 = vector.load %arg1[%c2_21, %c0_22, %c0_23, %c0_24] : memref<4x9x9x64xbf16, #tpu.memory_space<vmem>>, vector<1x8x8x64xbf16>
    %23 = vector.shape_cast %22 : vector<1x8x8x64xbf16> to vector<8x8x64xbf16>
    %24 = vector.shape_cast %23 : vector<8x8x64xbf16> to vector<64x64xbf16>
    %c3 = arith.constant 3 : index
    %c0_25 = arith.constant 0 : index
    %c0_26 = arith.constant 0 : index
    %25 = vector.load %arg2[%c3, %c0_25, %c0_26] : memref<9x64x128xbf16, #tpu.memory_space<vmem>>, vector<1x64x128xbf16>
    %26 = vector.shape_cast %25 : vector<1x64x128xbf16> to vector<64x128xbf16>
    %cst_27 = arith.constant dense<0.000000e+00> : vector<64x128xf32>
    %27 = tpu.matmul %24, %26, %cst_27 {dimension_numbers = #tpu.dot_dimension_numbers<[1], [0], [0], [1], [0, 0, 1, 1], [], []>} : vector<64x64xbf16>, vector<64x128xbf16>, vector<64x128xf32> -> vector<64x128xf32>
    %28 = arith.addf %21, %27 : vector<64x128xf32>
    %c3_28 = arith.constant 3 : index
    %c0_29 = arith.constant 0 : index
    %c0_30 = arith.constant 0 : index
    %c0_31 = arith.constant 0 : index
    %29 = vector.load %arg1[%c3_28, %c0_29, %c0_30, %c0_31] : memref<4x9x9x64xbf16, #tpu.memory_space<vmem>>, vector<1x8x8x64xbf16>
    %30 = vector.shape_cast %29 : vector<1x8x8x64xbf16> to vector<8x8x64xbf16>
    %31 = vector.shape_cast %30 : vector<8x8x64xbf16> to vector<64x64xbf16>
    %c4 = arith.constant 4 : index
    %c0_32 = arith.constant 0 : index
    %c0_33 = arith.constant 0 : index
    %32 = vector.load %arg2[%c4, %c0_32, %c0_33] : memref<9x64x128xbf16, #tpu.memory_space<vmem>>, vector<1x64x128xbf16>
    %33 = vector.shape_cast %32 : vector<1x64x128xbf16> to vector<64x128xbf16>
    %cst_34 = arith.constant dense<0.000000e+00> : vector<64x128xf32>
    %34 = tpu.matmul %31, %33, %cst_34 {dimension_numbers = #tpu.dot_dimension_numbers<[1], [0], [0], [1], [0, 0, 1, 1], [], []>} : vector<64x64xbf16>, vector<64x128xbf16>, vector<64x128xf32> -> vector<64x128xf32>
    %35 = arith.addf %28, %34 : vector<64x128xf32>
    %c2_35 = arith.constant 2 : index
    %c0_36 = arith.constant 0 : index
    %c1_37 = arith.constant 1 : index
    %c0_38 = arith.constant 0 : index
    %36 = vector.load %arg1[%c2_35, %c0_36, %c1_37, %c0_38] : memref<4x9x9x64xbf16, #tpu.memory_space<vmem>>, vector<1x8x8x64xbf16>
    %37 = vector.shape_cast %36 : vector<1x8x8x64xbf16> to vector<8x8x64xbf16>
    %38 = vector.shape_cast %37 : vector<8x8x64xbf16> to vector<64x64xbf16>
    %c5 = arith.constant 5 : index
    %c0_39 = arith.constant 0 : index
    %c0_40 = arith.constant 0 : index
    %39 = vector.load %arg2[%c5, %c0_39, %c0_40] : memref<9x64x128xbf16, #tpu.memory_space<vmem>>, vector<1x64x128xbf16>
    %40 = vector.shape_cast %39 : vector<1x64x128xbf16> to vector<64x128xbf16>
    %cst_41 = arith.constant dense<0.000000e+00> : vector<64x128xf32>
    %41 = tpu.matmul %38, %40, %cst_41 {dimension_numbers = #tpu.dot_dimension_numbers<[1], [0], [0], [1], [0, 0, 1, 1], [], []>} : vector<64x64xbf16>, vector<64x128xbf16>, vector<64x128xf32> -> vector<64x128xf32>
    %42 = arith.addf %35, %41 : vector<64x128xf32>
    %c0_42 = arith.constant 0 : index
    %c1_43 = arith.constant 1 : index
    %c0_44 = arith.constant 0 : index
    %c0_45 = arith.constant 0 : index
    %43 = vector.load %arg1[%c0_42, %c1_43, %c0_44, %c0_45] : memref<4x9x9x64xbf16, #tpu.memory_space<vmem>>, vector<1x8x8x64xbf16>
    %44 = vector.shape_cast %43 : vector<1x8x8x64xbf16> to vector<8x8x64xbf16>
    %45 = vector.shape_cast %44 : vector<8x8x64xbf16> to vector<64x64xbf16>
    %c6 = arith.constant 6 : index
    %c0_46 = arith.constant 0 : index
    %c0_47 = arith.constant 0 : index
    %46 = vector.load %arg2[%c6, %c0_46, %c0_47] : memref<9x64x128xbf16, #tpu.memory_space<vmem>>, vector<1x64x128xbf16>
    %47 = vector.shape_cast %46 : vector<1x64x128xbf16> to vector<64x128xbf16>
    %cst_48 = arith.constant dense<0.000000e+00> : vector<64x128xf32>
    %48 = tpu.matmul %45, %47, %cst_48 {dimension_numbers = #tpu.dot_dimension_numbers<[1], [0], [0], [1], [0, 0, 1, 1], [], []>} : vector<64x64xbf16>, vector<64x128xbf16>, vector<64x128xf32> -> vector<64x128xf32>
    %49 = arith.addf %42, %48 : vector<64x128xf32>
    %c1_49 = arith.constant 1 : index
    %c1_50 = arith.constant 1 : index
    %c0_51 = arith.constant 0 : index
    %c0_52 = arith.constant 0 : index
    %50 = vector.load %arg1[%c1_49, %c1_50, %c0_51, %c0_52] : memref<4x9x9x64xbf16, #tpu.memory_space<vmem>>, vector<1x8x8x64xbf16>
    %51 = vector.shape_cast %50 : vector<1x8x8x64xbf16> to vector<8x8x64xbf16>
    %52 = vector.shape_cast %51 : vector<8x8x64xbf16> to vector<64x64xbf16>
    %c7 = arith.constant 7 : index
    %c0_53 = arith.constant 0 : index
    %c0_54 = arith.constant 0 : index
    %53 = vector.load %arg2[%c7, %c0_53, %c0_54] : memref<9x64x128xbf16, #tpu.memory_space<vmem>>, vector<1x64x128xbf16>
    %54 = vector.shape_cast %53 : vector<1x64x128xbf16> to vector<64x128xbf16>
    %cst_55 = arith.constant dense<0.000000e+00> : vector<64x128xf32>
    %55 = tpu.matmul %52, %54, %cst_55 {dimension_numbers = #tpu.dot_dimension_numbers<[1], [0], [0], [1], [0, 0, 1, 1], [], []>} : vector<64x64xbf16>, vector<64x128xbf16>, vector<64x128xf32> -> vector<64x128xf32>
    %56 = arith.addf %49, %55 : vector<64x128xf32>
    %c0_56 = arith.constant 0 : index
    %c1_57 = arith.constant 1 : index
    %c1_58 = arith.constant 1 : index
    %c0_59 = arith.constant 0 : index
    %57 = vector.load %arg1[%c0_56, %c1_57, %c1_58, %c0_59] : memref<4x9x9x64xbf16, #tpu.memory_space<vmem>>, vector<1x8x8x64xbf16>
    %58 = vector.shape_cast %57 : vector<1x8x8x64xbf16> to vector<8x8x64xbf16>
    %59 = vector.shape_cast %58 : vector<8x8x64xbf16> to vector<64x64xbf16>
    %c8 = arith.constant 8 : index
    %c0_60 = arith.constant 0 : index
    %c0_61 = arith.constant 0 : index
    %60 = vector.load %arg2[%c8, %c0_60, %c0_61] : memref<9x64x128xbf16, #tpu.memory_space<vmem>>, vector<1x64x128xbf16>
    %61 = vector.shape_cast %60 : vector<1x64x128xbf16> to vector<64x128xbf16>
    %cst_62 = arith.constant dense<0.000000e+00> : vector<64x128xf32>
    %62 = tpu.matmul %59, %61, %cst_62 {dimension_numbers = #tpu.dot_dimension_numbers<[1], [0], [0], [1], [0, 0, 1, 1], [], []>} : vector<64x64xbf16>, vector<64x128xbf16>, vector<64x128xf32> -> vector<64x128xf32>
    %63 = arith.addf %56, %62 : vector<64x128xf32>
    %cst_63 = arith.constant 0.000000e+00 : f32
    %64 = vector.broadcast %cst_63 : f32 to vector<64x128xf32>
    %65 = arith.maximumf %63, %64 : vector<64x128xf32>
    %66 = arith.truncf %65 : vector<64x128xf32> to vector<64x128xbf16>
    %cst_64 = arith.constant 0.000000e+00 : bf16
    %67 = vector.broadcast %cst_64 : bf16 to vector<10x10x128xbf16>
    %c0_65 = arith.constant 0 : index
    %c0_66 = arith.constant 0 : index
    %c0_67 = arith.constant 0 : index
    %68 = vector.load %arg5[%c0_65, %c0_66, %c0_67] : memref<10x10x128xbf16, #tpu.memory_space<vmem>>, vector<10x10x128xbf16>
    tpu.vector_store %arg5[%c0_65, %c0_66, %c0_67], %67 {strides = array<i32>} : memref<10x10x128xbf16, #tpu.memory_space<vmem>>, vector<10x10x128xbf16>,
    %69 = vector.shape_cast %66 : vector<64x128xbf16> to vector<8x8x128xbf16>
    %c1_68 = arith.constant 1 : index
    %c1_69 = arith.constant 1 : index
    %c0_70 = arith.constant 0 : index
    %70 = vector.load %arg5[%c1_68, %c1_69, %c0_70] : memref<10x10x128xbf16, #tpu.memory_space<vmem>>, vector<8x8x128xbf16>
    tpu.vector_store %arg5[%c1_68, %c1_69, %c0_70], %69 {strides = array<i32>} : memref<10x10x128xbf16, #tpu.memory_space<vmem>>, vector<8x8x128xbf16>,
    %cst_71 = arith.constant 0.000000e+00 : f32
    %71 = vector.broadcast %cst_71 : f32 to vector<64x256xf32>
    %c0_72 = arith.constant 0 : index
    %c0_73 = arith.constant 0 : index
    %c0_74 = arith.constant 0 : index
    %72 = vector.load %arg5[%c0_72, %c0_73, %c0_74] : memref<10x10x128xbf16, #tpu.memory_space<vmem>>, vector<8x8x128xbf16>
    %73 = vector.shape_cast %72 : vector<8x8x128xbf16> to vector<64x128xbf16>
    %c0_75 = arith.constant 0 : index
    %c0_76 = arith.constant 0 : index
    %c0_77 = arith.constant 0 : index
    %74 = vector.load %arg3[%c0_75, %c0_76, %c0_77] : memref<9x128x256xbf16, #tpu.memory_space<vmem>>, vector<1x128x256xbf16>
    %75 = vector.shape_cast %74 : vector<1x128x256xbf16> to vector<128x256xbf16>
    %cst_78 = arith.constant dense<0.000000e+00> : vector<64x256xf32>
    %76 = tpu.matmul %73, %75, %cst_78 {dimension_numbers = #tpu.dot_dimension_numbers<[1], [0], [0], [1], [0, 0, 1, 1], [], []>} : vector<64x128xbf16>, vector<128x256xbf16>, vector<64x256xf32> -> vector<64x256xf32>
    %77 = arith.addf %71, %76 : vector<64x256xf32>
    %c0_79 = arith.constant 0 : index
    %c1_80 = arith.constant 1 : index
    %c0_81 = arith.constant 0 : index
    %78 = vector.load %arg5[%c0_79, %c1_80, %c0_81] : memref<10x10x128xbf16, #tpu.memory_space<vmem>>, vector<8x8x128xbf16>
    %79 = vector.shape_cast %78 : vector<8x8x128xbf16> to vector<64x128xbf16>
    %c1_82 = arith.constant 1 : index
    %c0_83 = arith.constant 0 : index
    %c0_84 = arith.constant 0 : index
    %80 = vector.load %arg3[%c1_82, %c0_83, %c0_84] : memref<9x128x256xbf16, #tpu.memory_space<vmem>>, vector<1x128x256xbf16>
    %81 = vector.shape_cast %80 : vector<1x128x256xbf16> to vector<128x256xbf16>
    %cst_85 = arith.constant dense<0.000000e+00> : vector<64x256xf32>
    %82 = tpu.matmul %79, %81, %cst_85 {dimension_numbers = #tpu.dot_dimension_numbers<[1], [0], [0], [1], [0, 0, 1, 1], [], []>} : vector<64x128xbf16>, vector<128x256xbf16>, vector<64x256xf32> -> vector<64x256xf32>
    %83 = arith.addf %77, %82 : vector<64x256xf32>
    %c0_86 = arith.constant 0 : index
    %c2_87 = arith.constant 2 : index
    %c0_88 = arith.constant 0 : index
    %84 = vector.load %arg5[%c0_86, %c2_87, %c0_88] : memref<10x10x128xbf16, #tpu.memory_space<vmem>>, vector<8x8x128xbf16>
    %85 = vector.shape_cast %84 : vector<8x8x128xbf16> to vector<64x128xbf16>
    %c2_89 = arith.constant 2 : index
    %c0_90 = arith.constant 0 : index
    %c0_91 = arith.constant 0 : index
    %86 = vector.load %arg3[%c2_89, %c0_90, %c0_91] : memref<9x128x256xbf16, #tpu.memory_space<vmem>>, vector<1x128x256xbf16>
    %87 = vector.shape_cast %86 : vector<1x128x256xbf16> to vector<128x256xbf16>
    %cst_92 = arith.constant dense<0.000000e+00> : vector<64x256xf32>
    %88 = tpu.matmul %85, %87, %cst_92 {dimension_numbers = #tpu.dot_dimension_numbers<[1], [0], [0], [1], [0, 0, 1, 1], [], []>} : vector<64x128xbf16>, vector<128x256xbf16>, vector<64x256xf32> -> vector<64x256xf32>
    %89 = arith.addf %83, %88 : vector<64x256xf32>
    %c1_93 = arith.constant 1 : index
    %c0_94 = arith.constant 0 : index
    %c0_95 = arith.constant 0 : index
    %90 = vector.load %arg5[%c1_93, %c0_94, %c0_95] : memref<10x10x128xbf16, #tpu.memory_space<vmem>>, vector<8x8x128xbf16>
    %91 = vector.shape_cast %90 : vector<8x8x128xbf16> to vector<64x128xbf16>
    %c3_96 = arith.constant 3 : index
    %c0_97 = arith.constant 0 : index
    %c0_98 = arith.constant 0 : index
    %92 = vector.load %arg3[%c3_96, %c0_97, %c0_98] : memref<9x128x256xbf16, #tpu.memory_space<vmem>>, vector<1x128x256xbf16>
    %93 = vector.shape_cast %92 : vector<1x128x256xbf16> to vector<128x256xbf16>
    %cst_99 = arith.constant dense<0.000000e+00> : vector<64x256xf32>
    %94 = tpu.matmul %91, %93, %cst_99 {dimension_numbers = #tpu.dot_dimension_numbers<[1], [0], [0], [1], [0, 0, 1, 1], [], []>} : vector<64x128xbf16>, vector<128x256xbf16>, vector<64x256xf32> -> vector<64x256xf32>
    %95 = arith.addf %89, %94 : vector<64x256xf32>
    %c1_100 = arith.constant 1 : index
    %c1_101 = arith.constant 1 : index
    %c0_102 = arith.constant 0 : index
    %96 = vector.load %arg5[%c1_100, %c1_101, %c0_102] : memref<10x10x128xbf16, #tpu.memory_space<vmem>>, vector<8x8x128xbf16>
    %97 = vector.shape_cast %96 : vector<8x8x128xbf16> to vector<64x128xbf16>
    %c4_103 = arith.constant 4 : index
    %c0_104 = arith.constant 0 : index
    %c0_105 = arith.constant 0 : index
    %98 = vector.load %arg3[%c4_103, %c0_104, %c0_105] : memref<9x128x256xbf16, #tpu.memory_space<vmem>>, vector<1x128x256xbf16>
    %99 = vector.shape_cast %98 : vector<1x128x256xbf16> to vector<128x256xbf16>
    %cst_106 = arith.constant dense<0.000000e+00> : vector<64x256xf32>
    %100 = tpu.matmul %97, %99, %cst_106 {dimension_numbers = #tpu.dot_dimension_numbers<[1], [0], [0], [1], [0, 0, 1, 1], [], []>} : vector<64x128xbf16>, vector<128x256xbf16>, vector<64x256xf32> -> vector<64x256xf32>
    %101 = arith.addf %95, %100 : vector<64x256xf32>
    %c1_107 = arith.constant 1 : index
    %c2_108 = arith.constant 2 : index
    %c0_109 = arith.constant 0 : index
    %102 = vector.load %arg5[%c1_107, %c2_108, %c0_109] : memref<10x10x128xbf16, #tpu.memory_space<vmem>>, vector<8x8x128xbf16>
    %103 = vector.shape_cast %102 : vector<8x8x128xbf16> to vector<64x128xbf16>
    %c5_110 = arith.constant 5 : index
    %c0_111 = arith.constant 0 : index
    %c0_112 = arith.constant 0 : index
    %104 = vector.load %arg3[%c5_110, %c0_111, %c0_112] : memref<9x128x256xbf16, #tpu.memory_space<vmem>>, vector<1x128x256xbf16>
    %105 = vector.shape_cast %104 : vector<1x128x256xbf16> to vector<128x256xbf16>
    %cst_113 = arith.constant dense<0.000000e+00> : vector<64x256xf32>
    %106 = tpu.matmul %103, %105, %cst_113 {dimension_numbers = #tpu.dot_dimension_numbers<[1], [0], [0], [1], [0, 0, 1, 1], [], []>} : vector<64x128xbf16>, vector<128x256xbf16>, vector<64x256xf32> -> vector<64x256xf32>
    %107 = arith.addf %101, %106 : vector<64x256xf32>
    %c2_114 = arith.constant 2 : index
    %c0_115 = arith.constant 0 : index
    %c0_116 = arith.constant 0 : index
    %108 = vector.load %arg5[%c2_114, %c0_115, %c0_116] : memref<10x10x128xbf16, #tpu.memory_space<vmem>>, vector<8x8x128xbf16>
    %109 = vector.shape_cast %108 : vector<8x8x128xbf16> to vector<64x128xbf16>
    %c6_117 = arith.constant 6 : index
    %c0_118 = arith.constant 0 : index
    %c0_119 = arith.constant 0 : index
    %110 = vector.load %arg3[%c6_117, %c0_118, %c0_119] : memref<9x128x256xbf16, #tpu.memory_space<vmem>>, vector<1x128x256xbf16>
    %111 = vector.shape_cast %110 : vector<1x128x256xbf16> to vector<128x256xbf16>
    %cst_120 = arith.constant dense<0.000000e+00> : vector<64x256xf32>
    %112 = tpu.matmul %109, %111, %cst_120 {dimension_numbers = #tpu.dot_dimension_numbers<[1], [0], [0], [1], [0, 0, 1, 1], [], []>} : vector<64x128xbf16>, vector<128x256xbf16>, vector<64x256xf32> -> vector<64x256xf32>
    %113 = arith.addf %107, %112 : vector<64x256xf32>
    %c2_121 = arith.constant 2 : index
    %c1_122 = arith.constant 1 : index
    %c0_123 = arith.constant 0 : index
    %114 = vector.load %arg5[%c2_121, %c1_122, %c0_123] : memref<10x10x128xbf16, #tpu.memory_space<vmem>>, vector<8x8x128xbf16>
    %115 = vector.shape_cast %114 : vector<8x8x128xbf16> to vector<64x128xbf16>
    %c7_124 = arith.constant 7 : index
    %c0_125 = arith.constant 0 : index
    %c0_126 = arith.constant 0 : index
    %116 = vector.load %arg3[%c7_124, %c0_125, %c0_126] : memref<9x128x256xbf16, #tpu.memory_space<vmem>>, vector<1x128x256xbf16>
    %117 = vector.shape_cast %116 : vector<1x128x256xbf16> to vector<128x256xbf16>
    %cst_127 = arith.constant dense<0.000000e+00> : vector<64x256xf32>
    %118 = tpu.matmul %115, %117, %cst_127 {dimension_numbers = #tpu.dot_dimension_numbers<[1], [0], [0], [1], [0, 0, 1, 1], [], []>} : vector<64x128xbf16>, vector<128x256xbf16>, vector<64x256xf32> -> vector<64x256xf32>
    %119 = arith.addf %113, %118 : vector<64x256xf32>
    %c2_128 = arith.constant 2 : index
    %c2_129 = arith.constant 2 : index
    %c0_130 = arith.constant 0 : index
    %120 = vector.load %arg5[%c2_128, %c2_129, %c0_130] : memref<10x10x128xbf16, #tpu.memory_space<vmem>>, vector<8x8x128xbf16>
    %121 = vector.shape_cast %120 : vector<8x8x128xbf16> to vector<64x128xbf16>
    %c8_131 = arith.constant 8 : index
    %c0_132 = arith.constant 0 : index
    %c0_133 = arith.constant 0 : index
    %122 = vector.load %arg3[%c8_131, %c0_132, %c0_133] : memref<9x128x256xbf16, #tpu.memory_space<vmem>>, vector<1x128x256xbf16>
    %123 = vector.shape_cast %122 : vector<1x128x256xbf16> to vector<128x256xbf16>
    %cst_134 = arith.constant dense<0.000000e+00> : vector<64x256xf32>
    %124 = tpu.matmul %121, %123, %cst_134 {dimension_numbers = #tpu.dot_dimension_numbers<[1], [0], [0], [1], [0, 0, 1, 1], [], []>} : vector<64x128xbf16>, vector<128x256xbf16>, vector<64x256xf32> -> vector<64x256xf32>
    %125 = arith.addf %119, %124 : vector<64x256xf32>
    %cst_135 = arith.constant 0.000000e+00 : f32
    %126 = vector.broadcast %cst_135 : f32 to vector<64x256xf32>
    %127 = arith.maximumf %125, %126 : vector<64x256xf32>
    %c0_136 = arith.constant 0 : index
    %c0_137 = arith.constant 0 : index
    %c0_138 = arith.constant 0 : index
    %128 = vector.load %arg4[%c0_136, %c0_137, %c0_138] : memref<1x64x256xf32, #tpu.memory_space<vmem>>, vector<1x64x256xf32>
    %129 = vector.shape_cast %128 : vector<1x64x256xf32> to vector<64x256xf32>
    %130 = vector.shape_cast %127 : vector<64x256xf32> to vector<1x64x256xf32>
    tpu.vector_store %arg4[%c0_136, %c0_137, %c0_138], %130 {strides = array<i32>} : memref<1x64x256xf32, #tpu.memory_space<vmem>>, vector<1x64x256xf32>,
    return
  }
  func.func @transform_0(%arg0: i32) -> (i32, i32, i32, i32) {
    %c0_i32 = arith.constant 0 : i32
    %c0_i32_0 = arith.constant 0 : i32
    %c0_i32_1 = arith.constant 0 : i32
    %c0_i32_2 = arith.constant 0 : i32
    return %arg0, %c0_i32, %c0_i32_0, %c0_i32_1 : i32, i32, i32, i32
  }
  func.func @transform_1(%arg0: i32) -> (i32, i32, i32) {
    %c0_i32 = arith.constant 0 : i32
    %c0_i32_0 = arith.constant 0 : i32
    %c0_i32_1 = arith.constant 0 : i32
    %c0_i32_2 = arith.constant 0 : i32
    return %c0_i32, %c0_i32_0, %c0_i32_1 : i32, i32, i32
  }
  func.func @transform_2(%arg0: i32) -> (i32, i32, i32) {
    %c0_i32 = arith.constant 0 : i32
    %c0_i32_0 = arith.constant 0 : i32
    %c0_i32_1 = arith.constant 0 : i32
    %c0_i32_2 = arith.constant 0 : i32
    return %c0_i32, %c0_i32_0, %c0_i32_1 : i32, i32, i32
  }
  func.func @transform_3(%arg0: i32) -> (i32, i32, i32) {
    %c0_i32 = arith.constant 0 : i32
    %c0_i32_0 = arith.constant 0 : i32
    %c0_i32_1 = arith.constant 0 : i32
    return %arg0, %c0_i32, %c0_i32_0 : i32, i32, i32
  }
}

</mosaic_0001>

<llo_original>
// kernel: tiny_client_model_forward.1
$region0: #{tiny_client_model_forward.1}
  #allocation0 [shape = 'u32[]', space=smem, size = 0x4, offset = 0x4, fixed_abs, tag = 'smem constant byte address 0x4 - core index']
  #allocation1 [shape = 'u32[144,128]{1,0:T(1,128)}', space=vmem, size = 0x12000, scoped, tag = 'internal scratch']
  #allocation2 [shape = 'bf16[10,10,128]{2,1,0:T(8,128)(2,1)}', space=vmem, size = 0xa000, scoped, tag = 'scratch operand']
  %s0 = inlined_call_operand.vmem [shape: bf16[8,9,9,64], index: 0, kind: input, shape index: {}]
  %s1 = inlined_call_operand.vmem [shape: bf16[9,64,128], index: 1, kind: input, shape index: {}]
  %s2 = inlined_call_operand.vmem [shape: bf16[9,128,256], index: 2, kind: input, shape index: {}]
  %s3 = inlined_call_operand.vmem [shape: f32[2,64,256], index: 3, kind: output, shape index: {}]
  %s4 = sld [smem:[#allocation0]]
  $region45: #{tiny_client_model_forward.1} parent=0
    _
  %s6 = ssub.s32 1, %s4
  %s7 = scalar_select 0, %s6, %s4
  loop: start=0, step=1, limit=4
  $region2: #{tiny_client_model_forward.1} parent=0 // loop_pre_header
    _
  $region3: #{tiny_client_model_forward.1} parent=0 // loop_header
    %s9 = sphi 0, %s13
    %p10 = scmp.ge.s32.totalorder %s9, 4
    %s19 = sphi 0, %s21
    %s22 = sphi 0, %s19
    %s23 = sphi 0, %s22
    %s39 = sphi 0, %s23
    %s43 = sphi 0, %s43
    %s45 = sphi 0, %s43
    %s46 = sphi 0, %s45
    %s60 = sphi 0, %s46
    %s64 = sphi 0, %s64
    %s66 = sphi 0, %s64
    %s67 = sphi 0, %s66
    %s81 = sphi 0, %s67
    %s87 = sphi 0, %s89
    %s90 = sphi 0, %s87
    %s91 = sphi 0, %s90
    %s107 = sphi 0, %s91
  $region4: #{tiny_client_model_forward.1} parent=0 // loop_header_branch
    %12 = sbr.rel (%p10) target = $region8
  $region5: #{tiny_client_model_forward.1} parent=0 // loop_body
    %s14 = ssub.s32 %s9, 1
    %s15 = ssub.s32 %s9, 2
    %s16 = sadd.s32 %s9, 1
    %s17 = ssub.s32 %s9, %s16
    %p18 = scmp.eq.s32.totalorder %s17, 0
    %s20 = sadd.s32 %s19, 1
    %s21 = scalar_select %p18, %s19, %s20
    %p24 = pneg %p18
    %p25 = scmp.eq.s32.totalorder %s9, 1
    %p26 = por %p24, %p25
    %p27 = scmp.ne.s32.totalorder %s19, %s22
    %p28 = scmp.eq.s32.totalorder %s9, 0
    %p29 = por %p27, %p28
    %p30 = scmp.ne.s32.totalorder %s19, %s22
    %p31 = scmp.eq.s32.totalorder %s14, 1
    %p32 = por %p30, %p31
    %p33 = scmp.ne.s32.totalorder %s22, %s23
    %p34 = scmp.eq.s32.totalorder %s14, 0
    %p35 = por %p33, %p34
    %p36 = scmp.ne.s32.totalorder %s22, %s23
    %p37 = scmp.eq.s32.totalorder %s15, 1
    %p38 = por %p36, %p37
    %p40 = scmp.ne.s32.totalorder %s23, %s39
    %p41 = scmp.eq.s32.totalorder %s15, 0
    %p42 = por %p40, %p41
    %s44 = sadd.s32 %s43, 1
    %p47 = scmp.eq.s32.totalorder %s9, 1
    %p48 = scmp.ne.s32.totalorder %s43, %s45
    %p49 = scmp.eq.s32.totalorder %s9, 0
    %p50 = por %p48, %p49
    %p51 = scmp.ne.s32.totalorder %s43, %s45
    %p52 = scmp.eq.s32.totalorder %s14, 1
    %p53 = por %p51, %p52
    %p54 = scmp.ne.s32.totalorder %s45, %s46
    %p55 = scmp.eq.s32.totalorder %s14, 0
    %p56 = por %p54, %p55
    %p57 = scmp.ne.s32.totalorder %s45, %s46
    %p58 = scmp.eq.s32.totalorder %s15, 1
    %p59 = por %p57, %p58
    %p61 = scmp.ne.s32.totalorder %s46, %s60
    %p62 = scmp.eq.s32.totalorder %s15, 0
    %p63 = por %p61, %p62
    %s65 = sadd.s32 %s64, 1
    %p68 = scmp.eq.s32.totalorder %s9, 1
    %p69 = scmp.ne.s32.totalorder %s64, %s66
    %p70 = scmp.eq.s32.totalorder %s9, 0
    %p71 = por %p69, %p70
    %p72 = scmp.ne.s32.totalorder %s64, %s66
    %p73 = scmp.eq.s32.totalorder %s14, 1
    %p74 = por %p72, %p73
    %p75 = scmp.ne.s32.totalorder %s66, %s67
    %p76 = scmp.eq.s32.totalorder %s14, 0
    %p77 = por %p75, %p76
    %p78 = scmp.ne.s32.totalorder %s66, %s67
    %p79 = scmp.eq.s32.totalorder %s15, 1
    %p80 = por %p78, %p79
    %p82 = scmp.ne.s32.totalorder %s67, %s81
    %p83 = scmp.eq.s32.totalorder %s15, 0
    %p84 = por %p82, %p83
    %s85 = ssub.s32 %s9, %s16
    %p86 = scmp.eq.s32.totalorder %s85, 0
    %s88 = sadd.s32 %s87, 1
    %s89 = scalar_select %p86, %s87, %s88
    %p92 = pneg %p86
    %p93 = scmp.eq.s32.totalorder %s9, 1
    %p94 = por %p92, %p93
    %p95 = scmp.ne.s32.totalorder %s87, %s90
    %p96 = scmp.eq.s32.totalorder %s9, 0
    %p97 = por %p95, %p96
    %p98 = scmp.ne.s32.totalorder %s87, %s90
    %p99 = scmp.eq.s32.totalorder %s14, 1
    %p100 = por %p98, %p99
    %p101 = scmp.ne.s32.totalorder %s90, %s91
    %p102 = scmp.eq.s32.totalorder %s14, 0
    %p103 = por %p101, %p102
    %p104 = scmp.ne.s32.totalorder %s90, %s91
    %p105 = scmp.eq.s32.totalorder %s15, 1
    %p106 = por %p104, %p105
    %p108 = scmp.ne.s32.totalorder %s91, %s107
    %p109 = scmp.eq.s32.totalorder %s15, 0
    %p110 = por %p108, %p109
    %p111 = scmp.le.s32.totalorder 1, %s9
    %p112 = scmp.lt.s32.totalorder %s9, 3
    %p113 = pnand %p111, %p112
    %p114 = pneg %p113
    // Predicated region
    $region9: #{tiny_client_model_forward.1} parent=5 // pred_check
      _
    $region10: #{tiny_client_model_forward.1} parent=5 // pred_check_branch
      %116 = sbr.rel (%p113) target = $region12
    $region11: #{tiny_client_model_forward.1} parent=5 // pred_region
      %s117 = ssub.s32 %s9, 1
      // Predicated region
      $region13: #{tiny_client_model_forward.1} parent=11 // pred_check
        %p118 = pneg %p56
      $region14: #{tiny_client_model_forward.1} parent=11 // pred_check_branch
        %120 = sbr.rel (%p118) target = $region16
      $region15: #{tiny_client_model_forward.1} parent=11 // pred_region
        _
      $region16: #{tiny_client_model_forward.1} parent=11 // pred_fallthru
        _
      // Predicated region
      $region17: #{tiny_client_model_forward.1} parent=11 // pred_check
        %p121 = pneg %p77
      $region18: #{tiny_client_model_forward.1} parent=11 // pred_check_branch
        %123 = sbr.rel (%p121) target = $region20
      $region19: #{tiny_client_model_forward.1} parent=11 // pred_region
        _
      $region20: #{tiny_client_model_forward.1} parent=11 // pred_fallthru
        _
    $region12: #{tiny_client_model_forward.1} parent=5 // pred_fallthru
      _
    %p124 = scmp.lt.s32.totalorder %s9, 2
    // Predicated region
    $region21: #{tiny_client_model_forward.1} parent=5 // pred_check
      %p125 = pneg %p124
    $region22: #{tiny_client_model_forward.1} parent=5 // pred_check_branch
      %127 = sbr.rel (%p125) target = $region24
    $region23: #{tiny_client_model_forward.1} parent=5 // pred_region
      // Predicated region
      $region25: #{tiny_client_model_forward.1} parent=23 // pred_check
        %p128 = pneg %p29
      $region26: #{tiny_client_model_forward.1} parent=23 // pred_check_branch
        %130 = sbr.rel (%p128) target = $region28
      $region27: #{tiny_client_model_forward.1} parent=23 // pred_region
        %s131 = smul.u32 4, %s9
        %p132 = scmp.lt.s32.totalorder %s131, 7
        %s133 = scalar_select %p132, %s131, 7
        %s134 = smul.addr %s133, 18
        %s135 = smul.addr %s134, 4
        %s136 = scalar_lea.vmem %s0, %s135
        %s137 = smul.u32 4, %s9
      $region28: #{tiny_client_model_forward.1} parent=23 // pred_fallthru
        _
    $region24: #{tiny_client_model_forward.1} parent=5 // pred_fallthru
      _
    %p138 = scmp.le.s32.totalorder 1, %s9
    %p139 = scmp.lt.s32.totalorder %s9, 3
    %p140 = pnand %p138, %p139
    %p141 = pneg %p140
    // Predicated region
    $region29: #{tiny_client_model_forward.1} parent=5 // pred_check
      _
    $region30: #{tiny_client_model_forward.1} parent=5 // pred_check_branch
      %143 = sbr.rel (%p140) target = $region32
    $region31: #{tiny_client_model_forward.1} parent=5 // pred_region
      %s144 = ssub.s32 %s9, 1
      %s145 = smul.u32 4, %s14
      %p146 = scmp.lt.s32.totalorder %s145, 7
      %s147 = scalar_select %p146, %s145, 7
      %s148 = smul.addr %s147, 18
      %s149 = smul.addr %s148, 4
      %s150 = scalar_lea.vmem %s0, %s149
      %p151 = pneg %p35
      %p152 = pneg %p32
      %p153 = pneg %p56
      %p154 = pneg %p53
      %p155 = pneg %p77
      %p156 = pneg %p74
      %p157 = pneg %p103
      %p158 = pneg %p100
      %p159 = scmp.lt.s32.totalorder %s14, 1
      %s160 = scalar_select %p159, %s14, 1
      %s161 = smul.addr %s160, 16
      %s162 = smul.addr %s161, 8
      %s163 = scalar_lea.vmem %s3, %s162
      %s164 = smul.u32 4, %s14
      %p165 = scmp.lt.s32.totalorder %s164, 7
      %s166 = scalar_select %p165, %s164, 7
      %s167 = smul.addr %s166, 18
      %s168 = smul.addr %s167, 4
      %s169 = scalar_lea.vmem %s0, %s168
      %s170 = smul.u32 4, %s14
      %p171 = scmp.lt.s32.totalorder %s14, 1
      %s172 = scalar_select %p171, %s14, 1
      %s173 = smul.addr %s172, 16
      %s174 = smul.addr %s173, 8
      %s175 = scalar_lea.vmem %s3, %s174
      %v177 = vld [vmem:[%s169] sm:$0xf]
      %v178 = vld [vmem:[%s169 + $0x8] sm:$0xf]
      %v179 = vld [vmem:[%s169 + $0x10] sm:$0xf]
      %v180 = vld [vmem:[%s169 + $0x18] sm:$0xf]
      %v181 = vld [vmem:[%s169 + $0x20] sm:$0xf]
      %v182 = vld [vmem:[%s169 + $0x28] sm:$0xf]
      %v183 = vld [vmem:[%s169 + $0x30] sm:$0xf]
      %v184 = vld [vmem:[%s169 + $0x38] sm:$0xf]
      %v185 = vld [vmem:[%s1] sm:$0xf]
      %v186 = vld [vmem:[%s1 + $0x4] sm:$0xf]
      %v187 = vld [vmem:[%s1 + $0x8] sm:$0xf]
      %v188 = vld [vmem:[%s1 + $0xc] sm:$0xf]
      %v189 = vld [vmem:[%s1 + $0x10] sm:$0xf]
      %v190 = vld [vmem:[%s1 + $0x14] sm:$0xf]
      %v191 = vld [vmem:[%s1 + $0x18] sm:$0xf]
      %v192 = vld [vmem:[%s1 + $0x1c] sm:$0xf]
      %s193 = scalar_lea.vmem %s169, 72
      %v194 = vld [vmem:[%s193] sm:$0xf]
      %v195 = vld [vmem:[%s193 + $0x8] sm:$0xf]
      %v196 = vld [vmem:[%s193 + $0x10] sm:$0xf]
      %v197 = vld [vmem:[%s193 + $0x18] sm:$0xf]
      %v198 = vld [vmem:[%s193 + $0x20] sm:$0xf]
      %v199 = vld [vmem:[%s193 + $0x28] sm:$0xf]
      %v200 = vld [vmem:[%s193 + $0x30] sm:$0xf]
      %v201 = vld [vmem:[%s193 + $0x38] sm:$0xf]
      %s202 = scalar_lea.vmem %s1, 32
      %v203 = vld [vmem:[%s202] sm:$0xf]
      %v204 = vld [vmem:[%s202 + $0x4] sm:$0xf]
      %v205 = vld [vmem:[%s202 + $0x8] sm:$0xf]
      %v206 = vld [vmem:[%s202 + $0xc] sm:$0xf]
      %v207 = vld [vmem:[%s202 + $0x10] sm:$0xf]
      %v208 = vld [vmem:[%s202 + $0x14] sm:$0xf]
      %v209 = vld [vmem:[%s202 + $0x18] sm:$0xf]
      %v210 = vld [vmem:[%s202 + $0x1c] sm:$0xf]
      %v219 = vunpack.c.l.b16 %v194
      %v220 = vunpack.c.l.b16 %v195
      %v221 = vunpack.c.l.b16 %v196
      %v222 = vunpack.c.l.b16 %v197
      %v223 = vunpack.c.l.b16 %v198
      %v224 = vunpack.c.l.b16 %v199
      %v225 = vunpack.c.l.b16 %v200
      %v226 = vunpack.c.l.b16 %v201
      %v227 = vpack.c.b16 %v220, %v219
      %v228 = vpack.c.b16 %v222, %v221
      %v229 = vpack.c.b16 %v224, %v223
      %v230 = vpack.c.b16 %v226, %v225
      %v239 = vunpack.c.l.b16 %v203
      %v240 = vunpack.c.l.b16 %v204
      %v241 = vunpack.c.l.b16 %v205
      %v242 = vunpack.c.l.b16 %v206
      %v243 = vunpack.c.l.b16 %v207
      %v244 = vunpack.c.l.b16 %v208
      %v245 = vunpack.c.l.b16 %v209
      %v246 = vunpack.c.l.b16 %v210
      %v247 = vpack.c.b16 %v240, %v239
      %v248 = vpack.c.b16 %v242, %v241
      %v249 = vpack.c.b16 %v244, %v243
      %v250 = vpack.c.b16 %v246, %v245
      %vm255 = vcmask 523264
      %v257 = vsel %vm255, %v227, 0
      %v260 = vsel %vm255, %v228, 0
      %v263 = vsel %vm255, %v229, 0
      %v266 = vsel %vm255, %v230, 0
      %268 = vmatprep.subr.bf16.mxu0 0
      %269 = vmatpush1.bf16.msra.mxu0 %v247
      %270 = vmatprep.subr.bf16.mxu0 0
      %271 = vmatpush1.bf16.msra.mxu0 %v248
      %272 = vmatprep.subr.bf16.mxu0 0
      %273 = vmatpush1.bf16.msra.mxu0 %v249
      %274 = vmatprep.subr.bf16.mxu0 0
      %275 = vmatpush1.bf16.msra.mxu0 %v250
      %276 = vmatprep.subr.bf16.mxu0 0
      %277 = vmatpush1.bf16.msra.mxu0 0
      %278 = vmatprep.subr.bf16.mxu0 0
      %279 = vmatpush1.bf16.msra.mxu0 0
      %280 = vmatprep.subr.bf16.mxu0 0
      %281 = vmatpush1.bf16.msra.mxu0 0
      %282 = vmatprep.subr.bf16.mxu0 0
      %283 = vmatpush1.bf16.msra.mxu0 0
      %284 = vmatprep.subr.bf16.mxu0 0
      %285 = vmatpush1.bf16.msra.mxu0 0
      %286 = vmatprep.subr.bf16.mxu0 0
      %287 = vmatpush1.bf16.msra.mxu0 0
      %288 = vmatprep.subr.bf16.mxu0 0
      %289 = vmatpush1.bf16.msra.mxu0 0
      %290 = vmatprep.subr.bf16.mxu0 0
      %291 = vmatpush1.bf16.msra.mxu0 0
      %292 = vmatprep.subr.bf16.mxu0 0
      %293 = vmatpush1.bf16.msra.mxu0 0
      %294 = vmatprep.subr.bf16.mxu0 0
      %295 = vmatpush1.bf16.msra.mxu0 0
      %296 = vmatprep.subr.bf16.mxu0 0
      %297 = vmatpush1.bf16.msra.mxu0 0
      %298 = vmatprep.subr.bf16.mxu0 0
      %299 = vmatpush1.bf16.msra.mxu0 0
      %300 = vmatprep.mubr.bf16.mxu0 0
      %301 = vmatmul.mubr.bf16.gmra.mrb[0].mxu0 %v257
      %v302 = vpop.f32.mrb[0].mxu0
      %v303 = vadd.f32 0.0, %v302
      %v304 = vpop.f32.mrb[0].mxu0
      %v305 = vpop.f32.mrb[0].mxu0
      %v306 = vadd.f32 0.0, %v305
      %v307 = vpop.f32.mrb[0].mxu0
      %308 = vmatprep.mubr.bf16.mxu0 0
      %309 = vmatmul.mubr.bf16.gmra.mrb[0].mxu0 %v260
      %v310 = vpop.f32.mrb[0].mxu0
      %v311 = vadd.f32 0.0, %v310
      %v312 = vpop.f32.mrb[0].mxu0
      %v313 = vpop.f32.mrb[0].mxu0
      %v314 = vadd.f32 0.0, %v313
      %v315 = vpop.f32.mrb[0].mxu0
      %316 = vmatprep.mubr.bf16.mxu0 0
      %317 = vmatmul.mubr.bf16.gmra.mrb[0].mxu0 %v263
      %v318 = vpop.f32.mrb[0].mxu0
      %v319 = vadd.f32 0.0, %v318
      %v320 = vpop.f32.mrb[0].mxu0
      %v321 = vpop.f32.mrb[0].mxu0
      %v322 = vadd.f32 0.0, %v321
      %v323 = vpop.f32.mrb[0].mxu0
      %324 = vmatprep.mubr.bf16.mxu0 0
      %325 = vmatmul.mubr.bf16.gmra.mrb[0].mxu0 %v266
      %v326 = vpop.f32.mrb[0].mxu0
      %v327 = vadd.f32 0.0, %v326
      %v328 = vpop.f32.mrb[0].mxu0
      %v329 = vpop.f32.mrb[0].mxu0
      %v330 = vadd.f32 0.0, %v329
      %v331 = vpop.f32.mrb[0].mxu0
      %332 = vdwg.mxu0
      %v341 = vunpack.c.l.b16 %v177
      %v342 = vunpack.c.l.b16 %v178
      %v343 = vunpack.c.l.b16 %v179
      %v344 = vunpack.c.l.b16 %v180
      %v345 = vunpack.c.l.b16 %v181
      %v346 = vunpack.c.l.b16 %v182
      %v347 = vunpack.c.l.b16 %v183
      %v348 = vunpack.c.l.b16 %v184
      %v349 = vpack.c.b16 %v342, %v341
      %v350 = vpack.c.b16 %v344, %v343
      %v351 = vpack.c.b16 %v346, %v345
      %v352 = vpack.c.b16 %v348, %v347
      %v361 = vunpack.c.l.b16 %v185
      %v362 = vunpack.c.l.b16 %v186
      %v363 = vunpack.c.l.b16 %v187
      %v364 = vunpack.c.l.b16 %v188
      %v365 = vunpack.c.l.b16 %v189
      %v366 = vunpack.c.l.b16 %v190
      %v367 = vunpack.c.l.b16 %v191
      %v368 = vunpack.c.l.b16 %v192
      %v369 = vpack.c.b16 %v362, %v361
      %v370 = vpack.c.b16 %v364, %v363
      %v371 = vpack.c.b16 %v366, %v365
      %v372 = vpack.c.b16 %v368, %v367
      %v378 = vsel %vm255, %v349, 0
      %v381 = vsel %vm255, %v350, 0
      %v384 = vsel %vm255, %v351, 0
      %v387 = vsel %vm255, %v352, 0
      %389 = vmatprep.subr.bf16.mxu0 0
      %390 = vmatpush1.bf16.msra.mxu0 %v369
      %391 = vmatprep.subr.bf16.mxu0 0
      %392 = vmatpush1.bf16.msra.mxu0 %v370
      %393 = vmatprep.subr.bf16.mxu0 0
      %394 = vmatpush1.bf16.msra.mxu0 %v371
      %395 = vmatprep.subr.bf16.mxu0 0
      %396 = vmatpush1.bf16.msra.mxu0 %v372
      %397 = vmatprep.subr.bf16.mxu0 0
      %398 = vmatpush1.bf16.msra.mxu0 0
      %399 = vmatprep.subr.bf16.mxu0 0
      %400 = vmatpush1.bf16.msra.mxu0 0
      %401 = vmatprep.subr.bf16.mxu0 0
      %402 = vmatpush1.bf16.msra.mxu0 0
      %403 = vmatprep.subr.bf16.mxu0 0
      %404 = vmatpush1.bf16.msra.mxu0 0
      %405 = vmatprep.subr.bf16.mxu0 0
      %406 = vmatpush1.bf16.msra.mxu0 0
      %407 = vmatprep.subr.bf16.mxu0 0
      %408 = vmatpush1.bf16.msra.mxu0 0
      %409 = vmatprep.subr.bf16.mxu0 0
      %410 = vmatpush1.bf16.msra.mxu0 0
      %411 = vmatprep.subr.bf16.mxu0 0
      %412 = vmatpush1.bf16.msra.mxu0 0
      %413 = vmatprep.subr.bf16.mxu0 0
      %414 = vmatpush1.bf16.msra.mxu0 0
      %415 = vmatprep.subr.bf16.mxu0 0
      %416 = vmatpush1.bf16.msra.mxu0 0
      %417 = vmatprep.subr.bf16.mxu0 0
      %418 = vmatpush1.bf16.msra.mxu0 0
      %419 = vmatprep.subr.bf16.mxu0 0
      %420 = vmatpush1.bf16.msra.mxu0 0
      %421 = vmatprep.mubr.bf16.mxu0 0
      %422 = vmatmul.mubr.bf16.gmra.mrb[0].mxu0 %v378
      %v423 = vpop.f32.mrb[0].mxu0
      %v424 = vadd.f32 %v303, %v423
      %v425 = vpop.f32.mrb[0].mxu0
      %v426 = vpop.f32.mrb[0].mxu0
      %v427 = vadd.f32 %v306, %v426
      %v428 = vpop.f32.mrb[0].mxu0
      %429 = vmatprep.mubr.bf16.mxu0 0
      %430 = vmatmul.mubr.bf16.gmra.mrb[0].mxu0 %v381
      %v431 = vpop.f32.mrb[0].mxu0
      %v432 = vadd.f32 %v311, %v431
      %v433 = vpop.f32.mrb[0].mxu0
      %v434 = vpop.f32.mrb[0].mxu0
      %v435 = vadd.f32 %v314, %v434
      %v436 = vpop.f32.mrb[0].mxu0
      %437 = vmatprep.mubr.bf16.mxu0 0
      %438 = vmatmul.mubr.bf16.gmra.mrb[0].mxu0 %v384
      %v439 = vpop.f32.mrb[0].mxu0
      %v440 = vadd.f32 %v319, %v439
      %v441 = vpop.f32.mrb[0].mxu0
      %v442 = vpop.f32.mrb[0].mxu0
      %v443 = vadd.f32 %v322, %v442
      %v444 = vpop.f32.mrb[0].mxu0
      %445 = vmatprep.mubr.bf16.mxu0 0
      %446 = vmatmul.mubr.bf16.gmra.mrb[0].mxu0 %v387
      %v447 = vpop.f32.mrb[0].mxu0
      %v448 = vadd.f32 %v327, %v447
      %v449 = vpop.f32.mrb[0].mxu0
      %v450 = vpop.f32.mrb[0].mxu0
      %v451 = vadd.f32 %v330, %v450
      %v452 = vpop.f32.mrb[0].mxu0
      %453 = vdwg.mxu0
      %v454 = vld [vmem:[%s169] sm:$0xf]
      %v455 = vld [vmem:[%s169 + $0x4] sm:$0x1]
      %v456 = vld [vmem:[%s169 + $0x8] sm:$0xf]
      %v457 = vld [vmem:[%s169 + $0xc] sm:$0x1]
      %v458 = vld [vmem:[%s169 + $0x10] sm:$0xf]
      %v459 = vld [vmem:[%s169 + $0x14] sm:$0x1]
      %v460 = vld [vmem:[%s169 + $0x18] sm:$0xf]
      %v461 = vld [vmem:[%s169 + $0x1c] sm:$0x1]
      %v462 = vld [vmem:[%s169 + $0x20] sm:$0xf]
      %v463 = vld [vmem:[%s169 + $0x24] sm:$0x1]
      %v464 = vld [vmem:[%s169 + $0x28] sm:$0xf]
      %v465 = vld [vmem:[%s169 + $0x2c] sm:$0x1]
      %v466 = vld [vmem:[%s169 + $0x30] sm:$0xf]
      %v467 = vld [vmem:[%s169 + $0x34] sm:$0x1]
      %v468 = vld [vmem:[%s169 + $0x38] sm:$0xf]
      %v469 = vld [vmem:[%s169 + $0x3c] sm:$0x1]
      %vm470 = vsmask.f32 3328
      %vm471 = vsmask.f32 7440
      %vm472 = vmor %vm470, %vm471
      %v474 = vshrl.u32 %v454, 16
      %v476 = vrot.slane %v474, 4
      %v477 = vshll.u32 %v454, 16
      %v479 = vrot.slane %v477, 5
      %v480 = vor.u32 %v476, %v479
      %v481 = vrot.slane %v480, 4
      %v483 = vshll.u32 %v455, 16
      %v485 = vrot.slane %v483, 5
      %v486 = vsel %vm472, %v481, %v485
      %v488 = vshrl.u32 %v456, 16
      %v490 = vrot.slane %v488, 4
      %v491 = vshll.u32 %v456, 16
      %v493 = vrot.slane %v491, 5
      %v494 = vor.u32 %v490, %v493
      %v495 = vrot.slane %v494, 4
      %v497 = vshll.u32 %v457, 16
      %v499 = vrot.slane %v497, 5
      %v500 = vsel %vm472, %v495, %v499
      %v502 = vshrl.u32 %v458, 16
      %v504 = vrot.slane %v502, 4
      %v505 = vshll.u32 %v458, 16
      %v507 = vrot.slane %v505, 5
      %v508 = vor.u32 %v504, %v507
      %v509 = vrot.slane %v508, 4
      %v511 = vshll.u32 %v459, 16
      %v513 = vrot.slane %v511, 5
      %v514 = vsel %vm472, %v509, %v513
      %v516 = vshrl.u32 %v460, 16
      %v518 = vrot.slane %v516, 4
      %v519 = vshll.u32 %v460, 16
      %v521 = vrot.slane %v519, 5
      %v522 = vor.u32 %v518, %v521
      %v523 = vrot.slane %v522, 4
      %v525 = vshll.u32 %v461, 16
      %v527 = vrot.slane %v525, 5
      %v528 = vsel %vm472, %v523, %v527
      %v530 = vshrl.u32 %v462, 16
      %v532 = vrot.slane %v530, 4
      %v533 = vshll.u32 %v462, 16
      %v535 = vrot.slane %v533, 5
      %v536 = vor.u32 %v532, %v535
      %v537 = vrot.slane %v536, 4
      %v539 = vshll.u32 %v463, 16
      %v541 = vrot.slane %v539, 5
      %v542 = vsel %vm472, %v537, %v541
      %v544 = vshrl.u32 %v464, 16
      %v546 = vrot.slane %v544, 4
      %v547 = vshll.u32 %v464, 16
      %v549 = vrot.slane %v547, 5
      %v550 = vor.u32 %v546, %v549
      %v551 = vrot.slane %v550, 4
      %v553 = vshll.u32 %v465, 16
      %v555 = vrot.slane %v553, 5
      %v556 = vsel %vm472, %v551, %v555
      %v558 = vshrl.u32 %v466, 16
      %v560 = vrot.slane %v558, 4
      %v561 = vshll.u32 %v466, 16
      %v563 = vrot.slane %v561, 5
      %v564 = vor.u32 %v560, %v563
      %v565 = vrot.slane %v564, 4
      %v567 = vshll.u32 %v467, 16
      %v569 = vrot.slane %v567, 5
      %v570 = vsel %vm472, %v565, %v569
      %v572 = vshrl.u32 %v468, 16
      %v574 = vrot.slane %v572, 4
      %v575 = vshll.u32 %v468, 16
      %v577 = vrot.slane %v575, 5
      %v578 = vor.u32 %v574, %v577
      %v579 = vrot.slane %v578, 4
      %v581 = vshll.u32 %v469, 16
      %v583 = vrot.slane %v581, 5
      %v584 = vsel %vm472, %v579, %v583
      %s585 = scalar_lea.vmem %s1, 64
      %v586 = vld [vmem:[%s585] sm:$0xf]
      %v587 = vld [vmem:[%s585 + $0x4] sm:$0xf]
      %v588 = vld [vmem:[%s585 + $0x8] sm:$0xf]
      %v589 = vld [vmem:[%s585 + $0xc] sm:$0xf]
      %v590 = vld [vmem:[%s585 + $0x10] sm:$0xf]
      %v591 = vld [vmem:[%s585 + $0x14] sm:$0xf]
      %v592 = vld [vmem:[%s585 + $0x18] sm:$0xf]
      %v593 = vld [vmem:[%s585 + $0x1c] sm:$0xf]
      %v594 = vunpack.c.l.b16 %v486
      %v595 = vunpack.c.l.b16 %v500
      %v596 = vunpack.c.l.b16 %v514
      %v597 = vunpack.c.l.b16 %v528
      %v598 = vunpack.c.l.b16 %v542
      %v599 = vunpack.c.l.b16 %v556
      %v600 = vunpack.c.l.b16 %v570
      %v601 = vunpack.c.l.b16 %v584
      %v602 = vpack.c.b16 %v595, %v594
      %v603 = vpack.c.b16 %v597, %v596
      %v604 = vpack.c.b16 %v599, %v598
      %v605 = vpack.c.b16 %v601, %v600
      %v614 = vunpack.c.l.b16 %v586
      %v615 = vunpack.c.l.b16 %v587
      %v616 = vunpack.c.l.b16 %v588
      %v617 = vunpack.c.l.b16 %v589
      %v618 = vunpack.c.l.b16 %v590
      %v619 = vunpack.c.l.b16 %v591
      %v620 = vunpack.c.l.b16 %v592
      %v621 = vunpack.c.l.b16 %v593
      %v622 = vpack.c.b16 %v615, %v614
      %v623 = vpack.c.b16 %v617, %v616
      %v624 = vpack.c.b16 %v619, %v618
      %v625 = vpack.c.b16 %v621, %v620
      %v631 = vsel %vm255, %v602, 0
      %v634 = vsel %vm255, %v603, 0
      %v637 = vsel %vm255, %v604, 0
      %v640 = vsel %vm255, %v605, 0
      %642 = vmatprep.subr.bf16.mxu0 0
      %643 = vmatpush1.bf16.msra.mxu0 %v622
      %644 = vmatprep.subr.bf16.mxu0 0
      %645 = vmatpush1.bf16.msra.mxu0 %v623
      %646 = vmatprep.subr.bf16.mxu0 0
      %647 = vmatpush1.bf16.msra.mxu0 %v624
      %648 = vmatprep.subr.bf16.mxu0 0
      %649 = vmatpush1.bf16.msra.mxu0 %v625
      %650 = vmatprep.subr.bf16.mxu0 0
      %651 = vmatpush1.bf16.msra.mxu0 0
      %652 = vmatprep.subr.bf16.mxu0 0
      %653 = vmatpush1.bf16.msra.mxu0 0
      %654 = vmatprep.subr.bf16.mxu0 0
      %655 = vmatpush1.bf16.msra.mxu0 0
      %656 = vmatprep.subr.bf16.mxu0 0
      %657 = vmatpush1.bf16.msra.mxu0 0
      %658 = vmatprep.subr.bf16.mxu0 0
      %659 = vmatpush1.bf16.msra.mxu0 0
      %660 = vmatprep.subr.bf16.mxu0 0
      %661 = vmatpush1.bf16.msra.mxu0 0
      %662 = vmatprep.subr.bf16.mxu0 0
      %663 = vmatpush1.bf16.msra.mxu0 0
      %664 = vmatprep.subr.bf16.mxu0 0
      %665 = vmatpush1.bf16.msra.mxu0 0
      %666 = vmatprep.subr.bf16.mxu0 0
      %667 = vmatpush1.bf16.msra.mxu0 0
      %668 = vmatprep.subr.bf16.mxu0 0
      %669 = vmatpush1.bf16.msra.mxu0 0
      %670 = vmatprep.subr.bf16.mxu0 0
      %671 = vmatpush1.bf16.msra.mxu0 0
      %672 = vmatprep.subr.bf16.mxu0 0
      %673 = vmatpush1.bf16.msra.mxu0 0
      %674 = vmatprep.mubr.bf16.mxu0 0
      %675 = vmatmul.mubr.bf16.gmra.mrb[0].mxu0 %v631
      %v676 = vpop.f32.mrb[0].mxu0
      %v677 = vadd.f32 0.0, %v676
      %v678 = vpop.f32.mrb[0].mxu0
      %v679 = vpop.f32.mrb[0].mxu0
      %v680 = vadd.f32 0.0, %v679
      %v681 = vpop.f32.mrb[0].mxu0
      %682 = vmatprep.mubr.bf16.mxu0 0
      %683 = vmatmul.mubr.bf16.gmra.mrb[0].mxu0 %v634
      %v684 = vpop.f32.mrb[0].mxu0
      %v685 = vadd.f32 0.0, %v684
      %v686 = vpop.f32.mrb[0].mxu0
      %v687 = vpop.f32.mrb[0].mxu0
      %v688 = vadd.f32 0.0, %v687
      %v689 = vpop.f32.mrb[0].mxu0
      %690 = vmatprep.mubr.bf16.mxu0 0
      %691 = vmatmul.mubr.bf16.gmra.mrb[0].mxu0 %v637
      %v692 = vpop.f32.mrb[0].mxu0
      %v693 = vadd.f32 0.0, %v692
      %v694 = vpop.f32.mrb[0].mxu0
      %v695 = vpop.f32.mrb[0].mxu0
      %v696 = vadd.f32 0.0, %v695
      %v697 = vpop.f32.mrb[0].mxu0
      %698 = vmatprep.mubr.bf16.mxu0 0
      %699 = vmatmul.mubr.bf16.gmra.mrb[0].mxu0 %v640
      %v700 = vpop.f32.mrb[0].mxu0
      %v701 = vadd.f32 0.0, %v700
      %v702 = vpop.f32.mrb[0].mxu0
      %v703 = vpop.f32.mrb[0].mxu0
      %v704 = vadd.f32 0.0, %v703
      %v705 = vpop.f32.mrb[0].mxu0
      %706 = vdwg.mxu0
      %v707 = vadd.f32 %v424, %v677
      %v708 = vadd.f32 %v427, %v680
      %v709 = vadd.f32 %v432, %v685
      %v710 = vadd.f32 %v435, %v688
      %v711 = vadd.f32 %v440, %v693
      %v712 = vadd.f32 %v443, %v696
      %v713 = vadd.f32 %v448, %v701
      %v714 = vadd.f32 %v451, %v704
      %s715 = scalar_lea.vmem %s169, 144
      %v716 = vld [vmem:[%s715] sm:$0xf]
      %v717 = vld [vmem:[%s715 + $0x8] sm:$0xf]
      %v718 = vld [vmem:[%s715 + $0x10] sm:$0xf]
      %v719 = vld [vmem:[%s715 + $0x18] sm:$0xf]
      %v720 = vld [vmem:[%s715 + $0x20] sm:$0xf]
      %v721 = vld [vmem:[%s715 + $0x28] sm:$0xf]
      %v722 = vld [vmem:[%s715 + $0x30] sm:$0xf]
      %v723 = vld [vmem:[%s715 + $0x38] sm:$0xf]
      %s724 = scalar_lea.vmem %s1, 96
      %v725 = vld [vmem:[%s724] sm:$0xf]
      %v726 = vld [vmem:[%s724 + $0x4] sm:$0xf]
      %v727 = vld [vmem:[%s724 + $0x8] sm:$0xf]
      %v728 = vld [vmem:[%s724 + $0xc] sm:$0xf]
      %v729 = vld [vmem:[%s724 + $0x10] sm:$0xf]
      %v730 = vld [vmem:[%s724 + $0x14] sm:$0xf]
      %v731 = vld [vmem:[%s724 + $0x18] sm:$0xf]
      %v732 = vld [vmem:[%s724 + $0x1c] sm:$0xf]
      %v741 = vunpack.c.l.b16 %v716
      %v742 = vunpack.c.l.b16 %v717
      %v743 = vunpack.c.l.b16 %v718
      %v744 = vunpack.c.l.b16 %v719
      %v745 = vunpack.c.l.b16 %v720
      %v746 = vunpack.c.l.b16 %v721
      %v747 = vunpack.c.l.b16 %v722
      %v748 = vunpack.c.l.b16 %v723
      %v749 = vpack.c.b16 %v742, %v741
      %v750 = vpack.c.b16 %v744, %v743
      %v751 = vpack.c.b16 %v746, %v745
      %v752 = vpack.c.b16 %v748, %v747
      %v761 = vunpack.c.l.b16 %v725
      %v762 = vunpack.c.l.b16 %v726
      %v763 = vunpack.c.l.b16 %v727
      %v764 = vunpack.c.l.b16 %v728
      %v765 = vunpack.c.l.b16 %v729
      %v766 = vunpack.c.l.b16 %v730
      %v767 = vunpack.c.l.b16 %v731
      %v768 = vunpack.c.l.b16 %v732
      %v769 = vpack.c.b16 %v762, %v761
      %v770 = vpack.c.b16 %v764, %v763
      %v771 = vpack.c.b16 %v766, %v765
      %v772 = vpack.c.b16 %v768, %v767
      %v778 = vsel %vm255, %v749, 0
      %v781 = vsel %vm255, %v750, 0
      %v784 = vsel %vm255, %v751, 0
      %v787 = vsel %vm255, %v752, 0
      %789 = vmatprep.subr.bf16.mxu0 0
      %790 = vmatpush1.bf16.msra.mxu0 %v769
      %791 = vmatprep.subr.bf16.mxu0 0
      %792 = vmatpush1.bf16.msra.mxu0 %v770
      %793 = vmatprep.subr.bf16.mxu0 0
      %794 = vmatpush1.bf16.msra.mxu0 %v771
      %795 = vmatprep.subr.bf16.mxu0 0
      %796 = vmatpush1.bf16.msra.mxu0 %v772
      %797 = vmatprep.subr.bf16.mxu0 0
      %798 = vmatpush1.bf16.msra.mxu0 0
      %799 = vmatprep.subr.bf16.mxu0 0
      %800 = vmatpush1.bf16.msra.mxu0 0
      %801 = vmatprep.subr.bf16.mxu0 0
      %802 = vmatpush1.bf16.msra.mxu0 0
      %803 = vmatprep.subr.bf16.mxu0 0
      %804 = vmatpush1.bf16.msra.mxu0 0
      %805 = vmatprep.subr.bf16.mxu0 0
      %806 = vmatpush1.bf16.msra.mxu0 0
      %807 = vmatprep.subr.bf16.mxu0 0
      %808 = vmatpush1.bf16.msra.mxu0 0
      %809 = vmatprep.subr.bf16.mxu0 0
      %810 = vmatpush1.bf16.msra.mxu0 0
      %811 = vmatprep.subr.bf16.mxu0 0
      %812 = vmatpush1.bf16.msra.mxu0 0
      %813 = vmatprep.subr.bf16.mxu0 0
      %814 = vmatpush1.bf16.msra.mxu0 0
      %815 = vmatprep.subr.bf16.mxu0 0
      %816 = vmatpush1.bf16.msra.mxu0 0
      %817 = vmatprep.subr.bf16.mxu0 0
      %818 = vmatpush1.bf16.msra.mxu0 0
      %819 = vmatprep.subr.bf16.mxu0 0
      %820 = vmatpush1.bf16.msra.mxu0 0
      %821 = vmatprep.mubr.bf16.mxu0 0
      %822 = vmatmul.mubr.bf16.gmra.mrb[0].mxu0 %v778
      %v823 = vpop.f32.mrb[0].mxu0
      %v824 = vadd.f32 0.0, %v823
      %v825 = vpop.f32.mrb[0].mxu0
      %v826 = vpop.f32.mrb[0].mxu0
      %v827 = vadd.f32 0.0, %v826
      %v828 = vpop.f32.mrb[0].mxu0
      %829 = vmatprep.mubr.bf16.mxu0 0
      %830 = vmatmul.mubr.bf16.gmra.mrb[0].mxu0 %v781
      %v831 = vpop.f32.mrb[0].mxu0
      %v832 = vadd.f32 0.0, %v831
      %v833 = vpop.f32.mrb[0].mxu0
      %v834 = vpop.f32.mrb[0].mxu0
      %v835 = vadd.f32 0.0, %v834
      %v836 = vpop.f32.mrb[0].mxu0
      %837 = vmatprep.mubr.bf16.mxu0 0
      %838 = vmatmul.mubr.bf16.gmra.mrb[0].mxu0 %v784
      %v839 = vpop.f32.mrb[0].mxu0
      %v840 = vadd.f32 0.0, %v839
      %v841 = vpop.f32.mrb[0].mxu0
      %v842 = vpop.f32.mrb[0].mxu0
      %v843 = vadd.f32 0.0, %v842
      %v844 = vpop.f32.mrb[0].mxu0
      %845 = vmatprep.mubr.bf16.mxu0 0
      %846 = vmatmul.mubr.bf16.gmra.mrb[0].mxu0 %v787
      %v847 = vpop.f32.mrb[0].mxu0
      %v848 = vadd.f32 0.0, %v847
      %v849 = vpop.f32.mrb[0].mxu0
      %v850 = vpop.f32.mrb[0].mxu0
      %v851 = vadd.f32 0.0, %v850
      %v852 = vpop.f32.mrb[0].mxu0
      %853 = vdwg.mxu0
      %v854 = vadd.f32 %v707, %v824
      %v855 = vadd.f32 %v708, %v827
      %v856 = vadd.f32 %v709, %v832
      %v857 = vadd.f32 %v710, %v835
      %v858 = vadd.f32 %v711, %v840
      %v859 = vadd.f32 %v712, %v843
      %v860 = vadd.f32 %v713, %v848
      %v861 = vadd.f32 %v714, %v851
      %s862 = scalar_lea.vmem %s169, 216
      %v863 = vld [vmem:[%s862] sm:$0xf]
      %v864 = vld [vmem:[%s862 + $0x8] sm:$0xf]
      %v865 = vld [vmem:[%s862 + $0x10] sm:$0xf]
      %v866 = vld [vmem:[%s862 + $0x18] sm:$0xf]
      %v867 = vld [vmem:[%s862 + $0x20] sm:$0xf]
      %v868 = vld [vmem:[%s862 + $0x28] sm:$0xf]
      %v869 = vld [vmem:[%s862 + $0x30] sm:$0xf]
      %v870 = vld [vmem:[%s862 + $0x38] sm:$0xf]
      %s871 = scalar_lea.vmem %s1, 128
      %v872 = vld [vmem:[%s871] sm:$0xf]
      %v873 = vld [vmem:[%s871 + $0x4] sm:$0xf]
      %v874 = vld [vmem:[%s871 + $0x8] sm:$0xf]
      %v875 = vld [vmem:[%s871 + $0xc] sm:$0xf]
      %v876 = vld [vmem:[%s871 + $0x10] sm:$0xf]
      %v877 = vld [vmem:[%s871 + $0x14] sm:$0xf]
      %v878 = vld [vmem:[%s871 + $0x18] sm:$0xf]
      %v879 = vld [vmem:[%s871 + $0x1c] sm:$0xf]
      %v888 = vunpack.c.l.b16 %v863
      %v889 = vunpack.c.l.b16 %v864
      %v890 = vunpack.c.l.b16 %v865
      %v891 = vunpack.c.l.b16 %v866
      %v892 = vunpack.c.l.b16 %v867
      %v893 = vunpack.c.l.b16 %v868
      %v894 = vunpack.c.l.b16 %v869
      %v895 = vunpack.c.l.b16 %v870
      %v896 = vpack.c.b16 %v889, %v888
      %v897 = vpack.c.b16 %v891, %v890
      %v898 = vpack.c.b16 %v893, %v892
      %v899 = vpack.c.b16 %v895, %v894
      %v908 = vunpack.c.l.b16 %v872
      %v909 = vunpack.c.l.b16 %v873
      %v910 = vunpack.c.l.b16 %v874
      %v911 = vunpack.c.l.b16 %v875
      %v912 = vunpack.c.l.b16 %v876
      %v913 = vunpack.c.l.b16 %v877
      %v914 = vunpack.c.l.b16 %v878
      %v915 = vunpack.c.l.b16 %v879
      %v916 = vpack.c.b16 %v909, %v908
      %v917 = vpack.c.b16 %v911, %v910
      %v918 = vpack.c.b16 %v913, %v912
      %v919 = vpack.c.b16 %v915, %v914
      %v925 = vsel %vm255, %v896, 0
      %v928 = vsel %vm255, %v897, 0
      %v931 = vsel %vm255, %v898, 0
      %v934 = vsel %vm255, %v899, 0
      %936 = vmatprep.subr.bf16.mxu0 0
      %937 = vmatpush1.bf16.msra.mxu0 %v916
      %938 = vmatprep.subr.bf16.mxu0 0
      %939 = vmatpush1.bf16.msra.mxu0 %v917
      %940 = vmatprep.subr.bf16.mxu0 0
      %941 = vmatpush1.bf16.msra.mxu0 %v918
      %942 = vmatprep.subr.bf16.mxu0 0
      %943 = vmatpush1.bf16.msra.mxu0 %v919
      %944 = vmatprep.subr.bf16.mxu0 0
      %945 = vmatpush1.bf16.msra.mxu0 0
      %946 = vmatprep.subr.bf16.mxu0 0
      %947 = vmatpush1.bf16.msra.mxu0 0
      %948 = vmatprep.subr.bf16.mxu0 0
      %949 = vmatpush1.bf16.msra.mxu0 0
      %950 = vmatprep.subr.bf16.mxu0 0
      %951 = vmatpush1.bf16.msra.mxu0 0
      %952 = vmatprep.subr.bf16.mxu0 0
      %953 = vmatpush1.bf16.msra.mxu0 0
      %954 = vmatprep.subr.bf16.mxu0 0
      %955 = vmatpush1.bf16.msra.mxu0 0
      %956 = vmatprep.subr.bf16.mxu0 0
      %957 = vmatpush1.bf16.msra.mxu0 0
      %958 = vmatprep.subr.bf16.mxu0 0
      %959 = vmatpush1.bf16.msra.mxu0 0
      %960 = vmatprep.subr.bf16.mxu0 0
      %961 = vmatpush1.bf16.msra.mxu0 0
      %962 = vmatprep.subr.bf16.mxu0 0
      %963 = vmatpush1.bf16.msra.mxu0 0
      %964 = vmatprep.subr.bf16.mxu0 0
      %965 = vmatpush1.bf16.msra.mxu0 0
      %966 = vmatprep.subr.bf16.mxu0 0
      %967 = vmatpush1.bf16.msra.mxu0 0
      %968 = vmatprep.mubr.bf16.mxu0 0
      %969 = vmatmul.mubr.bf16.gmra.mrb[0].mxu0 %v925
      %v970 = vpop.f32.mrb[0].mxu0
      %v971 = vadd.f32 0.0, %v970
      %v972 = vpop.f32.mrb[0].mxu0
      %v973 = vpop.f32.mrb[0].mxu0
      %v974 = vadd.f32 0.0, %v973
      %v975 = vpop.f32.mrb[0].mxu0
      %976 = vmatprep.mubr.bf16.mxu0 0
      %977 = vmatmul.mubr.bf16.gmra.mrb[0].mxu0 %v928
      %v978 = vpop.f32.mrb[0].mxu0
      %v979 = vadd.f32 0.0, %v978
      %v980 = vpop.f32.mrb[0].mxu0
      %v981 = vpop.f32.mrb[0].mxu0
      %v982 = vadd.f32 0.0, %v981
      %v983 = vpop.f32.mrb[0].mxu0
      %984 = vmatprep.mubr.bf16.mxu0 0
      %985 = vmatmul.mubr.bf16.gmra.mrb[0].mxu0 %v931
      %v986 = vpop.f32.mrb[0].mxu0
      %v987 = vadd.f32 0.0, %v986
      %v988 = vpop.f32.mrb[0].mxu0
      %v989 = vpop.f32.mrb[0].mxu0
      %v990 = vadd.f32 0.0, %v989
      %v991 = vpop.f32.mrb[0].mxu0
      %992 = vmatprep.mubr.bf16.mxu0 0
      %993 = vmatmul.mubr.bf16.gmra.mrb[0].mxu0 %v934
      %v994 = vpop.f32.mrb[0].mxu0
      %v995 = vadd.f32 0.0, %v994
      %v996 = vpop.f32.mrb[0].mxu0
      %v997 = vpop.f32.mrb[0].mxu0
      %v998 = vadd.f32 0.0, %v997
      %v999 = vpop.f32.mrb[0].mxu0
      %1000 = vdwg.mxu0
      %v1001 = vadd.f32 %v854, %v971
      %v1002 = vadd.f32 %v855, %v974
      %v1003 = vadd.f32 %v856, %v979
      %v1004 = vadd.f32 %v857, %v982
      %v1005 = vadd.f32 %v858, %v987
      %v1006 = vadd.f32 %v859, %v990
      %v1007 = vadd.f32 %v860, %v995
      %v1008 = vadd.f32 %v861, %v998
      %v1009 = vld [vmem:[%s715] sm:$0xf]
      %v1010 = vld [vmem:[%s715 + $0x4] sm:$0x1]
      %v1011 = vld [vmem:[%s715 + $0x8] sm:$0xf]
      %v1012 = vld [vmem:[%s715 + $0xc] sm:$0x1]
      %v1013 = vld [vmem:[%s715 + $0x10] sm:$0xf]
      %v1014 = vld [vmem:[%s715 + $0x14] sm:$0x1]
      %v1015 = vld [vmem:[%s715 + $0x18] sm:$0xf]
      %v1016 = vld [vmem:[%s715 + $0x1c] sm:$0x1]
      %v1017 = vld [vmem:[%s715 + $0x20] sm:$0xf]
      %v1018 = vld [vmem:[%s715 + $0x24] sm:$0x1]
      %v1019 = vld [vmem:[%s715 + $0x28] sm:$0xf]
      %v1020 = vld [vmem:[%s715 + $0x2c] sm:$0x1]
      %v1021 = vld [vmem:[%s715 + $0x30] sm:$0xf]
      %v1022 = vld [vmem:[%s715 + $0x34] sm:$0x1]
      %v1023 = vld [vmem:[%s715 + $0x38] sm:$0xf]
      %v1024 = vld [vmem:[%s715 + $0x3c] sm:$0x1]
      %v1026 = vshrl.u32 %v1009, 16
      %v1028 = vrot.slane %v1026, 4
      %v1029 = vshll.u32 %v1009, 16
      %v1031 = vrot.slane %v1029, 5
      %v1032 = vor.u32 %v1028, %v1031
      %v1033 = vrot.slane %v1032, 4
      %v1035 = vshll.u32 %v1010, 16
      %v1037 = vrot.slane %v1035, 5
      %v1038 = vsel %vm472, %v1033, %v1037
      %v1040 = vshrl.u32 %v1011, 16
      %v1042 = vrot.slane %v1040, 4
      %v1043 = vshll.u32 %v1011, 16
      %v1045 = vrot.slane %v1043, 5
      %v1046 = vor.u32 %v1042, %v1045
      %v1047 = vrot.slane %v1046, 4
      %v1049 = vshll.u32 %v1012, 16
      %v1051 = vrot.slane %v1049, 5
      %v1052 = vsel %vm472, %v1047, %v1051
      %v1054 = vshrl.u32 %v1013, 16
      %v1056 = vrot.slane %v1054, 4
      %v1057 = vshll.u32 %v1013, 16
      %v1059 = vrot.slane %v1057, 5
      %v1060 = vor.u32 %v1056, %v1059
      %v1061 = vrot.slane %v1060, 4
      %v1063 = vshll.u32 %v1014, 16
      %v1065 = vrot.slane %v1063, 5
      %v1066 = vsel %vm472, %v1061, %v1065
      %v1068 = vshrl.u32 %v1015, 16
      %v1070 = vrot.slane %v1068, 4
      %v1071 = vshll.u32 %v1015, 16
      %v1073 = vrot.slane %v1071, 5
      %v1074 = vor.u32 %v1070, %v1073
      %v1075 = vrot.slane %v1074, 4
      %v1077 = vshll.u32 %v1016, 16
      %v1079 = vrot.slane %v1077, 5
      %v1080 = vsel %vm472, %v1075, %v1079
      %v1082 = vshrl.u32 %v1017, 16
      %v1084 = vrot.slane %v1082, 4
      %v1085 = vshll.u32 %v1017, 16
      %v1087 = vrot.slane %v1085, 5
      %v1088 = vor.u32 %v1084, %v1087
      %v1089 = vrot.slane %v1088, 4
      %v1091 = vshll.u32 %v1018, 16
      %v1093 = vrot.slane %v1091, 5
      %v1094 = vsel %vm472, %v1089, %v1093
      %v1096 = vshrl.u32 %v1019, 16
      %v1098 = vrot.slane %v1096, 4
      %v1099 = vshll.u32 %v1019, 16
      %v1101 = vrot.slane %v1099, 5
      %v1102 = vor.u32 %v1098, %v1101
      %v1103 = vrot.slane %v1102, 4
      %v1105 = vshll.u32 %v1020, 16
      %v1107 = vrot.slane %v1105, 5
      %v1108 = vsel %vm472, %v1103, %v1107
      %v1110 = vshrl.u32 %v1021, 16
      %v1112 = vrot.slane %v1110, 4
      %v1113 = vshll.u32 %v1021, 16
      %v1115 = vrot.slane %v1113, 5
      %v1116 = vor.u32 %v1112, %v1115
      %v1117 = vrot.slane %v1116, 4
      %v1119 = vshll.u32 %v1022, 16
      %v1121 = vrot.slane %v1119, 5
      %v1122 = vsel %vm472, %v1117, %v1121
      %v1124 = vshrl.u32 %v1023, 16
      %v1126 = vrot.slane %v1124, 4
      %v1127 = vshll.u32 %v1023, 16
      %v1129 = vrot.slane %v1127, 5
      %v1130 = vor.u32 %v1126, %v1129
      %v1131 = vrot.slane %v1130, 4
      %v1133 = vshll.u32 %v1024, 16
      %v1135 = vrot.slane %v1133, 5
      %v1136 = vsel %vm472, %v1131, %v1135
      %s1137 = scalar_lea.vmem %s1, 160
      %v1138 = vld [vmem:[%s1137] sm:$0xf]
      %v1139 = vld [vmem:[%s1137 + $0x4] sm:$0xf]
      %v1140 = vld [vmem:[%s1137 + $0x8] sm:$0xf]
      %v1141 = vld [vmem:[%s1137 + $0xc] sm:$0xf]
      %v1142 = vld [vmem:[%s1137 + $0x10] sm:$0xf]
      %v1143 = vld [vmem:[%s1137 + $0x14] sm:$0xf]
      %v1144 = vld [vmem:[%s1137 + $0x18] sm:$0xf]
      %v1145 = vld [vmem:[%s1137 + $0x1c] sm:$0xf]
      %v1146 = vunpack.c.l.b16 %v1038
      %v1147 = vunpack.c.l.b16 %v1052
      %v1148 = vunpack.c.l.b16 %v1066
      %v1149 = vunpack.c.l.b16 %v1080
      %v1150 = vunpack.c.l.b16 %v1094
      %v1151 = vunpack.c.l.b16 %v1108
      %v1152 = vunpack.c.l.b16 %v1122
      %v1153 = vunpack.c.l.b16 %v1136
      %v1154 = vpack.c.b16 %v1147, %v1146
      %v1155 = vpack.c.b16 %v1149, %v1148
      %v1156 = vpack.c.b16 %v1151, %v1150
      %v1157 = vpack.c.b16 %v1153, %v1152
      %v1166 = vunpack.c.l.b16 %v1138
      %v1167 = vunpack.c.l.b16 %v1139
      %v1168 = vunpack.c.l.b16 %v1140
      %v1169 = vunpack.c.l.b16 %v1141
      %v1170 = vunpack.c.l.b16 %v1142
      %v1171 = vunpack.c.l.b16 %v1143
      %v1172 = vunpack.c.l.b16 %v1144
      %v1173 = vunpack.c.l.b16 %v1145
      %v1174 = vpack.c.b16 %v1167, %v1166
      %v1175 = vpack.c.b16 %v1169, %v1168
      %v1176 = vpack.c.b16 %v1171, %v1170
      %v1177 = vpack.c.b16 %v1173, %v1172
      %v1183 = vsel %vm255, %v1154, 0
      %v1186 = vsel %vm255, %v1155, 0
      %v1189 = vsel %vm255, %v1156, 0
      %v1192 = vsel %vm255, %v1157, 0
      %1194 = vmatprep.subr.bf16.mxu0 0
      %1195 = vmatpush1.bf16.msra.mxu0 %v1174
      %1196 = vmatprep.subr.bf16.mxu0 0
      %1197 = vmatpush1.bf16.msra.mxu0 %v1175
      %1198 = vmatprep.subr.bf16.mxu0 0
      %1199 = vmatpush1.bf16.msra.mxu0 %v1176
      %1200 = vmatprep.subr.bf16.mxu0 0
      %1201 = vmatpush1.bf16.msra.mxu0 %v1177
      %1202 = vmatprep.subr.bf16.mxu0 0
      %1203 = vmatpush1.bf16.msra.mxu0 0
      %1204 = vmatprep.subr.bf16.mxu0 0
      %1205 = vmatpush1.bf16.msra.mxu0 0
      %1206 = vmatprep.subr.bf16.mxu0 0
      %1207 = vmatpush1.bf16.msra.mxu0 0
      %1208 = vmatprep.subr.bf16.mxu0 0
      %1209 = vmatpush1.bf16.msra.mxu0 0
      %1210 = vmatprep.subr.bf16.mxu0 0
      %1211 = vmatpush1.bf16.msra.mxu0 0
      %1212 = vmatprep.subr.bf16.mxu0 0
      %1213 = vmatpush1.bf16.msra.mxu0 0
      %1214 = vmatprep.subr.bf16.mxu0 0
      %1215 = vmatpush1.bf16.msra.mxu0 0
      %1216 = vmatprep.subr.bf16.mxu0 0
      %1217 = vmatpush1.bf16.msra.mxu0 0
      %1218 = vmatprep.subr.bf16.mxu0 0
      %1219 = vmatpush1.bf16.msra.mxu0 0
      %1220 = vmatprep.subr.bf16.mxu0 0
      %1221 = vmatpush1.bf16.msra.mxu0 0
      %1222 = vmatprep.subr.bf16.mxu0 0
      %1223 = vmatpush1.bf16.msra.mxu0 0
      %1224 = vmatprep.subr.bf16.mxu0 0
      %1225 = vmatpush1.bf16.msra.mxu0 0
      %1226 = vmatprep.mubr.bf16.mxu0 0
      %1227 = vmatmul.mubr.bf16.gmra.mrb[0].mxu0 %v1183
      %v1228 = vpop.f32.mrb[0].mxu0
      %v1229 = vadd.f32 0.0, %v1228
      %v1230 = vpop.f32.mrb[0].mxu0
      %v1231 = vpop.f32.mrb[0].mxu0
      %v1232 = vadd.f32 0.0, %v1231
      %v1233 = vpop.f32.mrb[0].mxu0
      %1234 = vmatprep.mubr.bf16.mxu0 0
      %1235 = vmatmul.mubr.bf16.gmra.mrb[0].mxu0 %v1186
      %v1236 = vpop.f32.mrb[0].mxu0
      %v1237 = vadd.f32 0.0, %v1236
      %v1238 = vpop.f32.mrb[0].mxu0
      %v1239 = vpop.f32.mrb[0].mxu0
      %v1240 = vadd.f32 0.0, %v1239
      %v1241 = vpop.f32.mrb[0].mxu0
      %1242 = vmatprep.mubr.bf16.mxu0 0
      %1243 = vmatmul.mubr.bf16.gmra.mrb[0].mxu0 %v1189
      %v1244 = vpop.f32.mrb[0].mxu0
      %v1245 = vadd.f32 0.0, %v1244
      %v1246 = vpop.f32.mrb[0].mxu0
      %v1247 = vpop.f32.mrb[0].mxu0
      %v1248 = vadd.f32 0.0, %v1247
      %v1249 = vpop.f32.mrb[0].mxu0
      %1250 = vmatprep.mubr.bf16.mxu0 0
      %1251 = vmatmul.mubr.bf16.gmra.mrb[0].mxu0 %v1192
      %v1252 = vpop.f32.mrb[0].mxu0
      %v1253 = vadd.f32 0.0, %v1252
      %v1254 = vpop.f32.mrb[0].mxu0
      %v1255 = vpop.f32.mrb[0].mxu0
      %v1256 = vadd.f32 0.0, %v1255
      %v1257 = vpop.f32.mrb[0].mxu0
      %1258 = vdwg.mxu0
      %v1259 = vadd.f32 %v1001, %v1229
      %v1260 = vadd.f32 %v1002, %v1232
      %v1261 = vadd.f32 %v1003, %v1237
      %v1262 = vadd.f32 %v1004, %v1240
      %v1263 = vadd.f32 %v1005, %v1245
      %v1264 = vadd.f32 %v1006, %v1248
      %v1265 = vadd.f32 %v1007, %v1253
      %v1266 = vadd.f32 %v1008, %v1256
      %s1267 = scalar_lea.vmem %s169, 8
      %v1268 = vld [vmem:[%s1267] sm:$0xf]
      %v1269 = vld [vmem:[%s1267 + $0x8] sm:$0xf]
      %v1270 = vld [vmem:[%s1267 + $0x10] sm:$0xf]
      %v1271 = vld [vmem:[%s1267 + $0x18] sm:$0xf]
      %v1272 = vld [vmem:[%s1267 + $0x20] sm:$0xf]
      %v1273 = vld [vmem:[%s1267 + $0x28] sm:$0xf]
      %v1274 = vld [vmem:[%s1267 + $0x30] sm:$0xf]
      %v1275 = vld [vmem:[%s1267 + $0x38] sm:$0xf]
      %s1276 = scalar_lea.vmem %s1, 192
      %v1277 = vld [vmem:[%s1276] sm:$0xf]
      %v1278 = vld [vmem:[%s1276 + $0x4] sm:$0xf]
      %v1279 = vld [vmem:[%s1276 + $0x8] sm:$0xf]
      %v1280 = vld [vmem:[%s1276 + $0xc] sm:$0xf]
      %v1281 = vld [vmem:[%s1276 + $0x10] sm:$0xf]
      %v1282 = vld [vmem:[%s1276 + $0x14] sm:$0xf]
      %v1283 = vld [vmem:[%s1276 + $0x18] sm:$0xf]
      %v1284 = vld [vmem:[%s1276 + $0x1c] sm:$0xf]
      %v1293 = vunpack.c.l.b16 %v1268
      %v1294 = vunpack.c.l.b16 %v1269
      %v1295 = vunpack.c.l.b16 %v1270
      %v1296 = vunpack.c.l.b16 %v1271
      %v1297 = vunpack.c.l.b16 %v1272
      %v1298 = vunpack.c.l.b16 %v1273
      %v1299 = vunpack.c.l.b16 %v1274
      %v1300 = vunpack.c.l.b16 %v1275
      %v1301 = vpack.c.b16 %v1294, %v1293
      %v1302 = vpack.c.b16 %v1296, %v1295
      %v1303 = vpack.c.b16 %v1298, %v1297
      %v1304 = vpack.c.b16 %v1300, %v1299
      %v1313 = vunpack.c.l.b16 %v1277
      %v1314 = vunpack.c.l.b16 %v1278
      %v1315 = vunpack.c.l.b16 %v1279
      %v1316 = vunpack.c.l.b16 %v1280
      %v1317 = vunpack.c.l.b16 %v1281
      %v1318 = vunpack.c.l.b16 %v1282
      %v1319 = vunpack.c.l.b16 %v1283
      %v1320 = vunpack.c.l.b16 %v1284
      %v1321 = vpack.c.b16 %v1314, %v1313
      %v1322 = vpack.c.b16 %v1316, %v1315
      %v1323 = vpack.c.b16 %v1318, %v1317
      %v1324 = vpack.c.b16 %v1320, %v1319
      %v1330 = vsel %vm255, %v1301, 0
      %v1333 = vsel %vm255, %v1302, 0
      %v1336 = vsel %vm255, %v1303, 0
      %v1339 = vsel %vm255, %v1304, 0
      %1341 = vmatprep.subr.bf16.mxu0 0
      %1342 = vmatpush1.bf16.msra.mxu0 %v1321
      %1343 = vmatprep.subr.bf16.mxu0 0
      %1344 = vmatpush1.bf16.msra.mxu0 %v1322
      %1345 = vmatprep.subr.bf16.mxu0 0
      %1346 = vmatpush1.bf16.msra.mxu0 %v1323
      %1347 = vmatprep.subr.bf16.mxu0 0
      %1348 = vmatpush1.bf16.msra.mxu0 %v1324
      %1349 = vmatprep.subr.bf16.mxu0 0
      %1350 = vmatpush1.bf16.msra.mxu0 0
      %1351 = vmatprep.subr.bf16.mxu0 0
      %1352 = vmatpush1.bf16.msra.mxu0 0
      %1353 = vmatprep.subr.bf16.mxu0 0
      %1354 = vmatpush1.bf16.msra.mxu0 0
      %1355 = vmatprep.subr.bf16.mxu0 0
      %1356 = vmatpush1.bf16.msra.mxu0 0
      %1357 = vmatprep.subr.bf16.mxu0 0
      %1358 = vmatpush1.bf16.msra.mxu0 0
      %1359 = vmatprep.subr.bf16.mxu0 0
      %1360 = vmatpush1.bf16.msra.mxu0 0
      %1361 = vmatprep.subr.bf16.mxu0 0
      %1362 = vmatpush1.bf16.msra.mxu0 0
      %1363 = vmatprep.subr.bf16.mxu0 0
      %1364 = vmatpush1.bf16.msra.mxu0 0
      %1365 = vmatprep.subr.bf16.mxu0 0
      %1366 = vmatpush1.bf16.msra.mxu0 0
      %1367 = vmatprep.subr.bf16.mxu0 0
      %1368 = vmatpush1.bf16.msra.mxu0 0
      %1369 = vmatprep.subr.bf16.mxu0 0
      %1370 = vmatpush1.bf16.msra.mxu0 0
      %1371 = vmatprep.subr.bf16.mxu0 0
      %1372 = vmatpush1.bf16.msra.mxu0 0
      %1373 = vmatprep.mubr.bf16.mxu0 0
      %1374 = vmatmul.mubr.bf16.gmra.mrb[0].mxu0 %v1330
      %v1375 = vpop.f32.mrb[0].mxu0
      %v1376 = vadd.f32 0.0, %v1375
      %v1377 = vpop.f32.mrb[0].mxu0
      %v1378 = vpop.f32.mrb[0].mxu0
      %v1379 = vadd.f32 0.0, %v1378
      %v1380 = vpop.f32.mrb[0].mxu0
      %1381 = vmatprep.mubr.bf16.mxu0 0
      %1382 = vmatmul.mubr.bf16.gmra.mrb[0].mxu0 %v1333
      %v1383 = vpop.f32.mrb[0].mxu0
      %v1384 = vadd.f32 0.0, %v1383
      %v1385 = vpop.f32.mrb[0].mxu0
      %v1386 = vpop.f32.mrb[0].mxu0
      %v1387 = vadd.f32 0.0, %v1386
      %v1388 = vpop.f32.mrb[0].mxu0
      %1389 = vmatprep.mubr.bf16.mxu0 0
      %1390 = vmatmul.mubr.bf16.gmra.mrb[0].mxu0 %v1336
      %v1391 = vpop.f32.mrb[0].mxu0
      %v1392 = vadd.f32 0.0, %v1391
      %v1393 = vpop.f32.mrb[0].mxu0
      %v1394 = vpop.f32.mrb[0].mxu0
      %v1395 = vadd.f32 0.0, %v1394
      %v1396 = vpop.f32.mrb[0].mxu0
      %1397 = vmatprep.mubr.bf16.mxu0 0
      %1398 = vmatmul.mubr.bf16.gmra.mrb[0].mxu0 %v1339
      %v1399 = vpop.f32.mrb[0].mxu0
      %v1400 = vadd.f32 0.0, %v1399
      %v1401 = vpop.f32.mrb[0].mxu0
      %v1402 = vpop.f32.mrb[0].mxu0
      %v1403 = vadd.f32 0.0, %v1402
      %v1404 = vpop.f32.mrb[0].mxu0
      %1405 = vdwg.mxu0
      %v1406 = vadd.f32 %v1259, %v1376
      %v1407 = vadd.f32 %v1260, %v1379
      %v1408 = vadd.f32 %v1261, %v1384
      %v1409 = vadd.f32 %v1262, %v1387
      %v1410 = vadd.f32 %v1263, %v1392
      %v1411 = vadd.f32 %v1264, %v1395
      %v1412 = vadd.f32 %v1265, %v1400
      %v1413 = vadd.f32 %v1266, %v1403
      %s1414 = scalar_lea.vmem %s169, 80
      %v1415 = vld [vmem:[%s1414] sm:$0xf]
      %v1416 = vld [vmem:[%s1414 + $0x8] sm:$0xf]
      %v1417 = vld [vmem:[%s1414 + $0x10] sm:$0xf]
      %v1418 = vld [vmem:[%s1414 + $0x18] sm:$0xf]
      %v1419 = vld [vmem:[%s1414 + $0x20] sm:$0xf]
      %v1420 = vld [vmem:[%s1414 + $0x28] sm:$0xf]
      %v1421 = vld [vmem:[%s1414 + $0x30] sm:$0xf]
      %v1422 = vld [vmem:[%s1414 + $0x38] sm:$0xf]
      %s1423 = scalar_lea.vmem %s1, 224
      %v1424 = vld [vmem:[%s1423] sm:$0xf]
      %v1425 = vld [vmem:[%s1423 + $0x4] sm:$0xf]
      %v1426 = vld [vmem:[%s1423 + $0x8] sm:$0xf]
      %v1427 = vld [vmem:[%s1423 + $0xc] sm:$0xf]
      %v1428 = vld [vmem:[%s1423 + $0x10] sm:$0xf]
      %v1429 = vld [vmem:[%s1423 + $0x14] sm:$0xf]
      %v1430 = vld [vmem:[%s1423 + $0x18] sm:$0xf]
      %v1431 = vld [vmem:[%s1423 + $0x1c] sm:$0xf]
      %v1440 = vunpack.c.l.b16 %v1415
      %v1441 = vunpack.c.l.b16 %v1416
      %v1442 = vunpack.c.l.b16 %v1417
      %v1443 = vunpack.c.l.b16 %v1418
      %v1444 = vunpack.c.l.b16 %v1419
      %v1445 = vunpack.c.l.b16 %v1420
      %v1446 = vunpack.c.l.b16 %v1421
      %v1447 = vunpack.c.l.b16 %v1422
      %v1448 = vpack.c.b16 %v1441, %v1440
      %v1449 = vpack.c.b16 %v1443, %v1442
      %v1450 = vpack.c.b16 %v1445, %v1444
      %v1451 = vpack.c.b16 %v1447, %v1446
      %v1460 = vunpack.c.l.b16 %v1424
      %v1461 = vunpack.c.l.b16 %v1425
      %v1462 = vunpack.c.l.b16 %v1426
      %v1463 = vunpack.c.l.b16 %v1427
      %v1464 = vunpack.c.l.b16 %v1428
      %v1465 = vunpack.c.l.b16 %v1429
      %v1466 = vunpack.c.l.b16 %v1430
      %v1467 = vunpack.c.l.b16 %v1431
      %v1468 = vpack.c.b16 %v1461, %v1460
      %v1469 = vpack.c.b16 %v1463, %v1462
      %v1470 = vpack.c.b16 %v1465, %v1464
      %v1471 = vpack.c.b16 %v1467, %v1466
      %v1477 = vsel %vm255, %v1448, 0
      %v1480 = vsel %vm255, %v1449, 0
      %v1483 = vsel %vm255, %v1450, 0
      %v1486 = vsel %vm255, %v1451, 0
      %1488 = vmatprep.subr.bf16.mxu0 0
      %1489 = vmatpush1.bf16.msra.mxu0 %v1468
      %1490 = vmatprep.subr.bf16.mxu0 0
      %1491 = vmatpush1.bf16.msra.mxu0 %v1469
      %1492 = vmatprep.subr.bf16.mxu0 0
      %1493 = vmatpush1.bf16.msra.mxu0 %v1470
      %1494 = vmatprep.subr.bf16.mxu0 0
      %1495 = vmatpush1.bf16.msra.mxu0 %v1471
      %1496 = vmatprep.subr.bf16.mxu0 0
      %1497 = vmatpush1.bf16.msra.mxu0 0
      %1498 = vmatprep.subr.bf16.mxu0 0
      %1499 = vmatpush1.bf16.msra.mxu0 0
      %1500 = vmatprep.subr.bf16.mxu0 0
      %1501 = vmatpush1.bf16.msra.mxu0 0
      %1502 = vmatprep.subr.bf16.mxu0 0
      %1503 = vmatpush1.bf16.msra.mxu0 0
      %1504 = vmatprep.subr.bf16.mxu0 0
      %1505 = vmatpush1.bf16.msra.mxu0 0
      %1506 = vmatprep.subr.bf16.mxu0 0
      %1507 = vmatpush1.bf16.msra.mxu0 0
      %1508 = vmatprep.subr.bf16.mxu0 0
      %1509 = vmatpush1.bf16.msra.mxu0 0
      %1510 = vmatprep.subr.bf16.mxu0 0
      %1511 = vmatpush1.bf16.msra.mxu0 0
      %1512 = vmatprep.subr.bf16.mxu0 0
      %1513 = vmatpush1.bf16.msra.mxu0 0
      %1514 = vmatprep.subr.bf16.mxu0 0
      %1515 = vmatpush1.bf16.msra.mxu0 0
      %1516 = vmatprep.subr.bf16.mxu0 0
      %1517 = vmatpush1.bf16.msra.mxu0 0
      %1518 = vmatprep.subr.bf16.mxu0 0
      %1519 = vmatpush1.bf16.msra.mxu0 0
      %1520 = vmatprep.mubr.bf16.mxu0 0
      %1521 = vmatmul.mubr.bf16.gmra.mrb[0].mxu0 %v1477
      %v1522 = vpop.f32.mrb[0].mxu0
      %v1523 = vadd.f32 0.0, %v1522
      %v1524 = vpop.f32.mrb[0].mxu0
      %v1525 = vpop.f32.mrb[0].mxu0
      %v1526 = vadd.f32 0.0, %v1525
      %v1527 = vpop.f32.mrb[0].mxu0
      %1528 = vmatprep.mubr.bf16.mxu0 0
      %1529 = vmatmul.mubr.bf16.gmra.mrb[0].mxu0 %v1480
      %v1530 = vpop.f32.mrb[0].mxu0
      %v1531 = vadd.f32 0.0, %v1530
      %v1532 = vpop.f32.mrb[0].mxu0
      %v1533 = vpop.f32.mrb[0].mxu0
      %v1534 = vadd.f32 0.0, %v1533
      %v1535 = vpop.f32.mrb[0].mxu0
      %1536 = vmatprep.mubr.bf16.mxu0 0
      %1537 = vmatmul.mubr.bf16.gmra.mrb[0].mxu0 %v1483
      %v1538 = vpop.f32.mrb[0].mxu0
      %v1539 = vadd.f32 0.0, %v1538
      %v1540 = vpop.f32.mrb[0].mxu0
      %v1541 = vpop.f32.mrb[0].mxu0
      %v1542 = vadd.f32 0.0, %v1541
      %v1543 = vpop.f32.mrb[0].mxu0
      %1544 = vmatprep.mubr.bf16.mxu0 0
      %1545 = vmatmul.mubr.bf16.gmra.mrb[0].mxu0 %v1486
      %v1546 = vpop.f32.mrb[0].mxu0
      %v1547 = vadd.f32 0.0, %v1546
      %v1548 = vpop.f32.mrb[0].mxu0
      %v1549 = vpop.f32.mrb[0].mxu0
      %v1550 = vadd.f32 0.0, %v1549
      %v1551 = vpop.f32.mrb[0].mxu0
      %1552 = vdwg.mxu0
      %v1553 = vadd.f32 %v1406, %v1523
      %v1554 = vadd.f32 %v1407, %v1526
      %v1555 = vadd.f32 %v1408, %v1531
      %v1556 = vadd.f32 %v1409, %v1534
      %v1557 = vadd.f32 %v1410, %v1539
      %v1558 = vadd.f32 %v1411, %v1542
      %v1559 = vadd.f32 %v1412, %v1547
      %v1560 = vadd.f32 %v1413, %v1550
      %v1561 = vld [vmem:[%s1267] sm:$0xf]
      %v1562 = vld [vmem:[%s1267 + $0x4] sm:$0x1]
      %v1563 = vld [vmem:[%s1267 + $0x8] sm:$0xf]
      %v1564 = vld [vmem:[%s1267 + $0xc] sm:$0x1]
      %v1565 = vld [vmem:[%s1267 + $0x10] sm:$0xf]
      %v1566 = vld [vmem:[%s1267 + $0x14] sm:$0x1]
      %v1567 = vld [vmem:[%s1267 + $0x18] sm:$0xf]
      %v1568 = vld [vmem:[%s1267 + $0x1c] sm:$0x1]
      %v1569 = vld [vmem:[%s1267 + $0x20] sm:$0xf]
      %v1570 = vld [vmem:[%s1267 + $0x24] sm:$0x1]
      %v1571 = vld [vmem:[%s1267 + $0x28] sm:$0xf]
      %v1572 = vld [vmem:[%s1267 + $0x2c] sm:$0x1]
      %v1573 = vld [vmem:[%s1267 + $0x30] sm:$0xf]
      %v1574 = vld [vmem:[%s1267 + $0x34] sm:$0x1]
      %v1575 = vld [vmem:[%s1267 + $0x38] sm:$0xf]
      %v1576 = vld [vmem:[%s1267 + $0x3c] sm:$0x1]
      %v1578 = vshrl.u32 %v1561, 16
      %v1580 = vrot.slane %v1578, 4
      %v1581 = vshll.u32 %v1561, 16
      %v1583 = vrot.slane %v1581, 5
      %v1584 = vor.u32 %v1580, %v1583
      %v1585 = vrot.slane %v1584, 4
      %v1587 = vshll.u32 %v1562, 16
      %v1589 = vrot.slane %v1587, 5
      %v1590 = vsel %vm472, %v1585, %v1589
      %v1592 = vshrl.u32 %v1563, 16
      %v1594 = vrot.slane %v1592, 4
      %v1595 = vshll.u32 %v1563, 16
      %v1597 = vrot.slane %v1595, 5
      %v1598 = vor.u32 %v1594, %v1597
      %v1599 = vrot.slane %v1598, 4
      %v1601 = vshll.u32 %v1564, 16
      %v1603 = vrot.slane %v1601, 5
      %v1604 = vsel %vm472, %v1599, %v1603
      %v1606 = vshrl.u32 %v1565, 16
      %v1608 = vrot.slane %v1606, 4
      %v1609 = vshll.u32 %v1565, 16
      %v1611 = vrot.slane %v1609, 5
      %v1612 = vor.u32 %v1608, %v1611
      %v1613 = vrot.slane %v1612, 4
      %v1615 = vshll.u32 %v1566, 16
      %v1617 = vrot.slane %v1615, 5
      %v1618 = vsel %vm472, %v1613, %v1617
      %v1620 = vshrl.u32 %v1567, 16
      %v1622 = vrot.slane %v1620, 4
      %v1623 = vshll.u32 %v1567, 16
      %v1625 = vrot.slane %v1623, 5
      %v1626 = vor.u32 %v1622, %v1625
      %v1627 = vrot.slane %v1626, 4
      %v1629 = vshll.u32 %v1568, 16
      %v1631 = vrot.slane %v1629, 5
      %v1632 = vsel %vm472, %v1627, %v1631
      %v1634 = vshrl.u32 %v1569, 16
      %v1636 = vrot.slane %v1634, 4
      %v1637 = vshll.u32 %v1569, 16
      %v1639 = vrot.slane %v1637, 5
      %v1640 = vor.u32 %v1636, %v1639
      %v1641 = vrot.slane %v1640, 4
      %v1643 = vshll.u32 %v1570, 16
      %v1645 = vrot.slane %v1643, 5
      %v1646 = vsel %vm472, %v1641, %v1645
      %v1648 = vshrl.u32 %v1571, 16
      %v1650 = vrot.slane %v1648, 4
      %v1651 = vshll.u32 %v1571, 16
      %v1653 = vrot.slane %v1651, 5
      %v1654 = vor.u32 %v1650, %v1653
      %v1655 = vrot.slane %v1654, 4
      %v1657 = vshll.u32 %v1572, 16
      %v1659 = vrot.slane %v1657, 5
      %v1660 = vsel %vm472, %v1655, %v1659
      %v1662 = vshrl.u32 %v1573, 16
      %v1664 = vrot.slane %v1662, 4
      %v1665 = vshll.u32 %v1573, 16
      %v1667 = vrot.slane %v1665, 5
      %v1668 = vor.u32 %v1664, %v1667
      %v1669 = vrot.slane %v1668, 4
      %v1671 = vshll.u32 %v1574, 16
      %v1673 = vrot.slane %v1671, 5
      %v1674 = vsel %vm472, %v1669, %v1673
      %v1676 = vshrl.u32 %v1575, 16
      %v1678 = vrot.slane %v1676, 4
      %v1679 = vshll.u32 %v1575, 16
      %v1681 = vrot.slane %v1679, 5
      %v1682 = vor.u32 %v1678, %v1681
      %v1683 = vrot.slane %v1682, 4
      %v1685 = vshll.u32 %v1576, 16
      %v1687 = vrot.slane %v1685, 5
      %v1688 = vsel %vm472, %v1683, %v1687
      %s1689 = scalar_lea.vmem %s1, 256
      %v1690 = vld [vmem:[%s1689] sm:$0xf]
      %v1691 = vld [vmem:[%s1689 + $0x4] sm:$0xf]
      %v1692 = vld [vmem:[%s1689 + $0x8] sm:$0xf]
      %v1693 = vld [vmem:[%s1689 + $0xc] sm:$0xf]
      %v1694 = vld [vmem:[%s1689 + $0x10] sm:$0xf]
      %v1695 = vld [vmem:[%s1689 + $0x14] sm:$0xf]
      %v1696 = vld [vmem:[%s1689 + $0x18] sm:$0xf]
      %v1697 = vld [vmem:[%s1689 + $0x1c] sm:$0xf]
      %v1698 = vunpack.c.l.b16 %v1590
      %v1699 = vunpack.c.l.b16 %v1604
      %v1700 = vunpack.c.l.b16 %v1618
      %v1701 = vunpack.c.l.b16 %v1632
      %v1702 = vunpack.c.l.b16 %v1646
      %v1703 = vunpack.c.l.b16 %v1660
      %v1704 = vunpack.c.l.b16 %v1674
      %v1705 = vunpack.c.l.b16 %v1688
      %v1706 = vpack.c.b16 %v1699, %v1698
      %v1707 = vpack.c.b16 %v1701, %v1700
      %v1708 = vpack.c.b16 %v1703, %v1702
      %v1709 = vpack.c.b16 %v1705, %v1704
      %v1718 = vunpack.c.l.b16 %v1690
      %v1719 = vunpack.c.l.b16 %v1691
      %v1720 = vunpack.c.l.b16 %v1692
      %v1721 = vunpack.c.l.b16 %v1693
      %v1722 = vunpack.c.l.b16 %v1694
      %v1723 = vunpack.c.l.b16 %v1695
      %v1724 = vunpack.c.l.b16 %v1696
      %v1725 = vunpack.c.l.b16 %v1697
      %v1726 = vpack.c.b16 %v1719, %v1718
      %v1727 = vpack.c.b16 %v1721, %v1720
      %v1728 = vpack.c.b16 %v1723, %v1722
      %v1729 = vpack.c.b16 %v1725, %v1724
      %v1735 = vsel %vm255, %v1706, 0
      %v1738 = vsel %vm255, %v1707, 0
      %v1741 = vsel %vm255, %v1708, 0
      %v1744 = vsel %vm255, %v1709, 0
      %1746 = vmatprep.subr.bf16.mxu0 0
      %1747 = vmatpush1.bf16.msra.mxu0 %v1726
      %1748 = vmatprep.subr.bf16.mxu0 0
      %1749 = vmatpush1.bf16.msra.mxu0 %v1727
      %1750 = vmatprep.subr.bf16.mxu0 0
      %1751 = vmatpush1.bf16.msra.mxu0 %v1728
      %1752 = vmatprep.subr.bf16.mxu0 0
      %1753 = vmatpush1.bf16.msra.mxu0 %v1729
      %1754 = vmatprep.subr.bf16.mxu0 0
      %1755 = vmatpush1.bf16.msra.mxu0 0
      %1756 = vmatprep.subr.bf16.mxu0 0
      %1757 = vmatpush1.bf16.msra.mxu0 0
      %1758 = vmatprep.subr.bf16.mxu0 0
      %1759 = vmatpush1.bf16.msra.mxu0 0
      %1760 = vmatprep.subr.bf16.mxu0 0
      %1761 = vmatpush1.bf16.msra.mxu0 0
      %1762 = vmatprep.subr.bf16.mxu0 0
      %1763 = vmatpush1.bf16.msra.mxu0 0
      %1764 = vmatprep.subr.bf16.mxu0 0
      %1765 = vmatpush1.bf16.msra.mxu0 0
      %1766 = vmatprep.subr.bf16.mxu0 0
      %1767 = vmatpush1.bf16.msra.mxu0 0
      %1768 = vmatprep.subr.bf16.mxu0 0
      %1769 = vmatpush1.bf16.msra.mxu0 0
      %1770 = vmatprep.subr.bf16.mxu0 0
      %1771 = vmatpush1.bf16.msra.mxu0 0
      %1772 = vmatprep.subr.bf16.mxu0 0
      %1773 = vmatpush1.bf16.msra.mxu0 0
      %1774 = vmatprep.subr.bf16.mxu0 0
      %1775 = vmatpush1.bf16.msra.mxu0 0
      %1776 = vmatprep.subr.bf16.mxu0 0
      %1777 = vmatpush1.bf16.msra.mxu0 0
      %1778 = vmatprep.mubr.bf16.mxu0 0
      %1779 = vmatmul.mubr.bf16.gmra.mrb[0].mxu0 %v1735
      %v1780 = vpop.f32.mrb[0].mxu0
      %v1781 = vadd.f32 0.0, %v1780
      %v1782 = vpop.f32.mrb[0].mxu0
      %v1783 = vpop.f32.mrb[0].mxu0
      %v1784 = vadd.f32 0.0, %v1783
      %v1785 = vpop.f32.mrb[0].mxu0
      %1786 = vmatprep.mubr.bf16.mxu0 0
      %1787 = vmatmul.mubr.bf16.gmra.mrb[0].mxu0 %v1738
      %v1788 = vpop.f32.mrb[0].mxu0
      %v1789 = vadd.f32 0.0, %v1788
      %v1790 = vpop.f32.mrb[0].mxu0
      %v1791 = vpop.f32.mrb[0].mxu0
      %v1792 = vadd.f32 0.0, %v1791
      %v1793 = vpop.f32.mrb[0].mxu0
      %1794 = vmatprep.mubr.bf16.mxu0 0
      %1795 = vmatmul.mubr.bf16.gmra.mrb[0].mxu0 %v1741
      %v1796 = vpop.f32.mrb[0].mxu0
      %v1797 = vadd.f32 0.0, %v1796
      %v1798 = vpop.f32.mrb[0].mxu0
      %v1799 = vpop.f32.mrb[0].mxu0
      %v1800 = vadd.f32 0.0, %v1799
      %v1801 = vpop.f32.mrb[0].mxu0
      %1802 = vmatprep.mubr.bf16.mxu0 0
      %1803 = vmatmul.mubr.bf16.gmra.mrb[0].mxu0 %v1744
      %v1804 = vpop.f32.mrb[0].mxu0
      %v1805 = vadd.f32 0.0, %v1804
      %v1806 = vpop.f32.mrb[0].mxu0
      %v1807 = vpop.f32.mrb[0].mxu0
      %v1808 = vadd.f32 0.0, %v1807
      %v1809 = vpop.f32.mrb[0].mxu0
      %1810 = vdwg.mxu0
      %v1811 = vadd.f32 %v1553, %v1781
      %v1812 = vadd.f32 %v1554, %v1784
      %v1813 = vadd.f32 %v1555, %v1789
      %v1814 = vadd.f32 %v1556, %v1792
      %v1815 = vadd.f32 %v1557, %v1797
      %v1816 = vadd.f32 %v1558, %v1800
      %v1817 = vadd.f32 %v1559, %v1805
      %v1818 = vadd.f32 %v1560, %v1808
      %v1819 = vmax.f32 %v1811, 0.0
      %v1820 = vmax.f32 %v1812, 0.0
      %v1821 = vmax.f32 %v1813, 0.0
      %v1822 = vmax.f32 %v1814, 0.0
      %v1823 = vmax.f32 %v1815, 0.0
      %v1824 = vmax.f32 %v1816, 0.0
      %v1825 = vmax.f32 %v1817, 0.0
      %v1826 = vmax.f32 %v1818, 0.0
      %v1827 = vpack.c.bf16 %v1820, %v1819
      %v1828 = vpack.c.bf16 %v1822, %v1821
      %v1829 = vpack.c.bf16 %v1824, %v1823
      %v1830 = vpack.c.bf16 %v1826, %v1825
      %1831 = vst [vmem:[#allocation2] sm:$0xf] 0
      %1832 = vst [vmem:[#allocation2 + $0x4] sm:$0x1] 0
      %1833 = vst [vmem:[#allocation2 + $0x8] sm:$0xf] 0
      %1834 = vst [vmem:[#allocation2 + $0xc] sm:$0x1] 0
      %1835 = vst [vmem:[#allocation2 + $0x10] sm:$0xf] 0
      %1836 = vst [vmem:[#allocation2 + $0x14] sm:$0x1] 0
      %1837 = vst [vmem:[#allocation2 + $0x18] sm:$0xf] 0
      %1838 = vst [vmem:[#allocation2 + $0x1c] sm:$0x1] 0
      %1839 = vst [vmem:[#allocation2 + $0x20] sm:$0xf] 0
      %1840 = vst [vmem:[#allocation2 + $0x24] sm:$0x1] 0
      %1841 = vst [vmem:[#allocation2 + $0x28] sm:$0xf] 0
      %1842 = vst [vmem:[#allocation2 + $0x2c] sm:$0x1] 0
      %1843 = vst [vmem:[#allocation2 + $0x30] sm:$0xf] 0
      %1844 = vst [vmem:[#allocation2 + $0x34] sm:$0x1] 0
      %1845 = vst [vmem:[#allocation2 + $0x38] sm:$0xf] 0
      %1846 = vst [vmem:[#allocation2 + $0x3c] sm:$0x1] 0
      %1847 = vst [vmem:[#allocation2 + $0x40] sm:$0xf] 0
      %1848 = vst [vmem:[#allocation2 + $0x44] sm:$0x1] 0
      %1849 = vst [vmem:[#allocation2 + $0x48] sm:$0xf] 0
      %1850 = vst [vmem:[#allocation2 + $0x4c] sm:$0x1] 0
      %v1855 = vunpack.c.l.b16 %v1827
      %v1856 = vunpack.c.h.b16 %v1827
      %v1857 = vunpack.c.l.b16 %v1828
      %v1858 = vunpack.c.h.b16 %v1828
      %v1859 = vunpack.c.l.b16 %v1829
      %v1860 = vunpack.c.h.b16 %v1829
      %v1861 = vunpack.c.l.b16 %v1830
      %v1862 = vunpack.c.h.b16 %v1830
      %v1863 = vpack.c.b16 %v1855, %v1855
      %v1864 = vpack.c.b16 %v1856, %v1856
      %v1865 = vpack.c.b16 %v1857, %v1857
      %v1866 = vpack.c.b16 %v1858, %v1858
      %v1867 = vpack.c.b16 %v1859, %v1859
      %v1868 = vpack.c.b16 %v1860, %v1860
      %v1869 = vpack.c.b16 %v1861, %v1861
      %v1870 = vpack.c.b16 %v1862, %v1862
      %v1872 = vshrl.u32 %v1863, 16
      %v1874 = vrot.slane %v1872, 7
      %v1875 = vshll.u32 %v1863, 16
      %v1877 = vor.u32 %v1874, %v1875
      %v1878 = vrot.slane %v1874, 4
      %v1880 = vshrl.u32 %v1864, 16
      %v1882 = vrot.slane %v1880, 7
      %v1883 = vshll.u32 %v1864, 16
      %v1885 = vor.u32 %v1882, %v1883
      %v1886 = vrot.slane %v1882, 4
      %v1888 = vshrl.u32 %v1865, 16
      %v1890 = vrot.slane %v1888, 7
      %v1891 = vshll.u32 %v1865, 16
      %v1893 = vor.u32 %v1890, %v1891
      %v1894 = vrot.slane %v1890, 4
      %v1896 = vshrl.u32 %v1866, 16
      %v1898 = vrot.slane %v1896, 7
      %v1899 = vshll.u32 %v1866, 16
      %v1901 = vor.u32 %v1898, %v1899
      %v1902 = vrot.slane %v1898, 4
      %v1904 = vshrl.u32 %v1867, 16
      %v1906 = vrot.slane %v1904, 7
      %v1907 = vshll.u32 %v1867, 16
      %v1909 = vor.u32 %v1906, %v1907
      %v1910 = vrot.slane %v1906, 4
      %v1912 = vshrl.u32 %v1868, 16
      %v1914 = vrot.slane %v1912, 7
      %v1915 = vshll.u32 %v1868, 16
      %v1917 = vor.u32 %v1914, %v1915
      %v1918 = vrot.slane %v1914, 4
      %v1920 = vshrl.u32 %v1869, 16
      %v1922 = vrot.slane %v1920, 7
      %v1923 = vshll.u32 %v1869, 16
      %v1925 = vor.u32 %v1922, %v1923
      %v1926 = vrot.slane %v1922, 4
      %v1928 = vshrl.u32 %v1870, 16
      %v1930 = vrot.slane %v1928, 7
      %v1931 = vshll.u32 %v1870, 16
      %v1933 = vor.u32 %v1930, %v1931
      %v1934 = vrot.slane %v1930, 4
      %s1951 = scalar_lea.vmem [#allocation2], 8
      %vm1952 = vcmask 1043456
      %vm1953 = vsmask.f32 7938
      %vm1954 = vmand %vm1952, %vm1953
      %v1955 = vld [vmem:[%s1951] sm:$0xf]
      %v1956 = vsel %vm1954, %v1877, %v1955
      %1957 = vst [vmem:[%s1951] sm:$0xf] %v1956
      %vm1958 = vcmask 1040384
      %vm1959 = vsmask.f32 256
      %vm1960 = vmand %vm1958, %vm1959
      %v1961 = vld [vmem:[%s1951 + $0x4] sm:$0x1]
      %v1962 = vsel %vm1960, %v1878, %v1961
      %1963 = vst [vmem:[%s1951 + $0x4] sm:$0x1] %v1962
      %v1964 = vld [vmem:[%s1951 + $0x8] sm:$0xf]
      %v1965 = vsel %vm1954, %v1885, %v1964
      %1966 = vst [vmem:[%s1951 + $0x8] sm:$0xf] %v1965
      %v1967 = vld [vmem:[%s1951 + $0xc] sm:$0x1]
      %v1968 = vsel %vm1960, %v1886, %v1967
      %1969 = vst [vmem:[%s1951 + $0xc] sm:$0x1] %v1968
      %v1970 = vld [vmem:[%s1951 + $0x10] sm:$0xf]
      %v1971 = vsel %vm1954, %v1893, %v1970
      %1972 = vst [vmem:[%s1951 + $0x10] sm:$0xf] %v1971
      %v1973 = vld [vmem:[%s1951 + $0x14] sm:$0x1]
      %v1974 = vsel %vm1960, %v1894, %v1973
      %1975 = vst [vmem:[%s1951 + $0x14] sm:$0x1] %v1974
      %v1976 = vld [vmem:[%s1951 + $0x18] sm:$0xf]
      %v1977 = vsel %vm1954, %v1901, %v1976
      %1978 = vst [vmem:[%s1951 + $0x18] sm:$0xf] %v1977
      %v1979 = vld [vmem:[%s1951 + $0x1c] sm:$0x1]
      %v1980 = vsel %vm1960, %v1902, %v1979
      %1981 = vst [vmem:[%s1951 + $0x1c] sm:$0x1] %v1980
      %v1982 = vld [vmem:[%s1951 + $0x20] sm:$0xf]
      %v1983 = vsel %vm1954, %v1909, %v1982
      %1984 = vst [vmem:[%s1951 + $0x20] sm:$0xf] %v1983
      %v1985 = vld [vmem:[%s1951 + $0x24] sm:$0x1]
      %v1986 = vsel %vm1960, %v1910, %v1985
      %1987 = vst [vmem:[%s1951 + $0x24] sm:$0x1] %v1986
      %v1988 = vld [vmem:[%s1951 + $0x28] sm:$0xf]
      %v1989 = vsel %vm1954, %v1917, %v1988
      %1990 = vst [vmem:[%s1951 + $0x28] sm:$0xf] %v1989
      %v1991 = vld [vmem:[%s1951 + $0x2c] sm:$0x1]
      %v1992 = vsel %vm1960, %v1918, %v1991
      %1993 = vst [vmem:[%s1951 + $0x2c] sm:$0x1] %v1992
      %v1994 = vld [vmem:[%s1951 + $0x30] sm:$0xf]
      %v1995 = vsel %vm1954, %v1925, %v1994
      %1996 = vst [vmem:[%s1951 + $0x30] sm:$0xf] %v1995
      %v1997 = vld [vmem:[%s1951 + $0x34] sm:$0x1]
      %v1998 = vsel %vm1960, %v1926, %v1997
      %1999 = vst [vmem:[%s1951 + $0x34] sm:$0x1] %v1998
      %v2000 = vld [vmem:[%s1951 + $0x38] sm:$0xf]
      %v2001 = vsel %vm1954, %v1933, %v2000
      %2002 = vst [vmem:[%s1951 + $0x38] sm:$0xf] %v2001
      %v2003 = vld [vmem:[%s1951 + $0x3c] sm:$0x1]
      %v2004 = vsel %vm1960, %v1934, %v2003
      %2005 = vst [vmem:[%s1951 + $0x3c] sm:$0x1] %v2004
      %v2006 = vld [vmem:[#allocation2] sm:$0xf]
      %v2007 = vld [vmem:[#allocation2 + $0x8] sm:$0xf]
      %v2008 = vld [vmem:[#allocation2 + $0x10] sm:$0xf]
      %v2009 = vld [vmem:[#allocation2 + $0x18] sm:$0xf]
      %v2010 = vld [vmem:[#allocation2 + $0x20] sm:$0xf]
      %v2011 = vld [vmem:[#allocation2 + $0x28] sm:$0xf]
      %v2012 = vld [vmem:[#allocation2 + $0x30] sm:$0xf]
      %v2013 = vld [vmem:[#allocation2 + $0x38] sm:$0xf]
      %v2014 = vld [vmem:[%s2] sm:$0xff]
      %v2015 = vld [vmem:[%s2 + $0x8] sm:$0xff]
      %v2016 = vld [vmem:[%s2 + $0x10] sm:$0xff]
      %v2017 = vld [vmem:[%s2 + $0x18] sm:$0xff]
      %v2018 = vld [vmem:[%s2 + $0x20] sm:$0xff]
      %v2019 = vld [vmem:[%s2 + $0x28] sm:$0xff]
      %v2020 = vld [vmem:[%s2 + $0x30] sm:$0xff]
      %v2021 = vld [vmem:[%s2 + $0x38] sm:$0xff]
      %v2022 = vld [vmem:[%s2 + $0x40] sm:$0xff]
      %v2023 = vld [vmem:[%s2 + $0x48] sm:$0xff]
      %v2024 = vld [vmem:[%s2 + $0x50] sm:$0xff]
      %v2025 = vld [vmem:[%s2 + $0x58] sm:$0xff]
      %v2026 = vld [vmem:[%s2 + $0x60] sm:$0xff]
      %v2027 = vld [vmem:[%s2 + $0x68] sm:$0xff]
      %v2028 = vld [vmem:[%s2 + $0x70] sm:$0xff]
      %v2029 = vld [vmem:[%s2 + $0x78] sm:$0xff]
      %v2030 = vld [vmem:[#allocation2 + $0x4] sm:$0x1]
      %v2031 = vld [vmem:[#allocation2 + $0xc] sm:$0x1]
      %v2032 = vld [vmem:[#allocation2 + $0x14] sm:$0x1]
      %v2033 = vld [vmem:[#allocation2 + $0x1c] sm:$0x1]
      %v2034 = vld [vmem:[#allocation2 + $0x24] sm:$0x1]
      %v2035 = vld [vmem:[#allocation2 + $0x2c] sm:$0x1]
      %v2036 = vld [vmem:[#allocation2 + $0x34] sm:$0x1]
      %v2037 = vld [vmem:[#allocation2 + $0x3c] sm:$0x1]
      %v2039 = vshrl.u32 %v2006, 16
      %v2041 = vrot.slane %v2039, 4
      %v2042 = vshll.u32 %v2006, 16
      %v2044 = vrot.slane %v2042, 5
      %v2045 = vor.u32 %v2041, %v2044
      %v2046 = vrot.slane %v2045, 4
      %v2048 = vshll.u32 %v2030, 16
      %v2050 = vrot.slane %v2048, 5
      %v2051 = vsel %vm472, %v2046, %v2050
      %v2053 = vshrl.u32 %v2007, 16
      %v2055 = vrot.slane %v2053, 4
      %v2056 = vshll.u32 %v2007, 16
      %v2058 = vrot.slane %v2056, 5
      %v2059 = vor.u32 %v2055, %v2058
      %v2060 = vrot.slane %v2059, 4
      %v2062 = vshll.u32 %v2031, 16
      %v2064 = vrot.slane %v2062, 5
      %v2065 = vsel %vm472, %v2060, %v2064
      %v2067 = vshrl.u32 %v2008, 16
      %v2069 = vrot.slane %v2067, 4
      %v2070 = vshll.u32 %v2008, 16
      %v2072 = vrot.slane %v2070, 5
      %v2073 = vor.u32 %v2069, %v2072
      %v2074 = vrot.slane %v2073, 4
      %v2076 = vshll.u32 %v2032, 16
      %v2078 = vrot.slane %v2076, 5
      %v2079 = vsel %vm472, %v2074, %v2078
      %v2081 = vshrl.u32 %v2009, 16
      %v2083 = vrot.slane %v2081, 4
      %v2084 = vshll.u32 %v2009, 16
      %v2086 = vrot.slane %v2084, 5
      %v2087 = vor.u32 %v2083, %v2086
      %v2088 = vrot.slane %v2087, 4
      %v2090 = vshll.u32 %v2033, 16
      %v2092 = vrot.slane %v2090, 5
      %v2093 = vsel %vm472, %v2088, %v2092
      %v2095 = vshrl.u32 %v2010, 16
      %v2097 = vrot.slane %v2095, 4
      %v2098 = vshll.u32 %v2010, 16
      %v2100 = vrot.slane %v2098, 5
      %v2101 = vor.u32 %v2097, %v2100
      %v2102 = vrot.slane %v2101, 4
      %v2104 = vshll.u32 %v2034, 16
      %v2106 = vrot.slane %v2104, 5
      %v2107 = vsel %vm472, %v2102, %v2106
      %v2109 = vshrl.u32 %v2011, 16
      %v2111 = vrot.slane %v2109, 4
      %v2112 = vshll.u32 %v2011, 16
      %v2114 = vrot.slane %v2112, 5
      %v2115 = vor.u32 %v2111, %v2114
      %v2116 = vrot.slane %v2115, 4
      %v2118 = vshll.u32 %v2035, 16
      %v2120 = vrot.slane %v2118, 5
      %v2121 = vsel %vm472, %v2116, %v2120
      %v2123 = vshrl.u32 %v2012, 16
      %v2125 = vrot.slane %v2123, 4
      %v2126 = vshll.u32 %v2012, 16
      %v2128 = vrot.slane %v2126, 5
      %v2129 = vor.u32 %v2125, %v2128
      %v2130 = vrot.slane %v2129, 4
      %v2132 = vshll.u32 %v2036, 16
      %v2134 = vrot.slane %v2132, 5
      %v2135 = vsel %vm472, %v2130, %v2134
      %v2137 = vshrl.u32 %v2013, 16
      %v2139 = vrot.slane %v2137, 4
      %v2140 = vshll.u32 %v2013, 16
      %v2142 = vrot.slane %v2140, 5
      %v2143 = vor.u32 %v2139, %v2142
      %v2144 = vrot.slane %v2143, 4
      %v2146 = vshll.u32 %v2037, 16
      %v2148 = vrot.slane %v2146, 5
      %v2149 = vsel %vm472, %v2144, %v2148
      %s2150 = scalar_lea.vmem %s2, 128
      %v2151 = vld [vmem:[%s2150] sm:$0xff]
      %v2152 = vld [vmem:[%s2150 + $0x8] sm:$0xff]
      %v2153 = vld [vmem:[%s2150 + $0x10] sm:$0xff]
      %v2154 = vld [vmem:[%s2150 + $0x18] sm:$0xff]
      %v2155 = vld [vmem:[%s2150 + $0x20] sm:$0xff]
      %v2156 = vld [vmem:[%s2150 + $0x28] sm:$0xff]
      %v2157 = vld [vmem:[%s2150 + $0x30] sm:$0xff]
      %v2158 = vld [vmem:[%s2150 + $0x38] sm:$0xff]
      %v2159 = vld [vmem:[%s2150 + $0x40] sm:$0xff]
      %v2160 = vld [vmem:[%s2150 + $0x48] sm:$0xff]
      %v2161 = vld [vmem:[%s2150 + $0x50] sm:$0xff]
      %v2162 = vld [vmem:[%s2150 + $0x58] sm:$0xff]
      %v2163 = vld [vmem:[%s2150 + $0x60] sm:$0xff]
      %v2164 = vld [vmem:[%s2150 + $0x68] sm:$0xff]
      %v2165 = vld [vmem:[%s2150 + $0x70] sm:$0xff]
      %v2166 = vld [vmem:[%s2150 + $0x78] sm:$0xff]
      %v2167 = vunpack.c.l.b16 %v2051
      %v2168 = vunpack.c.l.b16 %v2065
      %v2169 = vunpack.c.l.b16 %v2079
      %v2170 = vunpack.c.l.b16 %v2093
      %v2171 = vunpack.c.l.b16 %v2107
      %v2172 = vunpack.c.l.b16 %v2121
      %v2173 = vunpack.c.l.b16 %v2135
      %v2174 = vunpack.c.l.b16 %v2149
      %v2175 = vpack.c.b16 %v2168, %v2167
      %v2176 = vpack.c.b16 %v2170, %v2169
      %v2177 = vpack.c.b16 %v2172, %v2171
      %v2178 = vpack.c.b16 %v2174, %v2173
      %v2199 = vunpack.c.l.b16 %v2151
      %v2200 = vunpack.c.h.b16 %v2151
      %v2201 = vunpack.c.l.b16 %v2152
      %v2202 = vunpack.c.h.b16 %v2152
      %v2203 = vunpack.c.l.b16 %v2153
      %v2204 = vunpack.c.h.b16 %v2153
      %v2205 = vunpack.c.l.b16 %v2154
      %v2206 = vunpack.c.h.b16 %v2154
      %v2207 = vunpack.c.l.b16 %v2155
      %v2208 = vunpack.c.h.b16 %v2155
      %v2209 = vunpack.c.l.b16 %v2156
      %v2210 = vunpack.c.h.b16 %v2156
      %v2211 = vunpack.c.l.b16 %v2157
      %v2212 = vunpack.c.h.b16 %v2157
      %v2213 = vunpack.c.l.b16 %v2158
      %v2214 = vunpack.c.h.b16 %v2158
      %v2215 = vunpack.c.l.b16 %v2159
      %v2216 = vunpack.c.h.b16 %v2159
      %v2217 = vunpack.c.l.b16 %v2160
      %v2218 = vunpack.c.h.b16 %v2160
      %v2219 = vunpack.c.l.b16 %v2161
      %v2220 = vunpack.c.h.b16 %v2161
      %v2221 = vunpack.c.l.b16 %v2162
      %v2222 = vunpack.c.h.b16 %v2162
      %v2223 = vunpack.c.l.b16 %v2163
      %v2224 = vunpack.c.h.b16 %v2163
      %v2225 = vunpack.c.l.b16 %v2164
      %v2226 = vunpack.c.h.b16 %v2164
      %v2227 = vunpack.c.l.b16 %v2165
      %v2228 = vunpack.c.h.b16 %v2165
      %v2229 = vunpack.c.l.b16 %v2166
      %v2230 = vunpack.c.h.b16 %v2166
      %v2231 = vpack.c.b16 %v2201, %v2199
      %v2232 = vpack.c.b16 %v2202, %v2200
      %v2233 = vpack.c.b16 %v2205, %v2203
      %v2234 = vpack.c.b16 %v2206, %v2204
      %v2235 = vpack.c.b16 %v2209, %v2207
      %v2236 = vpack.c.b16 %v2210, %v2208
      %v2237 = vpack.c.b16 %v2213, %v2211
      %v2238 = vpack.c.b16 %v2214, %v2212
      %v2239 = vpack.c.b16 %v2217, %v2215
      %v2240 = vpack.c.b16 %v2218, %v2216
      %v2241 = vpack.c.b16 %v2221, %v2219
      %v2242 = vpack.c.b16 %v2222, %v2220
      %v2243 = vpack.c.b16 %v2225, %v2223
      %v2244 = vpack.c.b16 %v2226, %v2224
      %v2245 = vpack.c.b16 %v2229, %v2227
      %v2246 = vpack.c.b16 %v2230, %v2228
      %2263 = vmatprep.subr.bf16.mxu0 %v2232
      %2264 = vmatpush1.bf16.msra.mxu0 %v2231
      %2265 = vmatprep.subr.bf16.mxu0 %v2234
      %2266 = vmatpush1.bf16.msra.mxu0 %v2233
      %2267 = vmatprep.subr.bf16.mxu0 %v2236
      %2268 = vmatpush1.bf16.msra.mxu0 %v2235
      %2269 = vmatprep.subr.bf16.mxu0 %v2238
      %2270 = vmatpush1.bf16.msra.mxu0 %v2237
      %2271 = vmatprep.subr.bf16.mxu0 %v2240
      %2272 = vmatpush1.bf16.msra.mxu0 %v2239
      %2273 = vmatprep.subr.bf16.mxu0 %v2242
      %2274 = vmatpush1.bf16.msra.mxu0 %v2241
      %2275 = vmatprep.subr.bf16.mxu0 %v2244
      %2276 = vmatpush1.bf16.msra.mxu0 %v2243
      %2277 = vmatprep.subr.bf16.mxu0 %v2246
      %2278 = vmatpush1.bf16.msra.mxu0 %v2245
      %2279 = vmatprep.subr.bf16.mxu0 0
      %2280 = vmatpush1.bf16.msra.mxu0 0
      %2281 = vmatprep.subr.bf16.mxu0 0
      %2282 = vmatpush1.bf16.msra.mxu0 0
      %2283 = vmatprep.subr.bf16.mxu0 0
      %2284 = vmatpush1.bf16.msra.mxu0 0
      %2285 = vmatprep.subr.bf16.mxu0 0
      %2286 = vmatpush1.bf16.msra.mxu0 0
      %2287 = vmatprep.subr.bf16.mxu0 0
      %2288 = vmatpush1.bf16.msra.mxu0 0
      %2289 = vmatprep.subr.bf16.mxu0 0
      %2290 = vmatpush1.bf16.msra.mxu0 0
      %2291 = vmatprep.subr.bf16.mxu0 0
      %2292 = vmatpush1.bf16.msra.mxu0 0
      %2293 = vmatprep.subr.bf16.mxu0 0
      %2294 = vmatpush1.bf16.msra.mxu0 0
      %2295 = vmatprep.mubr.bf16.mxu0 0
      %2296 = vmatmul.mubr.bf16.gmra.mrb[0].mxu0 %v2175
      %v2297 = vpop.f32.mrb[0].mxu0
      %v2298 = vadd.f32 0.0, %v2297
      %v2299 = vpop.f32.mrb[0].mxu0
      %v2300 = vadd.f32 0.0, %v2299
      %v2301 = vpop.f32.mrb[0].mxu0
      %v2302 = vadd.f32 0.0, %v2301
      %v2303 = vpop.f32.mrb[0].mxu0
      %v2304 = vadd.f32 0.0, %v2303
      %2305 = vmatprep.mubr.bf16.mxu0 0
      %2306 = vmatmul.mubr.bf16.gmra.mrb[0].mxu0 %v2176
      %v2307 = vpop.f32.mrb[0].mxu0
      %v2308 = vadd.f32 0.0, %v2307
      %v2309 = vpop.f32.mrb[0].mxu0
      %v2310 = vadd.f32 0.0, %v2309
      %v2311 = vpop.f32.mrb[0].mxu0
      %v2312 = vadd.f32 0.0, %v2311
      %v2313 = vpop.f32.mrb[0].mxu0
      %v2314 = vadd.f32 0.0, %v2313
      %2315 = vmatprep.mubr.bf16.mxu0 0
      %2316 = vmatmul.mubr.bf16.gmra.mrb[0].mxu0 %v2177
      %v2317 = vpop.f32.mrb[0].mxu0
      %v2318 = vadd.f32 0.0, %v2317
      %v2319 = vpop.f32.mrb[0].mxu0
      %v2320 = vadd.f32 0.0, %v2319
      %v2321 = vpop.f32.mrb[0].mxu0
      %v2322 = vadd.f32 0.0, %v2321
      %v2323 = vpop.f32.mrb[0].mxu0
      %v2324 = vadd.f32 0.0, %v2323
      %2325 = vmatprep.mubr.bf16.mxu0 0
      %2326 = vmatmul.mubr.bf16.gmra.mrb[0].mxu0 %v2178
      %v2327 = vpop.f32.mrb[0].mxu0
      %v2328 = vadd.f32 0.0, %v2327
      %v2329 = vpop.f32.mrb[0].mxu0
      %v2330 = vadd.f32 0.0, %v2329
      %v2331 = vpop.f32.mrb[0].mxu0
      %v2332 = vadd.f32 0.0, %v2331
      %v2333 = vpop.f32.mrb[0].mxu0
      %v2334 = vadd.f32 0.0, %v2333
      %2335 = vdwg.mxu0
      %v2344 = vunpack.c.l.b16 %v2006
      %v2345 = vunpack.c.l.b16 %v2007
      %v2346 = vunpack.c.l.b16 %v2008
      %v2347 = vunpack.c.l.b16 %v2009
      %v2348 = vunpack.c.l.b16 %v2010
      %v2349 = vunpack.c.l.b16 %v2011
      %v2350 = vunpack.c.l.b16 %v2012
      %v2351 = vunpack.c.l.b16 %v2013
      %v2352 = vpack.c.b16 %v2345, %v2344
      %v2353 = vpack.c.b16 %v2347, %v2346
      %v2354 = vpack.c.b16 %v2349, %v2348
      %v2355 = vpack.c.b16 %v2351, %v2350
      %v2376 = vunpack.c.l.b16 %v2014
      %v2377 = vunpack.c.h.b16 %v2014
      %v2378 = vunpack.c.l.b16 %v2015
      %v2379 = vunpack.c.h.b16 %v2015
      %v2380 = vunpack.c.l.b16 %v2016
      %v2381 = vunpack.c.h.b16 %v2016
      %v2382 = vunpack.c.l.b16 %v2017
      %v2383 = vunpack.c.h.b16 %v2017
      %v2384 = vunpack.c.l.b16 %v2018
      %v2385 = vunpack.c.h.b16 %v2018
      %v2386 = vunpack.c.l.b16 %v2019
      %v2387 = vunpack.c.h.b16 %v2019
      %v2388 = vunpack.c.l.b16 %v2020
      %v2389 = vunpack.c.h.b16 %v2020
      %v2390 = vunpack.c.l.b16 %v2021
      %v2391 = vunpack.c.h.b16 %v2021
      %v2392 = vunpack.c.l.b16 %v2022
      %v2393 = vunpack.c.h.b16 %v2022
      %v2394 = vunpack.c.l.b16 %v2023
      %v2395 = vunpack.c.h.b16 %v2023
      %v2396 = vunpack.c.l.b16 %v2024
      %v2397 = vunpack.c.h.b16 %v2024
      %v2398 = vunpack.c.l.b16 %v2025
      %v2399 = vunpack.c.h.b16 %v2025
      %v2400 = vunpack.c.l.b16 %v2026
      %v2401 = vunpack.c.h.b16 %v2026
      %v2402 = vunpack.c.l.b16 %v2027
      %v2403 = vunpack.c.h.b16 %v2027
      %v2404 = vunpack.c.l.b16 %v2028
      %v2405 = vunpack.c.h.b16 %v2028
      %v2406 = vunpack.c.l.b16 %v2029
      %v2407 = vunpack.c.h.b16 %v2029
      %v2408 = vpack.c.b16 %v2378, %v2376
      %v2409 = vpack.c.b16 %v2379, %v2377
      %v2410 = vpack.c.b16 %v2382, %v2380
      %v2411 = vpack.c.b16 %v2383, %v2381
      %v2412 = vpack.c.b16 %v2386, %v2384
      %v2413 = vpack.c.b16 %v2387, %v2385
      %v2414 = vpack.c.b16 %v2390, %v2388
      %v2415 = vpack.c.b16 %v2391, %v2389
      %v2416 = vpack.c.b16 %v2394, %v2392
      %v2417 = vpack.c.b16 %v2395, %v2393
      %v2418 = vpack.c.b16 %v2398, %v2396
      %v2419 = vpack.c.b16 %v2399, %v2397
      %v2420 = vpack.c.b16 %v2402, %v2400
      %v2421 = vpack.c.b16 %v2403, %v2401
      %v2422 = vpack.c.b16 %v2406, %v2404
      %v2423 = vpack.c.b16 %v2407, %v2405
      %2440 = vmatprep.subr.bf16.mxu0 %v2409
      %2441 = vmatpush1.bf16.msra.mxu0 %v2408
      %2442 = vmatprep.subr.bf16.mxu0 %v2411
      %2443 = vmatpush1.bf16.msra.mxu0 %v2410
      %2444 = vmatprep.subr.bf16.mxu0 %v2413
      %2445 = vmatpush1.bf16.msra.mxu0 %v2412
      %2446 = vmatprep.subr.bf16.mxu0 %v2415
      %2447 = vmatpush1.bf16.msra.mxu0 %v2414
      %2448 = vmatprep.subr.bf16.mxu0 %v2417
      %2449 = vmatpush1.bf16.msra.mxu0 %v2416
      %2450 = vmatprep.subr.bf16.mxu0 %v2419
      %2451 = vmatpush1.bf16.msra.mxu0 %v2418
      %2452 = vmatprep.subr.bf16.mxu0 %v2421
      %2453 = vmatpush1.bf16.msra.mxu0 %v2420
      %2454 = vmatprep.subr.bf16.mxu0 %v2423
      %2455 = vmatpush1.bf16.msra.mxu0 %v2422
      %2456 = vmatprep.subr.bf16.mxu0 0
      %2457 = vmatpush1.bf16.msra.mxu0 0
      %2458 = vmatprep.subr.bf16.mxu0 0
      %2459 = vmatpush1.bf16.msra.mxu0 0
      %2460 = vmatprep.subr.bf16.mxu0 0
      %2461 = vmatpush1.bf16.msra.mxu0 0
      %2462 = vmatprep.subr.bf16.mxu0 0
      %2463 = vmatpush1.bf16.msra.mxu0 0
      %2464 = vmatprep.subr.bf16.mxu0 0
      %2465 = vmatpush1.bf16.msra.mxu0 0
      %2466 = vmatprep.subr.bf16.mxu0 0
      %2467 = vmatpush1.bf16.msra.mxu0 0
      %2468 = vmatprep.subr.bf16.mxu0 0
      %2469 = vmatpush1.bf16.msra.mxu0 0
      %2470 = vmatprep.subr.bf16.mxu0 0
      %2471 = vmatpush1.bf16.msra.mxu0 0
      %2472 = vmatprep.mubr.bf16.mxu0 0
      %2473 = vmatmul.mubr.bf16.gmra.mrb[0].mxu0 %v2352
      %v2474 = vpop.f32.mrb[0].mxu0
      %v2475 = vadd.f32 %v2298, %v2474
      %v2476 = vpop.f32.mrb[0].mxu0
      %v2477 = vadd.f32 %v2300, %v2476
      %v2478 = vpop.f32.mrb[0].mxu0
      %v2479 = vadd.f32 %v2302, %v2478
      %v2480 = vpop.f32.mrb[0].mxu0
      %v2481 = vadd.f32 %v2304, %v2480
      %2482 = vmatprep.mubr.bf16.mxu0 0
      %2483 = vmatmul.mubr.bf16.gmra.mrb[0].mxu0 %v2353
      %v2484 = vpop.f32.mrb[0].mxu0
      %v2485 = vadd.f32 %v2308, %v2484
      %v2486 = vpop.f32.mrb[0].mxu0
      %v2487 = vadd.f32 %v2310, %v2486
      %v2488 = vpop.f32.mrb[0].mxu0
      %v2489 = vadd.f32 %v2312, %v2488
      %v2490 = vpop.f32.mrb[0].mxu0
      %v2491 = vadd.f32 %v2314, %v2490
      %2492 = vmatprep.mubr.bf16.mxu0 0
      %2493 = vmatmul.mubr.bf16.gmra.mrb[0].mxu0 %v2354
      %v2494 = vpop.f32.mrb[0].mxu0
      %v2495 = vadd.f32 %v2318, %v2494
      %v2496 = vpop.f32.mrb[0].mxu0
      %v2497 = vadd.f32 %v2320, %v2496
      %v2498 = vpop.f32.mrb[0].mxu0
      %v2499 = vadd.f32 %v2322, %v2498
      %v2500 = vpop.f32.mrb[0].mxu0
      %v2501 = vadd.f32 %v2324, %v2500
      %2502 = vmatprep.mubr.bf16.mxu0 0
      %2503 = vmatmul.mubr.bf16.gmra.mrb[0].mxu0 %v2355
      %v2504 = vpop.f32.mrb[0].mxu0
      %v2505 = vadd.f32 %v2328, %v2504
      %v2506 = vpop.f32.mrb[0].mxu0
      %v2507 = vadd.f32 %v2330, %v2506
      %v2508 = vpop.f32.mrb[0].mxu0
      %v2509 = vadd.f32 %v2332, %v2508
      %v2510 = vpop.f32.mrb[0].mxu0
      %v2511 = vadd.f32 %v2334, %v2510
      %2512 = vdwg.mxu0
      %v2513 = vld [vmem:[#allocation2] sm:$0xe]
      %v2514 = vld [vmem:[#allocation2 + $0x8] sm:$0xe]
      %v2515 = vld [vmem:[#allocation2 + $0x10] sm:$0xe]
      %v2516 = vld [vmem:[#allocation2 + $0x18] sm:$0xe]
      %v2517 = vld [vmem:[#allocation2 + $0x20] sm:$0xe]
      %v2518 = vld [vmem:[#allocation2 + $0x28] sm:$0xe]
      %v2519 = vld [vmem:[#allocation2 + $0x30] sm:$0xe]
      %v2520 = vld [vmem:[#allocation2 + $0x38] sm:$0xe]
      %vm2537 = vcmask 1042432
      %vm2538 = vcmask 1046532
      %vm2539 = vmor %vm2537, %vm2538
      %v2540 = vrot.slane %v2513, 5
      %v2541 = vrot.slane %v2540, 4
      %v2542 = vrot.slane %v2030, 5
      %v2543 = vsel %vm2539, %v2541, %v2542
      %v2544 = vrot.slane %v2514, 5
      %v2545 = vrot.slane %v2544, 4
      %v2546 = vrot.slane %v2031, 5
      %v2547 = vsel %vm2539, %v2545, %v2546
      %v2548 = vrot.slane %v2515, 5
      %v2549 = vrot.slane %v2548, 4
      %v2550 = vrot.slane %v2032, 5
      %v2551 = vsel %vm2539, %v2549, %v2550
      %v2552 = vrot.slane %v2516, 5
      %v2553 = vrot.slane %v2552, 4
      %v2554 = vrot.slane %v2033, 5
      %v2555 = vsel %vm2539, %v2553, %v2554
      %v2556 = vrot.slane %v2517, 5
      %v2557 = vrot.slane %v2556, 4
      %v2558 = vrot.slane %v2034, 5
      %v2559 = vsel %vm2539, %v2557, %v2558
      %v2560 = vrot.slane %v2518, 5
      %v2561 = vrot.slane %v2560, 4
      %v2562 = vrot.slane %v2035, 5
      %v2563 = vsel %vm2539, %v2561, %v2562
      %v2564 = vrot.slane %v2519, 5
      %v2565 = vrot.slane %v2564, 4
      %v2566 = vrot.slane %v2036, 5
      %v2567 = vsel %vm2539, %v2565, %v2566
      %v2568 = vrot.slane %v2520, 5
      %v2569 = vrot.slane %v2568, 4
      %v2570 = vrot.slane %v2037, 5
      %v2571 = vsel %vm2539, %v2569, %v2570
      %s2572 = scalar_lea.vmem %s2, 256
      %v2573 = vld [vmem:[%s2572] sm:$0xff]
      %v2574 = vld [vmem:[%s2572 + $0x8] sm:$0xff]
      %v2575 = vld [vmem:[%s2572 + $0x10] sm:$0xff]
      %v2576 = vld [vmem:[%s2572 + $0x18] sm:$0xff]
      %v2577 = vld [vmem:[%s2572 + $0x20] sm:$0xff]
      %v2578 = vld [vmem:[%s2572 + $0x28] sm:$0xff]
      %v2579 = vld [vmem:[%s2572 + $0x30] sm:$0xff]
      %v2580 = vld [vmem:[%s2572 + $0x38] sm:$0xff]
      %v2581 = vld [vmem:[%s2572 + $0x40] sm:$0xff]
      %v2582 = vld [vmem:[%s2572 + $0x48] sm:$0xff]
      %v2583 = vld [vmem:[%s2572 + $0x50] sm:$0xff]
      %v2584 = vld [vmem:[%s2572 + $0x58] sm:$0xff]
      %v2585 = vld [vmem:[%s2572 + $0x60] sm:$0xff]
      %v2586 = vld [vmem:[%s2572 + $0x68] sm:$0xff]
      %v2587 = vld [vmem:[%s2572 + $0x70] sm:$0xff]
      %v2588 = vld [vmem:[%s2572 + $0x78] sm:$0xff]
      %v2589 = vunpack.c.l.b16 %v2543
      %v2590 = vunpack.c.l.b16 %v2547
      %v2591 = vunpack.c.l.b16 %v2551
      %v2592 = vunpack.c.l.b16 %v2555
      %v2593 = vunpack.c.l.b16 %v2559
      %v2594 = vunpack.c.l.b16 %v2563
      %v2595 = vunpack.c.l.b16 %v2567
      %v2596 = vunpack.c.l.b16 %v2571
      %v2597 = vpack.c.b16 %v2590, %v2589
      %v2598 = vpack.c.b16 %v2592, %v2591
      %v2599 = vpack.c.b16 %v2594, %v2593
      %v2600 = vpack.c.b16 %v2596, %v2595
      %v2621 = vunpack.c.l.b16 %v2573
      %v2622 = vunpack.c.h.b16 %v2573
      %v2623 = vunpack.c.l.b16 %v2574
      %v2624 = vunpack.c.h.b16 %v2574
      %v2625 = vunpack.c.l.b16 %v2575
      %v2626 = vunpack.c.h.b16 %v2575
      %v2627 = vunpack.c.l.b16 %v2576
      %v2628 = vunpack.c.h.b16 %v2576
      %v2629 = vunpack.c.l.b16 %v2577
      %v2630 = vunpack.c.h.b16 %v2577
      %v2631 = vunpack.c.l.b16 %v2578
      %v2632 = vunpack.c.h.b16 %v2578
      %v2633 = vunpack.c.l.b16 %v2579
      %v2634 = vunpack.c.h.b16 %v2579
      %v2635 = vunpack.c.l.b16 %v2580
      %v2636 = vunpack.c.h.b16 %v2580
      %v2637 = vunpack.c.l.b16 %v2581
      %v2638 = vunpack.c.h.b16 %v2581
      %v2639 = vunpack.c.l.b16 %v2582
      %v2640 = vunpack.c.h.b16 %v2582
      %v2641 = vunpack.c.l.b16 %v2583
      %v2642 = vunpack.c.h.b16 %v2583
      %v2643 = vunpack.c.l.b16 %v2584
      %v2644 = vunpack.c.h.b16 %v2584
      %v2645 = vunpack.c.l.b16 %v2585
      %v2646 = vunpack.c.h.b16 %v2585
      %v2647 = vunpack.c.l.b16 %v2586
      %v2648 = vunpack.c.h.b16 %v2586
      %v2649 = vunpack.c.l.b16 %v2587
      %v2650 = vunpack.c.h.b16 %v2587
      %v2651 = vunpack.c.l.b16 %v2588
      %v2652 = vunpack.c.h.b16 %v2588
      %v2653 = vpack.c.b16 %v2623, %v2621
      %v2654 = vpack.c.b16 %v2624, %v2622
      %v2655 = vpack.c.b16 %v2627, %v2625
      %v2656 = vpack.c.b16 %v2628, %v2626
      %v2657 = vpack.c.b16 %v2631, %v2629
      %v2658 = vpack.c.b16 %v2632, %v2630
      %v2659 = vpack.c.b16 %v2635, %v2633
      %v2660 = vpack.c.b16 %v2636, %v2634
      %v2661 = vpack.c.b16 %v2639, %v2637
      %v2662 = vpack.c.b16 %v2640, %v2638
      %v2663 = vpack.c.b16 %v2643, %v2641
      %v2664 = vpack.c.b16 %v2644, %v2642
      %v2665 = vpack.c.b16 %v2647, %v2645
      %v2666 = vpack.c.b16 %v2648, %v2646
      %v2667 = vpack.c.b16 %v2651, %v2649
      %v2668 = vpack.c.b16 %v2652, %v2650
      %2685 = vmatprep.subr.bf16.mxu0 %v2654
      %2686 = vmatpush1.bf16.msra.mxu0 %v2653
      %2687 = vmatprep.subr.bf16.mxu0 %v2656
      %2688 = vmatpush1.bf16.msra.mxu0 %v2655
      %2689 = vmatprep.subr.bf16.mxu0 %v2658
      %2690 = vmatpush1.bf16.msra.mxu0 %v2657
      %2691 = vmatprep.subr.bf16.mxu0 %v2660
      %2692 = vmatpush1.bf16.msra.mxu0 %v2659
      %2693 = vmatprep.subr.bf16.mxu0 %v2662
      %2694 = vmatpush1.bf16.msra.mxu0 %v2661
      %2695 = vmatprep.subr.bf16.mxu0 %v2664
      %2696 = vmatpush1.bf16.msra.mxu0 %v2663
      %2697 = vmatprep.subr.bf16.mxu0 %v2666
      %2698 = vmatpush1.bf16.msra.mxu0 %v2665
      %2699 = vmatprep.subr.bf16.mxu0 %v2668
      %2700 = vmatpush1.bf16.msra.mxu0 %v2667
      %2701 = vmatprep.subr.bf16.mxu0 0
      %2702 = vmatpush1.bf16.msra.mxu0 0
      %2703 = vmatprep.subr.bf16.mxu0 0
      %2704 = vmatpush1.bf16.msra.mxu0 0
      %2705 = vmatprep.subr.bf16.mxu0 0
      %2706 = vmatpush1.bf16.msra.mxu0 0
      %2707 = vmatprep.subr.bf16.mxu0 0
      %2708 = vmatpush1.bf16.msra.mxu0 0
      %2709 = vmatprep.subr.bf16.mxu0 0
      %2710 = vmatpush1.bf16.msra.mxu0 0
      %2711 = vmatprep.subr.bf16.mxu0 0
      %2712 = vmatpush1.bf16.msra.mxu0 0
      %2713 = vmatprep.subr.bf16.mxu0 0
      %2714 = vmatpush1.bf16.msra.mxu0 0
      %2715 = vmatprep.subr.bf16.mxu0 0
      %2716 = vmatpush1.bf16.msra.mxu0 0
      %2717 = vmatprep.mubr.bf16.mxu0 0
      %2718 = vmatmul.mubr.bf16.gmra.mrb[0].mxu0 %v2597
      %v2719 = vpop.f32.mrb[0].mxu0
      %v2720 = vadd.f32 0.0, %v2719
      %v2721 = vpop.f32.mrb[0].mxu0
      %v2722 = vadd.f32 0.0, %v2721
      %v2723 = vpop.f32.mrb[0].mxu0
      %v2724 = vadd.f32 0.0, %v2723
      %v2725 = vpop.f32.mrb[0].mxu0
      %v2726 = vadd.f32 0.0, %v2725
      %2727 = vmatprep.mubr.bf16.mxu0 0
      %2728 = vmatmul.mubr.bf16.gmra.mrb[0].mxu0 %v2598
      %v2729 = vpop.f32.mrb[0].mxu0
      %v2730 = vadd.f32 0.0, %v2729
      %v2731 = vpop.f32.mrb[0].mxu0
      %v2732 = vadd.f32 0.0, %v2731
      %v2733 = vpop.f32.mrb[0].mxu0
      %v2734 = vadd.f32 0.0, %v2733
      %v2735 = vpop.f32.mrb[0].mxu0
      %v2736 = vadd.f32 0.0, %v2735
      %2737 = vmatprep.mubr.bf16.mxu0 0
      %2738 = vmatmul.mubr.bf16.gmra.mrb[0].mxu0 %v2599
      %v2739 = vpop.f32.mrb[0].mxu0
      %v2740 = vadd.f32 0.0, %v2739
      %v2741 = vpop.f32.mrb[0].mxu0
      %v2742 = vadd.f32 0.0, %v2741
      %v2743 = vpop.f32.mrb[0].mxu0
      %v2744 = vadd.f32 0.0, %v2743
      %v2745 = vpop.f32.mrb[0].mxu0
      %v2746 = vadd.f32 0.0, %v2745
      %2747 = vmatprep.mubr.bf16.mxu0 0
      %2748 = vmatmul.mubr.bf16.gmra.mrb[0].mxu0 %v2600
      %v2749 = vpop.f32.mrb[0].mxu0
      %v2750 = vadd.f32 0.0, %v2749
      %v2751 = vpop.f32.mrb[0].mxu0
      %v2752 = vadd.f32 0.0, %v2751
      %v2753 = vpop.f32.mrb[0].mxu0
      %v2754 = vadd.f32 0.0, %v2753
      %v2755 = vpop.f32.mrb[0].mxu0
      %v2756 = vadd.f32 0.0, %v2755
      %2757 = vdwg.mxu0
      %v2758 = vadd.f32 %v2475, %v2720
      %v2759 = vadd.f32 %v2477, %v2722
      %v2760 = vadd.f32 %v2479, %v2724
      %v2761 = vadd.f32 %v2481, %v2726
      %v2762 = vadd.f32 %v2485, %v2730
      %v2763 = vadd.f32 %v2487, %v2732
      %v2764 = vadd.f32 %v2489, %v2734
      %v2765 = vadd.f32 %v2491, %v2736
      %v2766 = vadd.f32 %v2495, %v2740
      %v2767 = vadd.f32 %v2497, %v2742
      %v2768 = vadd.f32 %v2499, %v2744
      %v2769 = vadd.f32 %v2501, %v2746
      %v2770 = vadd.f32 %v2505, %v2750
      %v2771 = vadd.f32 %v2507, %v2752
      %v2772 = vadd.f32 %v2509, %v2754
      %v2773 = vadd.f32 %v2511, %v2756
      %v2774 = vld [vmem:[%s1951] sm:$0xf]
      %v2775 = vld [vmem:[%s1951 + $0x8] sm:$0xf]
      %v2776 = vld [vmem:[%s1951 + $0x10] sm:$0xf]
      %v2777 = vld [vmem:[%s1951 + $0x18] sm:$0xf]
      %v2778 = vld [vmem:[%s1951 + $0x20] sm:$0xf]
      %v2779 = vld [vmem:[%s1951 + $0x28] sm:$0xf]
      %v2780 = vld [vmem:[%s1951 + $0x30] sm:$0xf]
      %v2781 = vld [vmem:[%s1951 + $0x38] sm:$0xf]
      %s2782 = scalar_lea.vmem %s2, 384
      %v2783 = vld [vmem:[%s2782] sm:$0xff]
      %v2784 = vld [vmem:[%s2782 + $0x8] sm:$0xff]
      %v2785 = vld [vmem:[%s2782 + $0x10] sm:$0xff]
      %v2786 = vld [vmem:[%s2782 + $0x18] sm:$0xff]
      %v2787 = vld [vmem:[%s2782 + $0x20] sm:$0xff]
      %v2788 = vld [vmem:[%s2782 + $0x28] sm:$0xff]
      %v2789 = vld [vmem:[%s2782 + $0x30] sm:$0xff]
      %v2790 = vld [vmem:[%s2782 + $0x38] sm:$0xff]
      %v2791 = vld [vmem:[%s2782 + $0x40] sm:$0xff]
      %v2792 = vld [vmem:[%s2782 + $0x48] sm:$0xff]
      %v2793 = vld [vmem:[%s2782 + $0x50] sm:$0xff]
      %v2794 = vld [vmem:[%s2782 + $0x58] sm:$0xff]
      %v2795 = vld [vmem:[%s2782 + $0x60] sm:$0xff]
      %v2796 = vld [vmem:[%s2782 + $0x68] sm:$0xff]
      %v2797 = vld [vmem:[%s2782 + $0x70] sm:$0xff]
      %v2798 = vld [vmem:[%s2782 + $0x78] sm:$0xff]
      %v2807 = vunpack.c.l.b16 %v2774
      %v2808 = vunpack.c.l.b16 %v2775
      %v2809 = vunpack.c.l.b16 %v2776
      %v2810 = vunpack.c.l.b16 %v2777
      %v2811 = vunpack.c.l.b16 %v2778
      %v2812 = vunpack.c.l.b16 %v2779
      %v2813 = vunpack.c.l.b16 %v2780
      %v2814 = vunpack.c.l.b16 %v2781
      %v2815 = vpack.c.b16 %v2808, %v2807
      %v2816 = vpack.c.b16 %v2810, %v2809
      %v2817 = vpack.c.b16 %v2812, %v2811
      %v2818 = vpack.c.b16 %v2814, %v2813
      %v2839 = vunpack.c.l.b16 %v2783
      %v2840 = vunpack.c.h.b16 %v2783
      %v2841 = vunpack.c.l.b16 %v2784
      %v2842 = vunpack.c.h.b16 %v2784
      %v2843 = vunpack.c.l.b16 %v2785
      %v2844 = vunpack.c.h.b16 %v2785
      %v2845 = vunpack.c.l.b16 %v2786
      %v2846 = vunpack.c.h.b16 %v2786
      %v2847 = vunpack.c.l.b16 %v2787
      %v2848 = vunpack.c.h.b16 %v2787
      %v2849 = vunpack.c.l.b16 %v2788
      %v2850 = vunpack.c.h.b16 %v2788
      %v2851 = vunpack.c.l.b16 %v2789
      %v2852 = vunpack.c.h.b16 %v2789
      %v2853 = vunpack.c.l.b16 %v2790
      %v2854 = vunpack.c.h.b16 %v2790
      %v2855 = vunpack.c.l.b16 %v2791
      %v2856 = vunpack.c.h.b16 %v2791
      %v2857 = vunpack.c.l.b16 %v2792
      %v2858 = vunpack.c.h.b16 %v2792
      %v2859 = vunpack.c.l.b16 %v2793
      %v2860 = vunpack.c.h.b16 %v2793
      %v2861 = vunpack.c.l.b16 %v2794
      %v2862 = vunpack.c.h.b16 %v2794
      %v2863 = vunpack.c.l.b16 %v2795
      %v2864 = vunpack.c.h.b16 %v2795
      %v2865 = vunpack.c.l.b16 %v2796
      %v2866 = vunpack.c.h.b16 %v2796
      %v2867 = vunpack.c.l.b16 %v2797
      %v2868 = vunpack.c.h.b16 %v2797
      %v2869 = vunpack.c.l.b16 %v2798
      %v2870 = vunpack.c.h.b16 %v2798
      %v2871 = vpack.c.b16 %v2841, %v2839
      %v2872 = vpack.c.b16 %v2842, %v2840
      %v2873 = vpack.c.b16 %v2845, %v2843
      %v2874 = vpack.c.b16 %v2846, %v2844
      %v2875 = vpack.c.b16 %v2849, %v2847
      %v2876 = vpack.c.b16 %v2850, %v2848
      %v2877 = vpack.c.b16 %v2853, %v2851
      %v2878 = vpack.c.b16 %v2854, %v2852
      %v2879 = vpack.c.b16 %v2857, %v2855
      %v2880 = vpack.c.b16 %v2858, %v2856
      %v2881 = vpack.c.b16 %v2861, %v2859
      %v2882 = vpack.c.b16 %v2862, %v2860
      %v2883 = vpack.c.b16 %v2865, %v2863
      %v2884 = vpack.c.b16 %v2866, %v2864
      %v2885 = vpack.c.b16 %v2869, %v2867
      %v2886 = vpack.c.b16 %v2870, %v2868
      %2903 = vmatprep.subr.bf16.mxu0 %v2872
      %2904 = vmatpush1.bf16.msra.mxu0 %v2871
      %2905 = vmatprep.subr.bf16.mxu0 %v2874
      %2906 = vmatpush1.bf16.msra.mxu0 %v2873
      %2907 = vmatprep.subr.bf16.mxu0 %v2876
      %2908 = vmatpush1.bf16.msra.mxu0 %v2875
      %2909 = vmatprep.subr.bf16.mxu0 %v2878
      %2910 = vmatpush1.bf16.msra.mxu0 %v2877
      %2911 = vmatprep.subr.bf16.mxu0 %v2880
      %2912 = vmatpush1.bf16.msra.mxu0 %v2879
      %2913 = vmatprep.subr.bf16.mxu0 %v2882
      %2914 = vmatpush1.bf16.msra.mxu0 %v2881
      %2915 = vmatprep.subr.bf16.mxu0 %v2884
      %2916 = vmatpush1.bf16.msra.mxu0 %v2883
      %2917 = vmatprep.subr.bf16.mxu0 %v2886
      %2918 = vmatpush1.bf16.msra.mxu0 %v2885
      %2919 = vmatprep.subr.bf16.mxu0 0
      %2920 = vmatpush1.bf16.msra.mxu0 0
      %2921 = vmatprep.subr.bf16.mxu0 0
      %2922 = vmatpush1.bf16.msra.mxu0 0
      %2923 = vmatprep.subr.bf16.mxu0 0
      %2924 = vmatpush1.bf16.msra.mxu0 0
      %2925 = vmatprep.subr.bf16.mxu0 0
      %2926 = vmatpush1.bf16.msra.mxu0 0
      %2927 = vmatprep.subr.bf16.mxu0 0
      %2928 = vmatpush1.bf16.msra.mxu0 0
      %2929 = vmatprep.subr.bf16.mxu0 0
      %2930 = vmatpush1.bf16.msra.mxu0 0
      %2931 = vmatprep.subr.bf16.mxu0 0
      %2932 = vmatpush1.bf16.msra.mxu0 0
      %2933 = vmatprep.subr.bf16.mxu0 0
      %2934 = vmatpush1.bf16.msra.mxu0 0
      %2935 = vmatprep.mubr.bf16.mxu0 0
      %2936 = vmatmul.mubr.bf16.gmra.mrb[0].mxu0 %v2815
      %v2937 = vpop.f32.mrb[0].mxu0
      %v2938 = vadd.f32 0.0, %v2937
      %v2939 = vpop.f32.mrb[0].mxu0
      %v2940 = vadd.f32 0.0, %v2939
      %v2941 = vpop.f32.mrb[0].mxu0
      %v2942 = vadd.f32 0.0, %v2941
      %v2943 = vpop.f32.mrb[0].mxu0
      %v2944 = vadd.f32 0.0, %v2943
      %2945 = vmatprep.mubr.bf16.mxu0 0
      %2946 = vmatmul.mubr.bf16.gmra.mrb[0].mxu0 %v2816
      %v2947 = vpop.f32.mrb[0].mxu0
      %v2948 = vadd.f32 0.0, %v2947
      %v2949 = vpop.f32.mrb[0].mxu0
      %v2950 = vadd.f32 0.0, %v2949
      %v2951 = vpop.f32.mrb[0].mxu0
      %v2952 = vadd.f32 0.0, %v2951
      %v2953 = vpop.f32.mrb[0].mxu0
      %v2954 = vadd.f32 0.0, %v2953
      %2955 = vmatprep.mubr.bf16.mxu0 0
      %2956 = vmatmul.mubr.bf16.gmra.mrb[0].mxu0 %v2817
      %v2957 = vpop.f32.mrb[0].mxu0
      %v2958 = vadd.f32 0.0, %v2957
      %v2959 = vpop.f32.mrb[0].mxu0
      %v2960 = vadd.f32 0.0, %v2959
      %v2961 = vpop.f32.mrb[0].mxu0
      %v2962 = vadd.f32 0.0, %v2961
      %v2963 = vpop.f32.mrb[0].mxu0
      %v2964 = vadd.f32 0.0, %v2963
      %2965 = vmatprep.mubr.bf16.mxu0 0
      %2966 = vmatmul.mubr.bf16.gmra.mrb[0].mxu0 %v2818
      %v2967 = vpop.f32.mrb[0].mxu0
      %v2968 = vadd.f32 0.0, %v2967
      %v2969 = vpop.f32.mrb[0].mxu0
      %v2970 = vadd.f32 0.0, %v2969
      %v2971 = vpop.f32.mrb[0].mxu0
      %v2972 = vadd.f32 0.0, %v2971
      %v2973 = vpop.f32.mrb[0].mxu0
      %v2974 = vadd.f32 0.0, %v2973
      %2975 = vdwg.mxu0
      %v2976 = vadd.f32 %v2758, %v2938
      %v2977 = vadd.f32 %v2759, %v2940
      %v2978 = vadd.f32 %v2760, %v2942
      %v2979 = vadd.f32 %v2761, %v2944
      %v2980 = vadd.f32 %v2762, %v2948
      %v2981 = vadd.f32 %v2763, %v2950
      %v2982 = vadd.f32 %v2764, %v2952
      %v2983 = vadd.f32 %v2765, %v2954
      %v2984 = vadd.f32 %v2766, %v2958
      %v2985 = vadd.f32 %v2767, %v2960
      %v2986 = vadd.f32 %v2768, %v2962
      %v2987 = vadd.f32 %v2769, %v2964
      %v2988 = vadd.f32 %v2770, %v2968
      %v2989 = vadd.f32 %v2771, %v2970
      %v2990 = vadd.f32 %v2772, %v2972
      %v2991 = vadd.f32 %v2773, %v2974
      %v2992 = vld [vmem:[%s1951] sm:$0xf]
      %v2993 = vld [vmem:[%s1951 + $0x4] sm:$0x1]
      %v2994 = vld [vmem:[%s1951 + $0x8] sm:$0xf]
      %v2995 = vld [vmem:[%s1951 + $0xc] sm:$0x1]
      %v2996 = vld [vmem:[%s1951 + $0x10] sm:$0xf]
      %v2997 = vld [vmem:[%s1951 + $0x14] sm:$0x1]
      %v2998 = vld [vmem:[%s1951 + $0x18] sm:$0xf]
      %v2999 = vld [vmem:[%s1951 + $0x1c] sm:$0x1]
      %v3000 = vld [vmem:[%s1951 + $0x20] sm:$0xf]
      %v3001 = vld [vmem:[%s1951 + $0x24] sm:$0x1]
      %v3002 = vld [vmem:[%s1951 + $0x28] sm:$0xf]
      %v3003 = vld [vmem:[%s1951 + $0x2c] sm:$0x1]
      %v3004 = vld [vmem:[%s1951 + $0x30] sm:$0xf]
      %v3005 = vld [vmem:[%s1951 + $0x34] sm:$0x1]
      %v3006 = vld [vmem:[%s1951 + $0x38] sm:$0xf]
      %v3007 = vld [vmem:[%s1951 + $0x3c] sm:$0x1]
      %v3009 = vshrl.u32 %v2992, 16
      %v3011 = vrot.slane %v3009, 4
      %v3012 = vshll.u32 %v2992, 16
      %v3014 = vrot.slane %v3012, 5
      %v3015 = vor.u32 %v3011, %v3014
      %v3016 = vrot.slane %v3015, 4
      %v3018 = vshll.u32 %v2993, 16
      %v3020 = vrot.slane %v3018, 5
      %v3021 = vsel %vm472, %v3016, %v3020
      %v3023 = vshrl.u32 %v2994, 16
      %v3025 = vrot.slane %v3023, 4
      %v3026 = vshll.u32 %v2994, 16
      %v3028 = vrot.slane %v3026, 5
      %v3029 = vor.u32 %v3025, %v3028
      %v3030 = vrot.slane %v3029, 4
      %v3032 = vshll.u32 %v2995, 16
      %v3034 = vrot.slane %v3032, 5
      %v3035 = vsel %vm472, %v3030, %v3034
      %v3037 = vshrl.u32 %v2996, 16
      %v3039 = vrot.slane %v3037, 4
      %v3040 = vshll.u32 %v2996, 16
      %v3042 = vrot.slane %v3040, 5
      %v3043 = vor.u32 %v3039, %v3042
      %v3044 = vrot.slane %v3043, 4
      %v3046 = vshll.u32 %v2997, 16
      %v3048 = vrot.slane %v3046, 5
      %v3049 = vsel %vm472, %v3044, %v3048
      %v3051 = vshrl.u32 %v2998, 16
      %v3053 = vrot.slane %v3051, 4
      %v3054 = vshll.u32 %v2998, 16
      %v3056 = vrot.slane %v3054, 5
      %v3057 = vor.u32 %v3053, %v3056
      %v3058 = vrot.slane %v3057, 4
      %v3060 = vshll.u32 %v2999, 16
      %v3062 = vrot.slane %v3060, 5
      %v3063 = vsel %vm472, %v3058, %v3062
      %v3065 = vshrl.u32 %v3000, 16
      %v3067 = vrot.slane %v3065, 4
      %v3068 = vshll.u32 %v3000, 16
      %v3070 = vrot.slane %v3068, 5
      %v3071 = vor.u32 %v3067, %v3070
      %v3072 = vrot.slane %v3071, 4
      %v3074 = vshll.u32 %v3001, 16
      %v3076 = vrot.slane %v3074, 5
      %v3077 = vsel %vm472, %v3072, %v3076
      %v3079 = vshrl.u32 %v3002, 16
      %v3081 = vrot.slane %v3079, 4
      %v3082 = vshll.u32 %v3002, 16
      %v3084 = vrot.slane %v3082, 5
      %v3085 = vor.u32 %v3081, %v3084
      %v3086 = vrot.slane %v3085, 4
      %v3088 = vshll.u32 %v3003, 16
      %v3090 = vrot.slane %v3088, 5
      %v3091 = vsel %vm472, %v3086, %v3090
      %v3093 = vshrl.u32 %v3004, 16
      %v3095 = vrot.slane %v3093, 4
      %v3096 = vshll.u32 %v3004, 16
      %v3098 = vrot.slane %v3096, 5
      %v3099 = vor.u32 %v3095, %v3098
      %v3100 = vrot.slane %v3099, 4
      %v3102 = vshll.u32 %v3005, 16
      %v3104 = vrot.slane %v3102, 5
      %v3105 = vsel %vm472, %v3100, %v3104
      %v3107 = vshrl.u32 %v3006, 16
      %v3109 = vrot.slane %v3107, 4
      %v3110 = vshll.u32 %v3006, 16
      %v3112 = vrot.slane %v3110, 5
      %v3113 = vor.u32 %v3109, %v3112
      %v3114 = vrot.slane %v3113, 4
      %v3116 = vshll.u32 %v3007, 16
      %v3118 = vrot.slane %v3116, 5
      %v3119 = vsel %vm472, %v3114, %v3118
      %s3120 = scalar_lea.vmem %s2, 512
      %v3121 = vld [vmem:[%s3120] sm:$0xff]
      %v3122 = vld [vmem:[%s3120 + $0x8] sm:$0xff]
      %v3123 = vld [vmem:[%s3120 + $0x10] sm:$0xff]
      %v3124 = vld [vmem:[%s3120 + $0x18] sm:$0xff]
      %v3125 = vld [vmem:[%s3120 + $0x20] sm:$0xff]
      %v3126 = vld [vmem:[%s3120 + $0x28] sm:$0xff]
      %v3127 = vld [vmem:[%s3120 + $0x30] sm:$0xff]
      %v3128 = vld [vmem:[%s3120 + $0x38] sm:$0xff]
      %v3129 = vld [vmem:[%s3120 + $0x40] sm:$0xff]
      %v3130 = vld [vmem:[%s3120 + $0x48] sm:$0xff]
      %v3131 = vld [vmem:[%s3120 + $0x50] sm:$0xff]
      %v3132 = vld [vmem:[%s3120 + $0x58] sm:$0xff]
      %v3133 = vld [vmem:[%s3120 + $0x60] sm:$0xff]
      %v3134 = vld [vmem:[%s3120 + $0x68] sm:$0xff]
      %v3135 = vld [vmem:[%s3120 + $0x70] sm:$0xff]
      %v3136 = vld [vmem:[%s3120 + $0x78] sm:$0xff]
      %v3137 = vunpack.c.l.b16 %v3021
      %v3138 = vunpack.c.l.b16 %v3035
      %v3139 = vunpack.c.l.b16 %v3049
      %v3140 = vunpack.c.l.b16 %v3063
      %v3141 = vunpack.c.l.b16 %v3077
      %v3142 = vunpack.c.l.b16 %v3091
      %v3143 = vunpack.c.l.b16 %v3105
      %v3144 = vunpack.c.l.b16 %v3119
      %v3145 = vpack.c.b16 %v3138, %v3137
      %v3146 = vpack.c.b16 %v3140, %v3139
      %v3147 = vpack.c.b16 %v3142, %v3141
      %v3148 = vpack.c.b16 %v3144, %v3143
      %v3169 = vunpack.c.l.b16 %v3121
      %v3170 = vunpack.c.h.b16 %v3121
      %v3171 = vunpack.c.l.b16 %v3122
      %v3172 = vunpack.c.h.b16 %v3122
      %v3173 = vunpack.c.l.b16 %v3123
      %v3174 = vunpack.c.h.b16 %v3123
      %v3175 = vunpack.c.l.b16 %v3124
      %v3176 = vunpack.c.h.b16 %v3124
      %v3177 = vunpack.c.l.b16 %v3125
      %v3178 = vunpack.c.h.b16 %v3125
      %v3179 = vunpack.c.l.b16 %v3126
      %v3180 = vunpack.c.h.b16 %v3126
      %v3181 = vunpack.c.l.b16 %v3127
      %v3182 = vunpack.c.h.b16 %v3127
      %v3183 = vunpack.c.l.b16 %v3128
      %v3184 = vunpack.c.h.b16 %v3128
      %v3185 = vunpack.c.l.b16 %v3129
      %v3186 = vunpack.c.h.b16 %v3129
      %v3187 = vunpack.c.l.b16 %v3130
      %v3188 = vunpack.c.h.b16 %v3130
      %v3189 = vunpack.c.l.b16 %v3131
      %v3190 = vunpack.c.h.b16 %v3131
      %v3191 = vunpack.c.l.b16 %v3132
      %v3192 = vunpack.c.h.b16 %v3132
      %v3193 = vunpack.c.l.b16 %v3133
      %v3194 = vunpack.c.h.b16 %v3133
      %v3195 = vunpack.c.l.b16 %v3134
      %v3196 = vunpack.c.h.b16 %v3134
      %v3197 = vunpack.c.l.b16 %v3135
      %v3198 = vunpack.c.h.b16 %v3135
      %v3199 = vunpack.c.l.b16 %v3136
      %v3200 = vunpack.c.h.b16 %v3136
      %v3201 = vpack.c.b16 %v3171, %v3169
      %v3202 = vpack.c.b16 %v3172, %v3170
      %v3203 = vpack.c.b16 %v3175, %v3173
      %v3204 = vpack.c.b16 %v3176, %v3174
      %v3205 = vpack.c.b16 %v3179, %v3177
      %v3206 = vpack.c.b16 %v3180, %v3178
      %v3207 = vpack.c.b16 %v3183, %v3181
      %v3208 = vpack.c.b16 %v3184, %v3182
      %v3209 = vpack.c.b16 %v3187, %v3185
      %v3210 = vpack.c.b16 %v3188, %v3186
      %v3211 = vpack.c.b16 %v3191, %v3189
      %v3212 = vpack.c.b16 %v3192, %v3190
      %v3213 = vpack.c.b16 %v3195, %v3193
      %v3214 = vpack.c.b16 %v3196, %v3194
      %v3215 = vpack.c.b16 %v3199, %v3197
      %v3216 = vpack.c.b16 %v3200, %v3198
      %3233 = vmatprep.subr.bf16.mxu0 %v3202
      %3234 = vmatpush1.bf16.msra.mxu0 %v3201
      %3235 = vmatprep.subr.bf16.mxu0 %v3204
      %3236 = vmatpush1.bf16.msra.mxu0 %v3203
      %3237 = vmatprep.subr.bf16.mxu0 %v3206
      %3238 = vmatpush1.bf16.msra.mxu0 %v3205
      %3239 = vmatprep.subr.bf16.mxu0 %v3208
      %3240 = vmatpush1.bf16.msra.mxu0 %v3207
      %3241 = vmatprep.subr.bf16.mxu0 %v3210
      %3242 = vmatpush1.bf16.msra.mxu0 %v3209
      %3243 = vmatprep.subr.bf16.mxu0 %v3212
      %3244 = vmatpush1.bf16.msra.mxu0 %v3211
      %3245 = vmatprep.subr.bf16.mxu0 %v3214
      %3246 = vmatpush1.bf16.msra.mxu0 %v3213
      %3247 = vmatprep.subr.bf16.mxu0 %v3216
      %3248 = vmatpush1.bf16.msra.mxu0 %v3215
      %3249 = vmatprep.subr.bf16.mxu0 0
      %3250 = vmatpush1.bf16.msra.mxu0 0
      %3251 = vmatprep.subr.bf16.mxu0 0
      %3252 = vmatpush1.bf16.msra.mxu0 0
      %3253 = vmatprep.subr.bf16.mxu0 0
      %3254 = vmatpush1.bf16.msra.mxu0 0
      %3255 = vmatprep.subr.bf16.mxu0 0
      %3256 = vmatpush1.bf16.msra.mxu0 0
      %3257 = vmatprep.subr.bf16.mxu0 0
      %3258 = vmatpush1.bf16.msra.mxu0 0
      %3259 = vmatprep.subr.bf16.mxu0 0
      %3260 = vmatpush1.bf16.msra.mxu0 0
      %3261 = vmatprep.subr.bf16.mxu0 0
      %3262 = vmatpush1.bf16.msra.mxu0 0
      %3263 = vmatprep.subr.bf16.mxu0 0
      %3264 = vmatpush1.bf16.msra.mxu0 0
      %3265 = vmatprep.mubr.bf16.mxu0 0
      %3266 = vmatmul.mubr.bf16.gmra.mrb[0].mxu0 %v3145
      %v3267 = vpop.f32.mrb[0].mxu0
      %v3268 = vadd.f32 0.0, %v3267
      %v3269 = vpop.f32.mrb[0].mxu0
      %v3270 = vadd.f32 0.0, %v3269
      %v3271 = vpop.f32.mrb[0].mxu0
      %v3272 = vadd.f32 0.0, %v3271
      %v3273 = vpop.f32.mrb[0].mxu0
      %v3274 = vadd.f32 0.0, %v3273
      %3275 = vmatprep.mubr.bf16.mxu0 0
      %3276 = vmatmul.mubr.bf16.gmra.mrb[0].mxu0 %v3146
      %v3277 = vpop.f32.mrb[0].mxu0
      %v3278 = vadd.f32 0.0, %v3277
      %v3279 = vpop.f32.mrb[0].mxu0
      %v3280 = vadd.f32 0.0, %v3279
      %v3281 = vpop.f32.mrb[0].mxu0
      %v3282 = vadd.f32 0.0, %v3281
      %v3283 = vpop.f32.mrb[0].mxu0
      %v3284 = vadd.f32 0.0, %v3283
      %3285 = vmatprep.mubr.bf16.mxu0 0
      %3286 = vmatmul.mubr.bf16.gmra.mrb[0].mxu0 %v3147
      %v3287 = vpop.f32.mrb[0].mxu0
      %v3288 = vadd.f32 0.0, %v3287
      %v3289 = vpop.f32.mrb[0].mxu0
      %v3290 = vadd.f32 0.0, %v3289
      %v3291 = vpop.f32.mrb[0].mxu0
      %v3292 = vadd.f32 0.0, %v3291
      %v3293 = vpop.f32.mrb[0].mxu0
      %v3294 = vadd.f32 0.0, %v3293
      %3295 = vmatprep.mubr.bf16.mxu0 0
      %3296 = vmatmul.mubr.bf16.gmra.mrb[0].mxu0 %v3148
      %v3297 = vpop.f32.mrb[0].mxu0
      %v3298 = vadd.f32 0.0, %v3297
      %v3299 = vpop.f32.mrb[0].mxu0
      %v3300 = vadd.f32 0.0, %v3299
      %v3301 = vpop.f32.mrb[0].mxu0
      %v3302 = vadd.f32 0.0, %v3301
      %v3303 = vpop.f32.mrb[0].mxu0
      %v3304 = vadd.f32 0.0, %v3303
      %3305 = vdwg.mxu0
      %v3306 = vadd.f32 %v2976, %v3268
      %v3307 = vadd.f32 %v2977, %v3270
      %v3308 = vadd.f32 %v2978, %v3272
      %v3309 = vadd.f32 %v2979, %v3274
      %v3310 = vadd.f32 %v2980, %v3278
      %v3311 = vadd.f32 %v2981, %v3280
      %v3312 = vadd.f32 %v2982, %v3282
      %v3313 = vadd.f32 %v2983, %v3284
      %v3314 = vadd.f32 %v2984, %v3288
      %v3315 = vadd.f32 %v2985, %v3290
      %v3316 = vadd.f32 %v2986, %v3292
      %v3317 = vadd.f32 %v2987, %v3294
      %v3318 = vadd.f32 %v2988, %v3298
      %v3319 = vadd.f32 %v2989, %v3300
      %v3320 = vadd.f32 %v2990, %v3302
      %v3321 = vadd.f32 %v2991, %v3304
      %v3322 = vld [vmem:[%s1951] sm:$0xe]
      %v3323 = vld [vmem:[%s1951 + $0x8] sm:$0xe]
      %v3324 = vld [vmem:[%s1951 + $0x10] sm:$0xe]
      %v3325 = vld [vmem:[%s1951 + $0x18] sm:$0xe]
      %v3326 = vld [vmem:[%s1951 + $0x20] sm:$0xe]
      %v3327 = vld [vmem:[%s1951 + $0x28] sm:$0xe]
      %v3328 = vld [vmem:[%s1951 + $0x30] sm:$0xe]
      %v3329 = vld [vmem:[%s1951 + $0x38] sm:$0xe]
      %v3346 = vrot.slane %v3322, 5
      %v3347 = vrot.slane %v3346, 4
      %v3348 = vrot.slane %v2993, 5
      %v3349 = vsel %vm2539, %v3347, %v3348
      %v3350 = vrot.slane %v3323, 5
      %v3351 = vrot.slane %v3350, 4
      %v3352 = vrot.slane %v2995, 5
      %v3353 = vsel %vm2539, %v3351, %v3352
      %v3354 = vrot.slane %v3324, 5
      %v3355 = vrot.slane %v3354, 4
      %v3356 = vrot.slane %v2997, 5
      %v3357 = vsel %vm2539, %v3355, %v3356
      %v3358 = vrot.slane %v3325, 5
      %v3359 = vrot.slane %v3358, 4
      %v3360 = vrot.slane %v2999, 5
      %v3361 = vsel %vm2539, %v3359, %v3360
      %v3362 = vrot.slane %v3326, 5
      %v3363 = vrot.slane %v3362, 4
      %v3364 = vrot.slane %v3001, 5
      %v3365 = vsel %vm2539, %v3363, %v3364
      %v3366 = vrot.slane %v3327, 5
      %v3367 = vrot.slane %v3366, 4
      %v3368 = vrot.slane %v3003, 5
      %v3369 = vsel %vm2539, %v3367, %v3368
      %v3370 = vrot.slane %v3328, 5
      %v3371 = vrot.slane %v3370, 4
      %v3372 = vrot.slane %v3005, 5
      %v3373 = vsel %vm2539, %v3371, %v3372
      %v3374 = vrot.slane %v3329, 5
      %v3375 = vrot.slane %v3374, 4
      %v3376 = vrot.slane %v3007, 5
      %v3377 = vsel %vm2539, %v3375, %v3376
      %s3378 = scalar_lea.vmem %s2, 640
      %v3379 = vld [vmem:[%s3378] sm:$0xff]
      %v3380 = vld [vmem:[%s3378 + $0x8] sm:$0xff]
      %v3381 = vld [vmem:[%s3378 + $0x10] sm:$0xff]
      %v3382 = vld [vmem:[%s3378 + $0x18] sm:$0xff]
      %v3383 = vld [vmem:[%s3378 + $0x20] sm:$0xff]
      %v3384 = vld [vmem:[%s3378 + $0x28] sm:$0xff]
      %v3385 = vld [vmem:[%s3378 + $0x30] sm:$0xff]
      %v3386 = vld [vmem:[%s3378 + $0x38] sm:$0xff]
      %v3387 = vld [vmem:[%s3378 + $0x40] sm:$0xff]
      %v3388 = vld [vmem:[%s3378 + $0x48] sm:$0xff]
      %v3389 = vld [vmem:[%s3378 + $0x50] sm:$0xff]
      %v3390 = vld [vmem:[%s3378 + $0x58] sm:$0xff]
      %v3391 = vld [vmem:[%s3378 + $0x60] sm:$0xff]
      %v3392 = vld [vmem:[%s3378 + $0x68] sm:$0xff]
      %v3393 = vld [vmem:[%s3378 + $0x70] sm:$0xff]
      %v3394 = vld [vmem:[%s3378 + $0x78] sm:$0xff]
      %v3395 = vunpack.c.l.b16 %v3349
      %v3396 = vunpack.c.l.b16 %v3353
      %v3397 = vunpack.c.l.b16 %v3357
      %v3398 = vunpack.c.l.b16 %v3361
      %v3399 = vunpack.c.l.b16 %v3365
      %v3400 = vunpack.c.l.b16 %v3369
      %v3401 = vunpack.c.l.b16 %v3373
      %v3402 = vunpack.c.l.b16 %v3377
      %v3403 = vpack.c.b16 %v3396, %v3395
      %v3404 = vpack.c.b16 %v3398, %v3397
      %v3405 = vpack.c.b16 %v3400, %v3399
      %v3406 = vpack.c.b16 %v3402, %v3401
      %v3427 = vunpack.c.l.b16 %v3379
      %v3428 = vunpack.c.h.b16 %v3379
      %v3429 = vunpack.c.l.b16 %v3380
      %v3430 = vunpack.c.h.b16 %v3380
      %v3431 = vunpack.c.l.b16 %v3381
      %v3432 = vunpack.c.h.b16 %v3381
      %v3433 = vunpack.c.l.b16 %v3382
      %v3434 = vunpack.c.h.b16 %v3382
      %v3435 = vunpack.c.l.b16 %v3383
      %v3436 = vunpack.c.h.b16 %v3383
      %v3437 = vunpack.c.l.b16 %v3384
      %v3438 = vunpack.c.h.b16 %v3384
      %v3439 = vunpack.c.l.b16 %v3385
      %v3440 = vunpack.c.h.b16 %v3385
      %v3441 = vunpack.c.l.b16 %v3386
      %v3442 = vunpack.c.h.b16 %v3386
      %v3443 = vunpack.c.l.b16 %v3387
      %v3444 = vunpack.c.h.b16 %v3387
      %v3445 = vunpack.c.l.b16 %v3388
      %v3446 = vunpack.c.h.b16 %v3388
      %v3447 = vunpack.c.l.b16 %v3389
      %v3448 = vunpack.c.h.b16 %v3389
      %v3449 = vunpack.c.l.b16 %v3390
      %v3450 = vunpack.c.h.b16 %v3390
      %v3451 = vunpack.c.l.b16 %v3391
      %v3452 = vunpack.c.h.b16 %v3391
      %v3453 = vunpack.c.l.b16 %v3392
      %v3454 = vunpack.c.h.b16 %v3392
      %v3455 = vunpack.c.l.b16 %v3393
      %v3456 = vunpack.c.h.b16 %v3393
      %v3457 = vunpack.c.l.b16 %v3394
      %v3458 = vunpack.c.h.b16 %v3394
      %v3459 = vpack.c.b16 %v3429, %v3427
      %v3460 = vpack.c.b16 %v3430, %v3428
      %v3461 = vpack.c.b16 %v3433, %v3431
      %v3462 = vpack.c.b16 %v3434, %v3432
      %v3463 = vpack.c.b16 %v3437, %v3435
      %v3464 = vpack.c.b16 %v3438, %v3436
      %v3465 = vpack.c.b16 %v3441, %v3439
      %v3466 = vpack.c.b16 %v3442, %v3440
      %v3467 = vpack.c.b16 %v3445, %v3443
      %v3468 = vpack.c.b16 %v3446, %v3444
      %v3469 = vpack.c.b16 %v3449, %v3447
      %v3470 = vpack.c.b16 %v3450, %v3448
      %v3471 = vpack.c.b16 %v3453, %v3451
      %v3472 = vpack.c.b16 %v3454, %v3452
      %v3473 = vpack.c.b16 %v3457, %v3455
      %v3474 = vpack.c.b16 %v3458, %v3456
      %3491 = vmatprep.subr.bf16.mxu0 %v3460
      %3492 = vmatpush1.bf16.msra.mxu0 %v3459
      %3493 = vmatprep.subr.bf16.mxu0 %v3462
      %3494 = vmatpush1.bf16.msra.mxu0 %v3461
      %3495 = vmatprep.subr.bf16.mxu0 %v3464
      %3496 = vmatpush1.bf16.msra.mxu0 %v3463
      %3497 = vmatprep.subr.bf16.mxu0 %v3466
      %3498 = vmatpush1.bf16.msra.mxu0 %v3465
      %3499 = vmatprep.subr.bf16.mxu0 %v3468
      %3500 = vmatpush1.bf16.msra.mxu0 %v3467
      %3501 = vmatprep.subr.bf16.mxu0 %v3470
      %3502 = vmatpush1.bf16.msra.mxu0 %v3469
      %3503 = vmatprep.subr.bf16.mxu0 %v3472
      %3504 = vmatpush1.bf16.msra.mxu0 %v3471
      %3505 = vmatprep.subr.bf16.mxu0 %v3474
      %3506 = vmatpush1.bf16.msra.mxu0 %v3473
      %3507 = vmatprep.subr.bf16.mxu0 0
      %3508 = vmatpush1.bf16.msra.mxu0 0
      %3509 = vmatprep.subr.bf16.mxu0 0
      %3510 = vmatpush1.bf16.msra.mxu0 0
      %3511 = vmatprep.subr.bf16.mxu0 0
      %3512 = vmatpush1.bf16.msra.mxu0 0
      %3513 = vmatprep.subr.bf16.mxu0 0
      %3514 = vmatpush1.bf16.msra.mxu0 0
      %3515 = vmatprep.subr.bf16.mxu0 0
      %3516 = vmatpush1.bf16.msra.mxu0 0
      %3517 = vmatprep.subr.bf16.mxu0 0
      %3518 = vmatpush1.bf16.msra.mxu0 0
      %3519 = vmatprep.subr.bf16.mxu0 0
      %3520 = vmatpush1.bf16.msra.mxu0 0
      %3521 = vmatprep.subr.bf16.mxu0 0
      %3522 = vmatpush1.bf16.msra.mxu0 0
      %3523 = vmatprep.mubr.bf16.mxu0 0
      %3524 = vmatmul.mubr.bf16.gmra.mrb[0].mxu0 %v3403
      %v3525 = vpop.f32.mrb[0].mxu0
      %v3526 = vadd.f32 0.0, %v3525
      %v3527 = vpop.f32.mrb[0].mxu0
      %v3528 = vadd.f32 0.0, %v3527
      %v3529 = vpop.f32.mrb[0].mxu0
      %v3530 = vadd.f32 0.0, %v3529
      %v3531 = vpop.f32.mrb[0].mxu0
      %v3532 = vadd.f32 0.0, %v3531
      %3533 = vmatprep.mubr.bf16.mxu0 0
      %3534 = vmatmul.mubr.bf16.gmra.mrb[0].mxu0 %v3404
      %v3535 = vpop.f32.mrb[0].mxu0
      %v3536 = vadd.f32 0.0, %v3535
      %v3537 = vpop.f32.mrb[0].mxu0
      %v3538 = vadd.f32 0.0, %v3537
      %v3539 = vpop.f32.mrb[0].mxu0
      %v3540 = vadd.f32 0.0, %v3539
      %v3541 = vpop.f32.mrb[0].mxu0
      %v3542 = vadd.f32 0.0, %v3541
      %3543 = vmatprep.mubr.bf16.mxu0 0
      %3544 = vmatmul.mubr.bf16.gmra.mrb[0].mxu0 %v3405
      %v3545 = vpop.f32.mrb[0].mxu0
      %v3546 = vadd.f32 0.0, %v3545
      %v3547 = vpop.f32.mrb[0].mxu0
      %v3548 = vadd.f32 0.0, %v3547
      %v3549 = vpop.f32.mrb[0].mxu0
      %v3550 = vadd.f32 0.0, %v3549
      %v3551 = vpop.f32.mrb[0].mxu0
      %v3552 = vadd.f32 0.0, %v3551
      %3553 = vmatprep.mubr.bf16.mxu0 0
      %3554 = vmatmul.mubr.bf16.gmra.mrb[0].mxu0 %v3406
      %v3555 = vpop.f32.mrb[0].mxu0
      %v3556 = vadd.f32 0.0, %v3555
      %v3557 = vpop.f32.mrb[0].mxu0
      %v3558 = vadd.f32 0.0, %v3557
      %v3559 = vpop.f32.mrb[0].mxu0
      %v3560 = vadd.f32 0.0, %v3559
      %v3561 = vpop.f32.mrb[0].mxu0
      %v3562 = vadd.f32 0.0, %v3561
      %3563 = vdwg.mxu0
      %v3564 = vadd.f32 %v3306, %v3526
      %v3565 = vadd.f32 %v3307, %v3528
      %v3566 = vadd.f32 %v3308, %v3530
      %v3567 = vadd.f32 %v3309, %v3532
      %v3568 = vadd.f32 %v3310, %v3536
      %v3569 = vadd.f32 %v3311, %v3538
      %v3570 = vadd.f32 %v3312, %v3540
      %v3571 = vadd.f32 %v3313, %v3542
      %v3572 = vadd.f32 %v3314, %v3546
      %v3573 = vadd.f32 %v3315, %v3548
      %v3574 = vadd.f32 %v3316, %v3550
      %v3575 = vadd.f32 %v3317, %v3552
      %v3576 = vadd.f32 %v3318, %v3556
      %v3577 = vadd.f32 %v3319, %v3558
      %v3578 = vadd.f32 %v3320, %v3560
      %v3579 = vadd.f32 %v3321, %v3562
      %s3580 = scalar_lea.vmem [#allocation2], 16
      %v3581 = vld [vmem:[%s3580] sm:$0xf]
      %v3582 = vld [vmem:[%s3580 + $0x8] sm:$0xf]
      %v3583 = vld [vmem:[%s3580 + $0x10] sm:$0xf]
      %v3584 = vld [vmem:[%s3580 + $0x18] sm:$0xf]
      %v3585 = vld [vmem:[%s3580 + $0x20] sm:$0xf]
      %v3586 = vld [vmem:[%s3580 + $0x28] sm:$0xf]
      %v3587 = vld [vmem:[%s3580 + $0x30] sm:$0xf]
      %v3588 = vld [vmem:[%s3580 + $0x38] sm:$0xf]
      %s3589 = scalar_lea.vmem %s2, 768
      %v3590 = vld [vmem:[%s3589] sm:$0xff]
      %v3591 = vld [vmem:[%s3589 + $0x8] sm:$0xff]
      %v3592 = vld [vmem:[%s3589 + $0x10] sm:$0xff]
      %v3593 = vld [vmem:[%s3589 + $0x18] sm:$0xff]
      %v3594 = vld [vmem:[%s3589 + $0x20] sm:$0xff]
      %v3595 = vld [vmem:[%s3589 + $0x28] sm:$0xff]
      %v3596 = vld [vmem:[%s3589 + $0x30] sm:$0xff]
      %v3597 = vld [vmem:[%s3589 + $0x38] sm:$0xff]
      %v3598 = vld [vmem:[%s3589 + $0x40] sm:$0xff]
      %v3599 = vld [vmem:[%s3589 + $0x48] sm:$0xff]
      %v3600 = vld [vmem:[%s3589 + $0x50] sm:$0xff]
      %v3601 = vld [vmem:[%s3589 + $0x58] sm:$0xff]
      %v3602 = vld [vmem:[%s3589 + $0x60] sm:$0xff]
      %v3603 = vld [vmem:[%s3589 + $0x68] sm:$0xff]
      %v3604 = vld [vmem:[%s3589 + $0x70] sm:$0xff]
      %v3605 = vld [vmem:[%s3589 + $0x78] sm:$0xff]
      %v3614 = vunpack.c.l.b16 %v3581
      %v3615 = vunpack.c.l.b16 %v3582
      %v3616 = vunpack.c.l.b16 %v3583
      %v3617 = vunpack.c.l.b16 %v3584
      %v3618 = vunpack.c.l.b16 %v3585
      %v3619 = vunpack.c.l.b16 %v3586
      %v3620 = vunpack.c.l.b16 %v3587
      %v3621 = vunpack.c.l.b16 %v3588
      %v3622 = vpack.c.b16 %v3615, %v3614
      %v3623 = vpack.c.b16 %v3617, %v3616
      %v3624 = vpack.c.b16 %v3619, %v3618
      %v3625 = vpack.c.b16 %v3621, %v3620
      %v3646 = vunpack.c.l.b16 %v3590
      %v3647 = vunpack.c.h.b16 %v3590
      %v3648 = vunpack.c.l.b16 %v3591
      %v3649 = vunpack.c.h.b16 %v3591
      %v3650 = vunpack.c.l.b16 %v3592
      %v3651 = vunpack.c.h.b16 %v3592
      %v3652 = vunpack.c.l.b16 %v3593
      %v3653 = vunpack.c.h.b16 %v3593
      %v3654 = vunpack.c.l.b16 %v3594
      %v3655 = vunpack.c.h.b16 %v3594
      %v3656 = vunpack.c.l.b16 %v3595
      %v3657 = vunpack.c.h.b16 %v3595
      %v3658 = vunpack.c.l.b16 %v3596
      %v3659 = vunpack.c.h.b16 %v3596
      %v3660 = vunpack.c.l.b16 %v3597
      %v3661 = vunpack.c.h.b16 %v3597
      %v3662 = vunpack.c.l.b16 %v3598
      %v3663 = vunpack.c.h.b16 %v3598
      %v3664 = vunpack.c.l.b16 %v3599
      %v3665 = vunpack.c.h.b16 %v3599
      %v3666 = vunpack.c.l.b16 %v3600
      %v3667 = vunpack.c.h.b16 %v3600
      %v3668 = vunpack.c.l.b16 %v3601
      %v3669 = vunpack.c.h.b16 %v3601
      %v3670 = vunpack.c.l.b16 %v3602
      %v3671 = vunpack.c.h.b16 %v3602
      %v3672 = vunpack.c.l.b16 %v3603
      %v3673 = vunpack.c.h.b16 %v3603
      %v3674 = vunpack.c.l.b16 %v3604
      %v3675 = vunpack.c.h.b16 %v3604
      %v3676 = vunpack.c.l.b16 %v3605
      %v3677 = vunpack.c.h.b16 %v3605
      %v3678 = vpack.c.b16 %v3648, %v3646
      %v3679 = vpack.c.b16 %v3649, %v3647
      %v3680 = vpack.c.b16 %v3652, %v3650
      %v3681 = vpack.c.b16 %v3653, %v3651
      %v3682 = vpack.c.b16 %v3656, %v3654
      %v3683 = vpack.c.b16 %v3657, %v3655
      %v3684 = vpack.c.b16 %v3660, %v3658
      %v3685 = vpack.c.b16 %v3661, %v3659
      %v3686 = vpack.c.b16 %v3664, %v3662
      %v3687 = vpack.c.b16 %v3665, %v3663
      %v3688 = vpack.c.b16 %v3668, %v3666
      %v3689 = vpack.c.b16 %v3669, %v3667
      %v3690 = vpack.c.b16 %v3672, %v3670
      %v3691 = vpack.c.b16 %v3673, %v3671
      %v3692 = vpack.c.b16 %v3676, %v3674
      %v3693 = vpack.c.b16 %v3677, %v3675
      %3710 = vmatprep.subr.bf16.mxu0 %v3679
      %3711 = vmatpush1.bf16.msra.mxu0 %v3678
      %3712 = vmatprep.subr.bf16.mxu0 %v3681
      %3713 = vmatpush1.bf16.msra.mxu0 %v3680
      %3714 = vmatprep.subr.bf16.mxu0 %v3683
      %3715 = vmatpush1.bf16.msra.mxu0 %v3682
      %3716 = vmatprep.subr.bf16.mxu0 %v3685
      %3717 = vmatpush1.bf16.msra.mxu0 %v3684
      %3718 = vmatprep.subr.bf16.mxu0 %v3687
      %3719 = vmatpush1.bf16.msra.mxu0 %v3686
      %3720 = vmatprep.subr.bf16.mxu0 %v3689
      %3721 = vmatpush1.bf16.msra.mxu0 %v3688
      %3722 = vmatprep.subr.bf16.mxu0 %v3691
      %3723 = vmatpush1.bf16.msra.mxu0 %v3690
      %3724 = vmatprep.subr.bf16.mxu0 %v3693
      %3725 = vmatpush1.bf16.msra.mxu0 %v3692
      %3726 = vmatprep.subr.bf16.mxu0 0
      %3727 = vmatpush1.bf16.msra.mxu0 0
      %3728 = vmatprep.subr.bf16.mxu0 0
      %3729 = vmatpush1.bf16.msra.mxu0 0
      %3730 = vmatprep.subr.bf16.mxu0 0
      %3731 = vmatpush1.bf16.msra.mxu0 0
      %3732 = vmatprep.subr.bf16.mxu0 0
      %3733 = vmatpush1.bf16.msra.mxu0 0
      %3734 = vmatprep.subr.bf16.mxu0 0
      %3735 = vmatpush1.bf16.msra.mxu0 0
      %3736 = vmatprep.subr.bf16.mxu0 0
      %3737 = vmatpush1.bf16.msra.mxu0 0
      %3738 = vmatprep.subr.bf16.mxu0 0
      %3739 = vmatpush1.bf16.msra.mxu0 0
      %3740 = vmatprep.subr.bf16.mxu0 0
      %3741 = vmatpush1.bf16.msra.mxu0 0
      %3742 = vmatprep.mubr.bf16.mxu0 0
      %3743 = vmatmul.mubr.bf16.gmra.mrb[0].mxu0 %v3622
      %v3744 = vpop.f32.mrb[0].mxu0
      %v3745 = vadd.f32 0.0, %v3744
      %v3746 = vpop.f32.mrb[0].mxu0
      %v3747 = vadd.f32 0.0, %v3746
      %v3748 = vpop.f32.mrb[0].mxu0
      %v3749 = vadd.f32 0.0, %v3748
      %v3750 = vpop.f32.mrb[0].mxu0
      %v3751 = vadd.f32 0.0, %v3750
      %3752 = vmatprep.mubr.bf16.mxu0 0
      %3753 = vmatmul.mubr.bf16.gmra.mrb[0].mxu0 %v3623
      %v3754 = vpop.f32.mrb[0].mxu0
      %v3755 = vadd.f32 0.0, %v3754
      %v3756 = vpop.f32.mrb[0].mxu0
      %v3757 = vadd.f32 0.0, %v3756
      %v3758 = vpop.f32.mrb[0].mxu0
      %v3759 = vadd.f32 0.0, %v3758
      %v3760 = vpop.f32.mrb[0].mxu0
      %v3761 = vadd.f32 0.0, %v3760
      %3762 = vmatprep.mubr.bf16.mxu0 0
      %3763 = vmatmul.mubr.bf16.gmra.mrb[0].mxu0 %v3624
      %v3764 = vpop.f32.mrb[0].mxu0
      %v3765 = vadd.f32 0.0, %v3764
      %v3766 = vpop.f32.mrb[0].mxu0
      %v3767 = vadd.f32 0.0, %v3766
      %v3768 = vpop.f32.mrb[0].mxu0
      %v3769 = vadd.f32 0.0, %v3768
      %v3770 = vpop.f32.mrb[0].mxu0
      %v3771 = vadd.f32 0.0, %v3770
      %3772 = vmatprep.mubr.bf16.mxu0 0
      %3773 = vmatmul.mubr.bf16.gmra.mrb[0].mxu0 %v3625
      %v3774 = vpop.f32.mrb[0].mxu0
      %v3775 = vadd.f32 0.0, %v3774
      %v3776 = vpop.f32.mrb[0].mxu0
      %v3777 = vadd.f32 0.0, %v3776
      %v3778 = vpop.f32.mrb[0].mxu0
      %v3779 = vadd.f32 0.0, %v3778
      %v3780 = vpop.f32.mrb[0].mxu0
      %v3781 = vadd.f32 0.0, %v3780
      %3782 = vdwg.mxu0
      %v3783 = vadd.f32 %v3564, %v3745
      %v3784 = vadd.f32 %v3565, %v3747
      %v3785 = vadd.f32 %v3566, %v3749
      %v3786 = vadd.f32 %v3567, %v3751
      %v3787 = vadd.f32 %v3568, %v3755
      %v3788 = vadd.f32 %v3569, %v3757
      %v3789 = vadd.f32 %v3570, %v3759
      %v3790 = vadd.f32 %v3571, %v3761
      %v3791 = vadd.f32 %v3572, %v3765
      %v3792 = vadd.f32 %v3573, %v3767
      %v3793 = vadd.f32 %v3574, %v3769
      %v3794 = vadd.f32 %v3575, %v3771
      %v3795 = vadd.f32 %v3576, %v3775
      %v3796 = vadd.f32 %v3577, %v3777
      %v3797 = vadd.f32 %v3578, %v3779
      %v3798 = vadd.f32 %v3579, %v3781
      %v3799 = vld [vmem:[%s3580] sm:$0xf]
      %v3800 = vld [vmem:[%s3580 + $0x4] sm:$0x1]
      %v3801 = vld [vmem:[%s3580 + $0x8] sm:$0xf]
      %v3802 = vld [vmem:[%s3580 + $0xc] sm:$0x1]
      %v3803 = vld [vmem:[%s3580 + $0x10] sm:$0xf]
      %v3804 = vld [vmem:[%s3580 + $0x14] sm:$0x1]
      %v3805 = vld [vmem:[%s3580 + $0x18] sm:$0xf]
      %v3806 = vld [vmem:[%s3580 + $0x1c] sm:$0x1]
      %v3807 = vld [vmem:[%s3580 + $0x20] sm:$0xf]
      %v3808 = vld [vmem:[%s3580 + $0x24] sm:$0x1]
      %v3809 = vld [vmem:[%s3580 + $0x28] sm:$0xf]
      %v3810 = vld [vmem:[%s3580 + $0x2c] sm:$0x1]
      %v3811 = vld [vmem:[%s3580 + $0x30] sm:$0xf]
      %v3812 = vld [vmem:[%s3580 + $0x34] sm:$0x1]
      %v3813 = vld [vmem:[%s3580 + $0x38] sm:$0xf]
      %v3814 = vld [vmem:[%s3580 + $0x3c] sm:$0x1]
      %v3816 = vshrl.u32 %v3799, 16
      %v3818 = vrot.slane %v3816, 4
      %v3819 = vshll.u32 %v3799, 16
      %v3821 = vrot.slane %v3819, 5
      %v3822 = vor.u32 %v3818, %v3821
      %v3823 = vrot.slane %v3822, 4
      %v3825 = vshll.u32 %v3800, 16
      %v3827 = vrot.slane %v3825, 5
      %v3828 = vsel %vm472, %v3823, %v3827
      %v3830 = vshrl.u32 %v3801, 16
      %v3832 = vrot.slane %v3830, 4
      %v3833 = vshll.u32 %v3801, 16
      %v3835 = vrot.slane %v3833, 5
      %v3836 = vor.u32 %v3832, %v3835
      %v3837 = vrot.slane %v3836, 4
      %v3839 = vshll.u32 %v3802, 16
      %v3841 = vrot.slane %v3839, 5
      %v3842 = vsel %vm472, %v3837, %v3841
      %v3844 = vshrl.u32 %v3803, 16
      %v3846 = vrot.slane %v3844, 4
      %v3847 = vshll.u32 %v3803, 16
      %v3849 = vrot.slane %v3847, 5
      %v3850 = vor.u32 %v3846, %v3849
      %v3851 = vrot.slane %v3850, 4
      %v3853 = vshll.u32 %v3804, 16
      %v3855 = vrot.slane %v3853, 5
      %v3856 = vsel %vm472, %v3851, %v3855
      %v3858 = vshrl.u32 %v3805, 16
      %v3860 = vrot.slane %v3858, 4
      %v3861 = vshll.u32 %v3805, 16
      %v3863 = vrot.slane %v3861, 5
      %v3864 = vor.u32 %v3860, %v3863
      %v3865 = vrot.slane %v3864, 4
      %v3867 = vshll.u32 %v3806, 16
      %v3869 = vrot.slane %v3867, 5
      %v3870 = vsel %vm472, %v3865, %v3869
      %v3872 = vshrl.u32 %v3807, 16
      %v3874 = vrot.slane %v3872, 4
      %v3875 = vshll.u32 %v3807, 16
      %v3877 = vrot.slane %v3875, 5
      %v3878 = vor.u32 %v3874, %v3877
      %v3879 = vrot.slane %v3878, 4
      %v3881 = vshll.u32 %v3808, 16
      %v3883 = vrot.slane %v3881, 5
      %v3884 = vsel %vm472, %v3879, %v3883
      %v3886 = vshrl.u32 %v3809, 16
      %v3888 = vrot.slane %v3886, 4
      %v3889 = vshll.u32 %v3809, 16
      %v3891 = vrot.slane %v3889, 5
      %v3892 = vor.u32 %v3888, %v3891
      %v3893 = vrot.slane %v3892, 4
      %v3895 = vshll.u32 %v3810, 16
      %v3897 = vrot.slane %v3895, 5
      %v3898 = vsel %vm472, %v3893, %v3897
      %v3900 = vshrl.u32 %v3811, 16
      %v3902 = vrot.slane %v3900, 4
      %v3903 = vshll.u32 %v3811, 16
      %v3905 = vrot.slane %v3903, 5
      %v3906 = vor.u32 %v3902, %v3905
      %v3907 = vrot.slane %v3906, 4
      %v3909 = vshll.u32 %v3812, 16
      %v3911 = vrot.slane %v3909, 5
      %v3912 = vsel %vm472, %v3907, %v3911
      %v3914 = vshrl.u32 %v3813, 16
      %v3916 = vrot.slane %v3914, 4
      %v3917 = vshll.u32 %v3813, 16
      %v3919 = vrot.slane %v3917, 5
      %v3920 = vor.u32 %v3916, %v3919
      %v3921 = vrot.slane %v3920, 4
      %v3923 = vshll.u32 %v3814, 16
      %v3925 = vrot.slane %v3923, 5
      %v3926 = vsel %vm472, %v3921, %v3925
      %s3927 = scalar_lea.vmem %s2, 896
      %v3928 = vld [vmem:[%s3927] sm:$0xff]
      %v3929 = vld [vmem:[%s3927 + $0x8] sm:$0xff]
      %v3930 = vld [vmem:[%s3927 + $0x10] sm:$0xff]
      %v3931 = vld [vmem:[%s3927 + $0x18] sm:$0xff]
      %v3932 = vld [vmem:[%s3927 + $0x20] sm:$0xff]
      %v3933 = vld [vmem:[%s3927 + $0x28] sm:$0xff]
      %v3934 = vld [vmem:[%s3927 + $0x30] sm:$0xff]
      %v3935 = vld [vmem:[%s3927 + $0x38] sm:$0xff]
      %v3936 = vld [vmem:[%s3927 + $0x40] sm:$0xff]
      %v3937 = vld [vmem:[%s3927 + $0x48] sm:$0xff]
      %v3938 = vld [vmem:[%s3927 + $0x50] sm:$0xff]
      %v3939 = vld [vmem:[%s3927 + $0x58] sm:$0xff]
      %v3940 = vld [vmem:[%s3927 + $0x60] sm:$0xff]
      %v3941 = vld [vmem:[%s3927 + $0x68] sm:$0xff]
      %v3942 = vld [vmem:[%s3927 + $0x70] sm:$0xff]
      %v3943 = vld [vmem:[%s3927 + $0x78] sm:$0xff]
      %v3944 = vunpack.c.l.b16 %v3828
      %v3945 = vunpack.c.l.b16 %v3842
      %v3946 = vunpack.c.l.b16 %v3856
      %v3947 = vunpack.c.l.b16 %v3870
      %v3948 = vunpack.c.l.b16 %v3884
      %v3949 = vunpack.c.l.b16 %v3898
      %v3950 = vunpack.c.l.b16 %v3912
      %v3951 = vunpack.c.l.b16 %v3926
      %v3952 = vpack.c.b16 %v3945, %v3944
      %v3953 = vpack.c.b16 %v3947, %v3946
      %v3954 = vpack.c.b16 %v3949, %v3948
      %v3955 = vpack.c.b16 %v3951, %v3950
      %v3976 = vunpack.c.l.b16 %v3928
      %v3977 = vunpack.c.h.b16 %v3928
      %v3978 = vunpack.c.l.b16 %v3929
      %v3979 = vunpack.c.h.b16 %v3929
      %v3980 = vunpack.c.l.b16 %v3930
      %v3981 = vunpack.c.h.b16 %v3930
      %v3982 = vunpack.c.l.b16 %v3931
      %v3983 = vunpack.c.h.b16 %v3931
      %v3984 = vunpack.c.l.b16 %v3932
      %v3985 = vunpack.c.h.b16 %v3932
      %v3986 = vunpack.c.l.b16 %v3933
      %v3987 = vunpack.c.h.b16 %v3933
      %v3988 = vunpack.c.l.b16 %v3934
      %v3989 = vunpack.c.h.b16 %v3934
      %v3990 = vunpack.c.l.b16 %v3935
      %v3991 = vunpack.c.h.b16 %v3935
      %v3992 = vunpack.c.l.b16 %v3936
      %v3993 = vunpack.c.h.b16 %v3936
      %v3994 = vunpack.c.l.b16 %v3937
      %v3995 = vunpack.c.h.b16 %v3937
      %v3996 = vunpack.c.l.b16 %v3938
      %v3997 = vunpack.c.h.b16 %v3938
      %v3998 = vunpack.c.l.b16 %v3939
      %v3999 = vunpack.c.h.b16 %v3939
      %v4000 = vunpack.c.l.b16 %v3940
      %v4001 = vunpack.c.h.b16 %v3940
      %v4002 = vunpack.c.l.b16 %v3941
      %v4003 = vunpack.c.h.b16 %v3941
      %v4004 = vunpack.c.l.b16 %v3942
      %v4005 = vunpack.c.h.b16 %v3942
      %v4006 = vunpack.c.l.b16 %v3943
      %v4007 = vunpack.c.h.b16 %v3943
      %v4008 = vpack.c.b16 %v3978, %v3976
      %v4009 = vpack.c.b16 %v3979, %v3977
      %v4010 = vpack.c.b16 %v3982, %v3980
      %v4011 = vpack.c.b16 %v3983, %v3981
      %v4012 = vpack.c.b16 %v3986, %v3984
      %v4013 = vpack.c.b16 %v3987, %v3985
      %v4014 = vpack.c.b16 %v3990, %v3988
      %v4015 = vpack.c.b16 %v3991, %v3989
      %v4016 = vpack.c.b16 %v3994, %v3992
      %v4017 = vpack.c.b16 %v3995, %v3993
      %v4018 = vpack.c.b16 %v3998, %v3996
      %v4019 = vpack.c.b16 %v3999, %v3997
      %v4020 = vpack.c.b16 %v4002, %v4000
      %v4021 = vpack.c.b16 %v4003, %v4001
      %v4022 = vpack.c.b16 %v4006, %v4004
      %v4023 = vpack.c.b16 %v4007, %v4005
      %4040 = vmatprep.subr.bf16.mxu0 %v4009
      %4041 = vmatpush1.bf16.msra.mxu0 %v4008
      %4042 = vmatprep.subr.bf16.mxu0 %v4011
      %4043 = vmatpush1.bf16.msra.mxu0 %v4010
      %4044 = vmatprep.subr.bf16.mxu0 %v4013
      %4045 = vmatpush1.bf16.msra.mxu0 %v4012
      %4046 = vmatprep.subr.bf16.mxu0 %v4015
      %4047 = vmatpush1.bf16.msra.mxu0 %v4014
      %4048 = vmatprep.subr.bf16.mxu0 %v4017
      %4049 = vmatpush1.bf16.msra.mxu0 %v4016
      %4050 = vmatprep.subr.bf16.mxu0 %v4019
      %4051 = vmatpush1.bf16.msra.mxu0 %v4018
      %4052 = vmatprep.subr.bf16.mxu0 %v4021
      %4053 = vmatpush1.bf16.msra.mxu0 %v4020
      %4054 = vmatprep.subr.bf16.mxu0 %v4023
      %4055 = vmatpush1.bf16.msra.mxu0 %v4022
      %4056 = vmatprep.subr.bf16.mxu0 0
      %4057 = vmatpush1.bf16.msra.mxu0 0
      %4058 = vmatprep.subr.bf16.mxu0 0
      %4059 = vmatpush1.bf16.msra.mxu0 0
      %4060 = vmatprep.subr.bf16.mxu0 0
      %4061 = vmatpush1.bf16.msra.mxu0 0
      %4062 = vmatprep.subr.bf16.mxu0 0
      %4063 = vmatpush1.bf16.msra.mxu0 0
      %4064 = vmatprep.subr.bf16.mxu0 0
      %4065 = vmatpush1.bf16.msra.mxu0 0
      %4066 = vmatprep.subr.bf16.mxu0 0
      %4067 = vmatpush1.bf16.msra.mxu0 0
      %4068 = vmatprep.subr.bf16.mxu0 0
      %4069 = vmatpush1.bf16.msra.mxu0 0
      %4070 = vmatprep.subr.bf16.mxu0 0
      %4071 = vmatpush1.bf16.msra.mxu0 0
      %4072 = vmatprep.mubr.bf16.mxu0 0
      %4073 = vmatmul.mubr.bf16.gmra.mrb[0].mxu0 %v3952
      %v4074 = vpop.f32.mrb[0].mxu0
      %v4075 = vadd.f32 0.0, %v4074
      %v4076 = vpop.f32.mrb[0].mxu0
      %v4077 = vadd.f32 0.0, %v4076
      %v4078 = vpop.f32.mrb[0].mxu0
      %v4079 = vadd.f32 0.0, %v4078
      %v4080 = vpop.f32.mrb[0].mxu0
      %v4081 = vadd.f32 0.0, %v4080
      %4082 = vmatprep.mubr.bf16.mxu0 0
      %4083 = vmatmul.mubr.bf16.gmra.mrb[0].mxu0 %v3953
      %v4084 = vpop.f32.mrb[0].mxu0
      %v4085 = vadd.f32 0.0, %v4084
      %v4086 = vpop.f32.mrb[0].mxu0
      %v4087 = vadd.f32 0.0, %v4086
      %v4088 = vpop.f32.mrb[0].mxu0
      %v4089 = vadd.f32 0.0, %v4088
      %v4090 = vpop.f32.mrb[0].mxu0
      %v4091 = vadd.f32 0.0, %v4090
      %4092 = vmatprep.mubr.bf16.mxu0 0
      %4093 = vmatmul.mubr.bf16.gmra.mrb[0].mxu0 %v3954
      %v4094 = vpop.f32.mrb[0].mxu0
      %v4095 = vadd.f32 0.0, %v4094
      %v4096 = vpop.f32.mrb[0].mxu0
      %v4097 = vadd.f32 0.0, %v4096
      %v4098 = vpop.f32.mrb[0].mxu0
      %v4099 = vadd.f32 0.0, %v4098
      %v4100 = vpop.f32.mrb[0].mxu0
      %v4101 = vadd.f32 0.0, %v4100
      %4102 = vmatprep.mubr.bf16.mxu0 0
      %4103 = vmatmul.mubr.bf16.gmra.mrb[0].mxu0 %v3955
      %v4104 = vpop.f32.mrb[0].mxu0
      %v4105 = vadd.f32 0.0, %v4104
      %v4106 = vpop.f32.mrb[0].mxu0
      %v4107 = vadd.f32 0.0, %v4106
      %v4108 = vpop.f32.mrb[0].mxu0
      %v4109 = vadd.f32 0.0, %v4108
      %v4110 = vpop.f32.mrb[0].mxu0
      %v4111 = vadd.f32 0.0, %v4110
      %4112 = vdwg.mxu0
      %v4113 = vadd.f32 %v3783, %v4075
      %v4114 = vadd.f32 %v3784, %v4077
      %v4115 = vadd.f32 %v3785, %v4079
      %v4116 = vadd.f32 %v3786, %v4081
      %v4117 = vadd.f32 %v3787, %v4085
      %v4118 = vadd.f32 %v3788, %v4087
      %v4119 = vadd.f32 %v3789, %v4089
      %v4120 = vadd.f32 %v3790, %v4091
      %v4121 = vadd.f32 %v3791, %v4095
      %v4122 = vadd.f32 %v3792, %v4097
      %v4123 = vadd.f32 %v3793, %v4099
      %v4124 = vadd.f32 %v3794, %v4101
      %v4125 = vadd.f32 %v3795, %v4105
      %v4126 = vadd.f32 %v3796, %v4107
      %v4127 = vadd.f32 %v3797, %v4109
      %v4128 = vadd.f32 %v3798, %v4111
      %v4129 = vld [vmem:[%s3580] sm:$0xe]
      %v4130 = vld [vmem:[%s3580 + $0x8] sm:$0xe]
      %v4131 = vld [vmem:[%s3580 + $0x10] sm:$0xe]
      %v4132 = vld [vmem:[%s3580 + $0x18] sm:$0xe]
      %v4133 = vld [vmem:[%s3580 + $0x20] sm:$0xe]
      %v4134 = vld [vmem:[%s3580 + $0x28] sm:$0xe]
      %v4135 = vld [vmem:[%s3580 + $0x30] sm:$0xe]
      %v4136 = vld [vmem:[%s3580 + $0x38] sm:$0xe]
      %v4153 = vrot.slane %v4129, 5
      %v4154 = vrot.slane %v4153, 4
      %v4155 = vrot.slane %v3800, 5
      %v4156 = vsel %vm2539, %v4154, %v4155
      %v4157 = vrot.slane %v4130, 5
      %v4158 = vrot.slane %v4157, 4
      %v4159 = vrot.slane %v3802, 5
      %v4160 = vsel %vm2539, %v4158, %v4159
      %v4161 = vrot.slane %v4131, 5
      %v4162 = vrot.slane %v4161, 4
      %v4163 = vrot.slane %v3804, 5
      %v4164 = vsel %vm2539, %v4162, %v4163
      %v4165 = vrot.slane %v4132, 5
      %v4166 = vrot.slane %v4165, 4
      %v4167 = vrot.slane %v3806, 5
      %v4168 = vsel %vm2539, %v4166, %v4167
      %v4169 = vrot.slane %v4133, 5
      %v4170 = vrot.slane %v4169, 4
      %v4171 = vrot.slane %v3808, 5
      %v4172 = vsel %vm2539, %v4170, %v4171
      %v4173 = vrot.slane %v4134, 5
      %v4174 = vrot.slane %v4173, 4
      %v4175 = vrot.slane %v3810, 5
      %v4176 = vsel %vm2539, %v4174, %v4175
      %v4177 = vrot.slane %v4135, 5
      %v4178 = vrot.slane %v4177, 4
      %v4179 = vrot.slane %v3812, 5
      %v4180 = vsel %vm2539, %v4178, %v4179
      %v4181 = vrot.slane %v4136, 5
      %v4182 = vrot.slane %v4181, 4
      %v4183 = vrot.slane %v3814, 5
      %v4184 = vsel %vm2539, %v4182, %v4183
      %s4185 = scalar_lea.vmem %s2, 1024
      %v4186 = vld [vmem:[%s4185] sm:$0xff]
      %v4187 = vld [vmem:[%s4185 + $0x8] sm:$0xff]
      %v4188 = vld [vmem:[%s4185 + $0x10] sm:$0xff]
      %v4189 = vld [vmem:[%s4185 + $0x18] sm:$0xff]
      %v4190 = vld [vmem:[%s4185 + $0x20] sm:$0xff]
      %v4191 = vld [vmem:[%s4185 + $0x28] sm:$0xff]
      %v4192 = vld [vmem:[%s4185 + $0x30] sm:$0xff]
      %v4193 = vld [vmem:[%s4185 + $0x38] sm:$0xff]
      %v4194 = vld [vmem:[%s4185 + $0x40] sm:$0xff]
      %v4195 = vld [vmem:[%s4185 + $0x48] sm:$0xff]
      %v4196 = vld [vmem:[%s4185 + $0x50] sm:$0xff]
      %v4197 = vld [vmem:[%s4185 + $0x58] sm:$0xff]
      %v4198 = vld [vmem:[%s4185 + $0x60] sm:$0xff]
      %v4199 = vld [vmem:[%s4185 + $0x68] sm:$0xff]
      %v4200 = vld [vmem:[%s4185 + $0x70] sm:$0xff]
      %v4201 = vld [vmem:[%s4185 + $0x78] sm:$0xff]
      %v4202 = vunpack.c.l.b16 %v4156
      %v4203 = vunpack.c.l.b16 %v4160
      %v4204 = vunpack.c.l.b16 %v4164
      %v4205 = vunpack.c.l.b16 %v4168
      %v4206 = vunpack.c.l.b16 %v4172
      %v4207 = vunpack.c.l.b16 %v4176
      %v4208 = vunpack.c.l.b16 %v4180
      %v4209 = vunpack.c.l.b16 %v4184
      %v4210 = vpack.c.b16 %v4203, %v4202
      %v4211 = vpack.c.b16 %v4205, %v4204
      %v4212 = vpack.c.b16 %v4207, %v4206
      %v4213 = vpack.c.b16 %v4209, %v4208
      %v4234 = vunpack.c.l.b16 %v4186
      %v4235 = vunpack.c.h.b16 %v4186
      %v4236 = vunpack.c.l.b16 %v4187
      %v4237 = vunpack.c.h.b16 %v4187
      %v4238 = vunpack.c.l.b16 %v4188
      %v4239 = vunpack.c.h.b16 %v4188
      %v4240 = vunpack.c.l.b16 %v4189
      %v4241 = vunpack.c.h.b16 %v4189
      %v4242 = vunpack.c.l.b16 %v4190
      %v4243 = vunpack.c.h.b16 %v4190
      %v4244 = vunpack.c.l.b16 %v4191
      %v4245 = vunpack.c.h.b16 %v4191
      %v4246 = vunpack.c.l.b16 %v4192
      %v4247 = vunpack.c.h.b16 %v4192
      %v4248 = vunpack.c.l.b16 %v4193
      %v4249 = vunpack.c.h.b16 %v4193
      %v4250 = vunpack.c.l.b16 %v4194
      %v4251 = vunpack.c.h.b16 %v4194
      %v4252 = vunpack.c.l.b16 %v4195
      %v4253 = vunpack.c.h.b16 %v4195
      %v4254 = vunpack.c.l.b16 %v4196
      %v4255 = vunpack.c.h.b16 %v4196
      %v4256 = vunpack.c.l.b16 %v4197
      %v4257 = vunpack.c.h.b16 %v4197
      %v4258 = vunpack.c.l.b16 %v4198
      %v4259 = vunpack.c.h.b16 %v4198
      %v4260 = vunpack.c.l.b16 %v4199
      %v4261 = vunpack.c.h.b16 %v4199
      %v4262 = vunpack.c.l.b16 %v4200
      %v4263 = vunpack.c.h.b16 %v4200
      %v4264 = vunpack.c.l.b16 %v4201
      %v4265 = vunpack.c.h.b16 %v4201
      %v4266 = vpack.c.b16 %v4236, %v4234
      %v4267 = vpack.c.b16 %v4237, %v4235
      %v4268 = vpack.c.b16 %v4240, %v4238
      %v4269 = vpack.c.b16 %v4241, %v4239
      %v4270 = vpack.c.b16 %v4244, %v4242
      %v4271 = vpack.c.b16 %v4245, %v4243
      %v4272 = vpack.c.b16 %v4248, %v4246
      %v4273 = vpack.c.b16 %v4249, %v4247
      %v4274 = vpack.c.b16 %v4252, %v4250
      %v4275 = vpack.c.b16 %v4253, %v4251
      %v4276 = vpack.c.b16 %v4256, %v4254
      %v4277 = vpack.c.b16 %v4257, %v4255
      %v4278 = vpack.c.b16 %v4260, %v4258
      %v4279 = vpack.c.b16 %v4261, %v4259
      %v4280 = vpack.c.b16 %v4264, %v4262
      %v4281 = vpack.c.b16 %v4265, %v4263
      %4298 = vmatprep.subr.bf16.mxu0 %v4267
      %4299 = vmatpush1.bf16.msra.mxu0 %v4266
      %4300 = vmatprep.subr.bf16.mxu0 %v4269
      %4301 = vmatpush1.bf16.msra.mxu0 %v4268
      %4302 = vmatprep.subr.bf16.mxu0 %v4271
      %4303 = vmatpush1.bf16.msra.mxu0 %v4270
      %4304 = vmatprep.subr.bf16.mxu0 %v4273
      %4305 = vmatpush1.bf16.msra.mxu0 %v4272
      %4306 = vmatprep.subr.bf16.mxu0 %v4275
      %4307 = vmatpush1.bf16.msra.mxu0 %v4274
      %4308 = vmatprep.subr.bf16.mxu0 %v4277
      %4309 = vmatpush1.bf16.msra.mxu0 %v4276
      %4310 = vmatprep.subr.bf16.mxu0 %v4279
      %4311 = vmatpush1.bf16.msra.mxu0 %v4278
      %4312 = vmatprep.subr.bf16.mxu0 %v4281
      %4313 = vmatpush1.bf16.msra.mxu0 %v4280
      %4314 = vmatprep.subr.bf16.mxu0 0
      %4315 = vmatpush1.bf16.msra.mxu0 0
      %4316 = vmatprep.subr.bf16.mxu0 0
      %4317 = vmatpush1.bf16.msra.mxu0 0
      %4318 = vmatprep.subr.bf16.mxu0 0
      %4319 = vmatpush1.bf16.msra.mxu0 0
      %4320 = vmatprep.subr.bf16.mxu0 0
      %4321 = vmatpush1.bf16.msra.mxu0 0
      %4322 = vmatprep.subr.bf16.mxu0 0
      %4323 = vmatpush1.bf16.msra.mxu0 0
      %4324 = vmatprep.subr.bf16.mxu0 0
      %4325 = vmatpush1.bf16.msra.mxu0 0
      %4326 = vmatprep.subr.bf16.mxu0 0
      %4327 = vmatpush1.bf16.msra.mxu0 0
      %4328 = vmatprep.subr.bf16.mxu0 0
      %4329 = vmatpush1.bf16.msra.mxu0 0
      %4330 = vmatprep.mubr.bf16.mxu0 0
      %4331 = vmatmul.mubr.bf16.gmra.mrb[0].mxu0 %v4210
      %v4332 = vpop.f32.mrb[0].mxu0
      %v4333 = vadd.f32 0.0, %v4332
      %v4334 = vpop.f32.mrb[0].mxu0
      %v4335 = vadd.f32 0.0, %v4334
      %v4336 = vpop.f32.mrb[0].mxu0
      %v4337 = vadd.f32 0.0, %v4336
      %v4338 = vpop.f32.mrb[0].mxu0
      %v4339 = vadd.f32 0.0, %v4338
      %4340 = vmatprep.mubr.bf16.mxu0 0
      %4341 = vmatmul.mubr.bf16.gmra.mrb[0].mxu0 %v4211
      %v4342 = vpop.f32.mrb[0].mxu0
      %v4343 = vadd.f32 0.0, %v4342
      %v4344 = vpop.f32.mrb[0].mxu0
      %v4345 = vadd.f32 0.0, %v4344
      %v4346 = vpop.f32.mrb[0].mxu0
      %v4347 = vadd.f32 0.0, %v4346
      %v4348 = vpop.f32.mrb[0].mxu0
      %v4349 = vadd.f32 0.0, %v4348
      %4350 = vmatprep.mubr.bf16.mxu0 0
      %4351 = vmatmul.mubr.bf16.gmra.mrb[0].mxu0 %v4212
      %v4352 = vpop.f32.mrb[0].mxu0
      %v4353 = vadd.f32 0.0, %v4352
      %v4354 = vpop.f32.mrb[0].mxu0
      %v4355 = vadd.f32 0.0, %v4354
      %v4356 = vpop.f32.mrb[0].mxu0
      %v4357 = vadd.f32 0.0, %v4356
      %v4358 = vpop.f32.mrb[0].mxu0
      %v4359 = vadd.f32 0.0, %v4358
      %4360 = vmatprep.mubr.bf16.mxu0 0
      %4361 = vmatmul.mubr.bf16.gmra.mrb[0].mxu0 %v4213
      %v4362 = vpop.f32.mrb[0].mxu0
      %v4363 = vadd.f32 0.0, %v4362
      %v4364 = vpop.f32.mrb[0].mxu0
      %v4365 = vadd.f32 0.0, %v4364
      %v4366 = vpop.f32.mrb[0].mxu0
      %v4367 = vadd.f32 0.0, %v4366
      %v4368 = vpop.f32.mrb[0].mxu0
      %v4369 = vadd.f32 0.0, %v4368
      %4370 = vdwg.mxu0
      %v4371 = vadd.f32 %v4113, %v4333
      %v4372 = vadd.f32 %v4114, %v4335
      %v4373 = vadd.f32 %v4115, %v4337
      %v4374 = vadd.f32 %v4116, %v4339
      %v4375 = vadd.f32 %v4117, %v4343
      %v4376 = vadd.f32 %v4118, %v4345
      %v4377 = vadd.f32 %v4119, %v4347
      %v4378 = vadd.f32 %v4120, %v4349
      %v4379 = vadd.f32 %v4121, %v4353
      %v4380 = vadd.f32 %v4122, %v4355
      %v4381 = vadd.f32 %v4123, %v4357
      %v4382 = vadd.f32 %v4124, %v4359
      %v4383 = vadd.f32 %v4125, %v4363
      %v4384 = vadd.f32 %v4126, %v4365
      %v4385 = vadd.f32 %v4127, %v4367
      %v4386 = vadd.f32 %v4128, %v4369
      %v4387 = vmax.f32 %v4371, 0.0
      %v4388 = vmax.f32 %v4372, 0.0
      %v4389 = vmax.f32 %v4373, 0.0
      %v4390 = vmax.f32 %v4374, 0.0
      %v4391 = vmax.f32 %v4375, 0.0
      %v4392 = vmax.f32 %v4376, 0.0
      %v4393 = vmax.f32 %v4377, 0.0
      %v4394 = vmax.f32 %v4378, 0.0
      %v4395 = vmax.f32 %v4379, 0.0
      %v4396 = vmax.f32 %v4380, 0.0
      %v4397 = vmax.f32 %v4381, 0.0
      %v4398 = vmax.f32 %v4382, 0.0
      %v4399 = vmax.f32 %v4383, 0.0
      %v4400 = vmax.f32 %v4384, 0.0
      %v4401 = vmax.f32 %v4385, 0.0
      %v4402 = vmax.f32 %v4386, 0.0
      %4403 = vst [vmem:[%s175] sm:$0xff] %v4387
      %4404 = vst [vmem:[%s175 + $0x8] sm:$0xff] %v4388
      %4405 = vst [vmem:[%s175 + $0x10] sm:$0xff] %v4389
      %4406 = vst [vmem:[%s175 + $0x18] sm:$0xff] %v4390
      %4407 = vst [vmem:[%s175 + $0x20] sm:$0xff] %v4391
      %4408 = vst [vmem:[%s175 + $0x28] sm:$0xff] %v4392
      %4409 = vst [vmem:[%s175 + $0x30] sm:$0xff] %v4393
      %4410 = vst [vmem:[%s175 + $0x38] sm:$0xff] %v4394
      %4411 = vst [vmem:[%s175 + $0x40] sm:$0xff] %v4395
      %4412 = vst [vmem:[%s175 + $0x48] sm:$0xff] %v4396
      %4413 = vst [vmem:[%s175 + $0x50] sm:$0xff] %v4397
      %4414 = vst [vmem:[%s175 + $0x58] sm:$0xff] %v4398
      %4415 = vst [vmem:[%s175 + $0x60] sm:$0xff] %v4399
      %4416 = vst [vmem:[%s175 + $0x68] sm:$0xff] %v4400
      %4417 = vst [vmem:[%s175 + $0x70] sm:$0xff] %v4401
      %4418 = vst [vmem:[%s175 + $0x78] sm:$0xff] %v4402
      %p4419 = scmp.lt.s32.totalorder %s14, 1
      %s4420 = scalar_select %p4419, %s14, 1
      %s4421 = smul.addr %s4420, 16
      %s4422 = smul.addr %s4421, 8
      %s4423 = scalar_lea.vmem %s3, %s4422
      // Predicated region
      $region33: #{tiny_client_model_forward.1} parent=31 // pred_check
        %p4424 = pneg %p100
      $region34: #{tiny_client_model_forward.1} parent=31 // pred_check_branch
        %4426 = sbr.rel (%p4424) target = $region36
      $region35: #{tiny_client_model_forward.1} parent=31 // pred_region
        _
      $region36: #{tiny_client_model_forward.1} parent=31 // pred_fallthru
        _
    $region32: #{tiny_client_model_forward.1} parent=5 // pred_fallthru
      _
    %p4427 = scmp.le.s32.totalorder 2, %s9
    // Predicated region
    $region37: #{tiny_client_model_forward.1} parent=5 // pred_check
      %p4428 = pneg %p4427
    $region38: #{tiny_client_model_forward.1} parent=5 // pred_check_branch
      %4430 = sbr.rel (%p4428) target = $region40
    $region39: #{tiny_client_model_forward.1} parent=5 // pred_region
      %s4431 = ssub.s32 %s9, 2
      // Predicated region
      $region41: #{tiny_client_model_forward.1} parent=39 // pred_check
        %p4432 = pneg %p106
      $region42: #{tiny_client_model_forward.1} parent=39 // pred_check_branch
        %4434 = sbr.rel (%p4432) target = $region44
      $region43: #{tiny_client_model_forward.1} parent=39 // pred_region
        %p4435 = scmp.lt.s32.totalorder %s15, 1
        %s4436 = scalar_select %p4435, %s15, 1
        %s4437 = smul.addr %s4436, 16
        %s4438 = smul.addr %s4437, 8
        %s4439 = scalar_lea.vmem %s3, %s4438
      $region44: #{tiny_client_model_forward.1} parent=39 // pred_fallthru
        _
    $region40: #{tiny_client_model_forward.1} parent=5 // pred_fallthru
      _
  $region6: #{tiny_client_model_forward.1} parent=0 // loop_footer
    %s13 = sadd.s32 1, %s9
  $region7: #{tiny_client_model_forward.1} parent=0 // loop_footer_branch
    %8 = sbr.rel target = $region3
  $region8: #{tiny_client_model_forward.1} parent=0 // loop_exit
    _

</llo_original>
